<compile_context>
chip_gen: v5e
topology: v5e:2x2
jax: 0.10.0
libtpu: 0.0.40
codegen_flags: <defaults>
</compile_context>

<pallas_src>
import numpy as np
import jax
import jax.numpy as jnp
from jax.experimental import pallas as pl
from jax.experimental.pallas import tpu as pltpu

_VMEM = pl.BlockSpec(memory_space=pltpu.MemorySpace.VMEM)
_LANES = 128


# --------------------------------------------------------------------------------------
# Fused kernel factory: whole forward pass, single invocation, everything VMEM-resident.
# --------------------------------------------------------------------------------------
def _make_fused_kernel(T, bs, G, C, Hd, P, D, nc, layout):
    """layout: name -> (row_offset, rows, cols) into the packed weight blob."""
    N = bs * G

    def kernel(cnn_ref, gaze_ref, blob_ref, out_ref, feat_sc, h_sc):
        def dot(a, b):
            return jnp.dot(a, b, preferred_element_type=jnp.float32)

        def W(name):
            o, r, c = layout[name]
            return blob_ref[o:o + r, :c]

        # ---- hoist all weight/bias/constant loads out of the frame loop (one blob) ----
        wl, bl = W("Wl"), W("bl")
        wc, bc = W("Wc"), W("bc")
        ww = W("ww")                                   # (1, P) attention weight row
        wih, whh, blstm = W("Wih"), W("Whh"), W("b_lstm")
        w1a, w1b, b1 = W("W1a"), W("W1b"), W("b1")
        w2, b2, w3, b3 = W("W2"), W("b2"), W("W3"), W("b3")
        wha, bha, whb, bhb = W("Wha"), W("bha"), W("Whb"), W("bhb")
        wca, bca, wcb, bcb = W("Wca"), W("bca"), W("Wcb"), W("bcb")
        qexp = W("Qexp")                               # (N, bs)  batch-row -> grid-cell expand
        perm = W("Perm")                               # (N, N)   torch cat(dim=0).view scramble
        gmat = W("Gmat")                               # (bs, N)  group-of-G sum / pooling

        gz = gaze_ref[...]                             # (T*bs, 3) resident in VMEM

        # ---- init LSTM state: Linear+Tanh+Linear+Tanh, plus the extra outer F.tanh ----
        mean_gaze = gz[0:bs, :]
        for t in range(1, T):
            mean_gaze = mean_gaze + gz[t * bs:(t + 1) * bs, :]
        mean_gaze = mean_gaze * (1.0 / T)
        h = jnp.tanh(dot(mean_gaze, wha) + bha)
        h = jnp.tanh(dot(h, whb) + bhb)
        h = jnp.tanh(h)
        c = jnp.tanh(dot(mean_gaze, wca) + bca)
        c = jnp.tanh(dot(c, wcb) + bcb)
        c = jnp.tanh(c)

        # ---- hoisted, h-independent projections for the whole sequence ----
        v_flat = dot(cnn_ref[...], wc) + bc            # (T*bs*G, P)
        xproj = dot(gz, wih) + blstm                   # (T*bs, 4*Hd): gaze@Wih out of O(T^2) prefix

        def lstm_step(xp, h, c):
            gates = xp + dot(h, whh)
            i_g = jax.nn.sigmoid(gates[:, 0:Hd])
            f_g = jax.nn.sigmoid(gates[:, Hd:2 * Hd])
            g_g = jnp.tanh(gates[:, 2 * Hd:3 * Hd])
            o_g = jax.nn.sigmoid(gates[:, 3 * Hd:4 * Hd])
            c_new = f_g * c + i_g * g_g
            return o_g * jnp.tanh(c_new), c_new

        # TODO(synk): convert to lax.fori_loop if T grows beyond ~16; unroll is fine at T=6.
        for i in range(T):
            # -------- spatial attention scores, whole batch at once --------
            h_proj = dot(h, wl) + bl                   # (bs, P)  attention uses pre-LSTM h
            hexp = dot(qexp, h_proj)                   # (N, P)   row b broadcast over its G cells
            v_i = v_flat[i * N:(i + 1) * N, :]         # (N, P)
            s = jnp.tanh(v_i + hexp)
            z_col = jnp.sum(s * ww, axis=1, keepdims=True)   # (N, 1) VPU mult + lane reduce
            # faithful torch cat(dim=0).view(bs, grid) scramble == one permutation matmul
            flat = dot(perm, z_col)                          # (N, 1)

            # -------- batched softmax over grid cells + weighted spatial pooling --------
            fmax = jnp.max(flat, axis=0, keepdims=True)      # global max (valid stabilizer)
            e = jnp.exp(flat - fmax)                         # (N, 1)
            ssum = dot(gmat, e)                              # (bs, 1) per-row denominators
            cnn_i = cnn_ref[i * N:(i + 1) * N, :]            # (N, C)
            pooled = dot(gmat, e * cnn_i)                    # (bs, C) unnormalized pooling
            spatial = pooled * pl.reciprocal(ssum, approx=True)
            feat_sc[i * bs:(i + 1) * bs, :] = spatial

            # -------- gaze LSTM: same quirky prefix feeding as the torch code --------
            steps = (0,) if i == 0 else tuple(range(i))
            for t in steps:
                h, c = lstm_step(xproj[t * bs:(t + 1) * bs, :], h, c)
            h_sc[i * bs:(i + 1) * bs, :] = h

        # -------- 3-layer MLP head batched over all frames, one lane-dense writeback ----
        feats = feat_sc[...]                           # (T*bs, C)
        hs = h_sc[...]                                 # (T*bs, Hd)
        h1 = dot(feats, w1a) + dot(hs, w1b) + b1       # W1 split => no in-kernel concat
        h2 = dot(h1, w2) + b2
        out_ref[...] = dot(h2, w3) + b3                # (T*bs, nc) single store

    return kernel


# --------------------------------------------------------------------------------------
# Wrapper: layout prep, weight-blob packing, single pallas_call.
# --------------------------------------------------------------------------------------
def _pack_blob(entries):
    """Pack small 2-D tensors into one (R, 128) f32 blob (rows padded to multiples of 8)."""
    pieces, layout, row = [], {}, 0
    for name, a in entries:
        a = jnp.asarray(a, jnp.float32)
        r, c = a.shape
        assert c <= _LANES, (name, a.shape)
        rp = ((r + 7) // 8) * 8
        pieces.append(jnp.pad(a, ((0, rp - r), (0, _LANES - c))))
        layout[name] = (row, r, c)
        row += rp
    return jnp.concatenate(pieces, axis=0), layout


def _forward_impl(params, cnn_feat_seq, gaze_seq):
    bs, T, G, C = cnn_feat_seq.shape
    Hd = params["Whh"].shape[0]
    P = params["Wl"].shape[1]
    nc = params["W3"].shape[1]
    D = C + Hd
    N = bs * G

    # host-side layout prep (cheap, one-time)
    cnn_flat = jnp.transpose(cnn_feat_seq, (1, 0, 2, 3)).reshape(T * N, C)   # (frame,batch,grid)
    gaze_2d = jnp.transpose(gaze_seq, (1, 0, 2)).reshape(T * bs, 3)          # (frame,batch)

    # constant one-hot matrices (depend only on bs, G)
    n_idx = np.arange(N)
    perm_np = np.zeros((N, N), np.float32)     # flat[n] = z_col[(n % bs)*G + n // bs]
    perm_np[n_idx, (n_idx % bs) * G + n_idx // bs] = 1.0
    gmat_np = np.zeros((bs, N), np.float32)    # group-of-G summation / pooling
    gmat_np[n_idx // G, n_idx] = 1.0
    qexp_np = gmat_np.T.copy()                 # batch-row -> grid-cell expansion

    blob, layout = _pack_blob([
        ("Wl", params["Wl"]), ("bl", params["bl"]),
        ("Wc", params["Wc"]), ("bc", params["bc"]),
        ("ww", params["ww"].reshape(1, P)),
        ("Wih", params["Wih"]), ("Whh", params["Whh"]), ("b_lstm", params["b_lstm"]),
        ("W1a", params["W1"][:C, :]), ("W1b", params["W1"][C:, :]), ("b1", params["b1"]),
        ("W2", params["W2"]), ("b2", params["b2"]),
        ("W3", params["W3"]), ("b3", params["b3"]),
        ("Wha", params["Wha"]), ("bha", params["bha"]),
        ("Whb", params["Whb"]), ("bhb", params["bhb"]),
        ("Wca", params["Wca"]), ("bca", params["bca"]),
        ("Wcb", params["Wcb"]), ("bcb", params["bcb"]),
        ("Qexp", qexp_np), ("Perm", perm_np), ("Gmat", gmat_np),
    ])

    kernel = _make_fused_kernel(T, bs, G, C, Hd, P, D, nc, layout)

    out = pl.pallas_call(
        kernel,
        out_shape=jax.ShapeDtypeStruct((T * bs, nc), jnp.float32),
        in_specs=[_VMEM, _VMEM, _VMEM],
        out_specs=_VMEM,
        scratch_shapes=[pltpu.VMEM((T * bs, C), jnp.float32),
                        pltpu.VMEM((T * bs, Hd), jnp.float32)],
    )(cnn_flat, gaze_2d, blob)

    # torch: cat([pred.unsqueeze(0) for pred in preds], dim=1) -> (1, T*bs, num_class)
    return out.reshape(1, T * bs, nc)


forward = jax.jit(_forward_impl)


# --------------------------------------------------------------------------------------
# Pure-JAX reference (mirrors the PyTorch module exactly, including the .view scramble)
# --------------------------------------------------------------------------------------
def _reference_forward(params, cnn_feat_seq, gaze_seq):
    bs, T, G, C = cnn_feat_seq.shape
    Hd = params["Whh"].shape[0]
    mean_gaze = jnp.mean(gaze_seq, axis=1)
    h = jnp.tanh(jnp.tanh(jnp.tanh(mean_gaze @ params["Wha"] + params["bha"])
                          @ params["Whb"] + params["bhb"]))
    c = jnp.tanh(jnp.tanh(jnp.tanh(mean_gaze @ params["Wca"] + params["bca"])
                          @ params["Wcb"] + params["bcb"]))
    preds = []
    for i in range(T):
        cnn = cnn_feat_seq[:, i]                                       # (bs, G, C)
        H = h @ params["Wl"] + params["bl"]                            # (bs, P)
        V = cnn @ params["Wc"] + params["bc"]                          # (bs, G, P)
        z = (jnp.tanh(H[:, None, :] + V) @ params["ww"])[..., 0]       # (bs, G) true (b, g)
        flat = z.T.reshape(-1)                                         # torch cat(dim=0) order
        scr = flat.reshape(bs, G)                                      # the .view scramble
        w = jax.nn.softmax(scr, axis=1)
        spatial = jnp.sum(cnn * w[:, :, None], axis=1)                 # (bs, C)
        n_steps = 1 if i == 0 else i
        for t in range(n_steps):
            x = gaze_seq[:, t, :]
            gates = x @ params["Wih"] + h @ params["Whh"] + params["b_lstm"]
            ig = jax.nn.sigmoid(gates[:, :Hd])
            fg = jax.nn.sigmoid(gates[:, Hd:2 * Hd])
            gg = jnp.tanh(gates[:, 2 * Hd:3 * Hd])
            og = jax.nn.sigmoid(gates[:, 3 * Hd:4 * Hd])
            c = fg * c + ig * gg
            h = og * jnp.tanh(c)
        feat = jnp.concatenate([spatial, h], axis=1)
        x1 = feat @ params["W1"] + params["b1"]
        x2 = x1 @ params["W2"] + params["b2"]
        preds.append(x2 @ params["W3"] + params["b3"])
    return jnp.stack(preds, axis=0).reshape(1, T * bs, -1)


# --------------------------------------------------------------------------------------
# Deterministic parameter construction (synthetic, PyTorch-like fan-in uniform init)
# --------------------------------------------------------------------------------------
def init_params(key, cnn_feat_size, gaze_lstm_hidden_size, projected_size, num_class, gaze_size=3):
    C, Hd, P, nc = cnn_feat_size, gaze_lstm_hidden_size, projected_size, num_class
    D = C + Hd
    ks = jax.random.split(key, 24)

    def lin(k, fan_in, shape):
        bound = float(fan_in) ** -0.5
        return jax.random.uniform(k, shape, jnp.float32, -bound, bound)

    return {
        # SpatialAttentionLayer
        "Wl": lin(ks[0], Hd, (Hd, P)), "bl": lin(ks[1], Hd, (1, P)),
        "Wc": lin(ks[2], C, (C, P)),   "bc": lin(ks[3], C, (1, P)),
        "ww": lin(ks[4], P, (P, 1)),                                  # linear_weight (bias=False)
        # gaze LSTM (gate order i, f, g, o; b = b_ih + b_hh folded into one)
        "Wih": lin(ks[5], Hd, (gaze_size, 4 * Hd)),
        "Whh": lin(ks[6], Hd, (Hd, 4 * Hd)),
        "b_lstm": lin(ks[7], Hd, (1, 4 * Hd)),
        # MLP classifier: Linear(D,D), Linear(D,D), Linear(D,nc)
        "W1": lin(ks[8], D, (D, D)),  "b1": lin(ks[9], D, (1, D)),
        "W2": lin(ks[10], D, (D, D)), "b2": lin(ks[11], D, (1, D)),
        "W3": lin(ks[12], D, (D, nc)), "b3": lin(ks[13], D, (1, nc)),
        # init_hidden / init_cell MLPs: Linear(3,Hd)+Tanh+Linear(Hd,Hd)+Tanh
        "Wha": lin(ks[14], gaze_size, (gaze_size, Hd)), "bha": lin(ks[15], gaze_size, (1, Hd)),
        "Whb": lin(ks[16], Hd, (Hd, Hd)),               "bhb": lin(ks[17], Hd, (1, Hd)),
        "Wca": lin(ks[18], gaze_size, (gaze_size, Hd)), "bca": lin(ks[19], gaze_size, (1, Hd)),
        "Wcb": lin(ks[20], Hd, (Hd, Hd)),               "bcb": lin(ks[21], Hd, (1, Hd)),
    }


# --------------------------------------------------------------------------------------
if __name__ == "__main__":
    # Small shapes consistent with the module: grid_num = 16 (grid_side = 4)
    bs, num_frame, grid_num, cnn_feat_size = 2, 6, 16, 32
    gaze_size, gaze_lstm_hidden_size, spatial_projected_size, num_class = 3, 16, 32, 5

    key = jax.random.PRNGKey(0)
    k_cnn, k_gaze, k_param = jax.random.split(key, 3)

    cnn_feat_seq = jax.random.normal(k_cnn, (bs, num_frame, grid_num, cnn_feat_size), jnp.float32)
    gaze_seq = jax.random.normal(k_gaze, (bs, num_frame, gaze_size), jnp.float32)
    params = init_params(k_param, cnn_feat_size, gaze_lstm_hidden_size,
                         spatial_projected_size, num_class, gaze_size)

    pred_all = forward(params, cnn_feat_seq, gaze_seq)
    pred_all = jax.block_until_ready(pred_all)

    assert pred_all.shape == (1, num_frame * bs, num_class), pred_all.shape
    assert bool(jnp.all(jnp.isfinite(pred_all)))

    # Numerical check against a pure-JAX mirror of the PyTorch forward.
    ref = jax.block_until_ready(_reference_forward(params, cnn_feat_seq, gaze_seq))
    assert bool(jnp.allclose(pred_all, ref, rtol=2e-3, atol=2e-3)), (
        float(jnp.max(jnp.abs(pred_all - ref))))

    print("KERNEL_OK")
</pallas_src>

<mosaic_0001>
module attributes {stable_mosaic.version = 11 : i64} {
  func.func @kernel(%arg0: memref<192x32xf32, #tpu.memory_space<vmem>>, %arg1: memref<12x3xf32, #tpu.memory_space<vmem>>, %arg2: memref<424x128xf32, #tpu.memory_space<vmem>>, %arg3: memref<12x5xf32, #tpu.memory_space<vmem>>, %arg4: memref<12x32xf32, #tpu.memory_space<vmem>>, %arg5: memref<12x16xf32, #tpu.memory_space<vmem>>) attributes {dimension_semantics = [], scalar_prefetch = 0 : i64, scratch_operands = 2 : i64, tpu.core_type = #tpu.core_type<tc>} {
    %c0 = arith.constant 0 : index
    %c0_0 = arith.constant 0 : index
    %0 = vector.load %arg2[%c0, %c0_0] : memref<424x128xf32, #tpu.memory_space<vmem>>, vector<16x32xf32>
    %c16 = arith.constant 16 : index
    %c0_1 = arith.constant 0 : index
    %1 = vector.load %arg2[%c16, %c0_1] : memref<424x128xf32, #tpu.memory_space<vmem>>, vector<1x32xf32>
    %c24 = arith.constant 24 : index
    %c0_2 = arith.constant 0 : index
    %2 = vector.load %arg2[%c24, %c0_2] : memref<424x128xf32, #tpu.memory_space<vmem>>, vector<32x32xf32>
    %c56 = arith.constant 56 : index
    %c0_3 = arith.constant 0 : index
    %3 = vector.load %arg2[%c56, %c0_3] : memref<424x128xf32, #tpu.memory_space<vmem>>, vector<1x32xf32>
    %c64 = arith.constant 64 : index
    %c0_4 = arith.constant 0 : index
    %4 = vector.load %arg2[%c64, %c0_4] : memref<424x128xf32, #tpu.memory_space<vmem>>, vector<1x32xf32>
    %c72 = arith.constant 72 : index
    %c0_5 = arith.constant 0 : index
    %5 = vector.load %arg2[%c72, %c0_5] : memref<424x128xf32, #tpu.memory_space<vmem>>, vector<3x64xf32>
    %c80 = arith.constant 80 : index
    %c0_6 = arith.constant 0 : index
    %6 = vector.load %arg2[%c80, %c0_6] : memref<424x128xf32, #tpu.memory_space<vmem>>, vector<16x64xf32>
    %c96 = arith.constant 96 : index
    %c0_7 = arith.constant 0 : index
    %7 = vector.load %arg2[%c96, %c0_7] : memref<424x128xf32, #tpu.memory_space<vmem>>, vector<1x64xf32>
    %c104 = arith.constant 104 : index
    %c0_8 = arith.constant 0 : index
    %8 = vector.load %arg2[%c104, %c0_8] : memref<424x128xf32, #tpu.memory_space<vmem>>, vector<32x48xf32>
    %c136 = arith.constant 136 : index
    %c0_9 = arith.constant 0 : index
    %9 = vector.load %arg2[%c136, %c0_9] : memref<424x128xf32, #tpu.memory_space<vmem>>, vector<16x48xf32>
    %c152 = arith.constant 152 : index
    %c0_10 = arith.constant 0 : index
    %10 = vector.load %arg2[%c152, %c0_10] : memref<424x128xf32, #tpu.memory_space<vmem>>, vector<1x48xf32>
    %c160 = arith.constant 160 : index
    %c0_11 = arith.constant 0 : index
    %11 = vector.load %arg2[%c160, %c0_11] : memref<424x128xf32, #tpu.memory_space<vmem>>, vector<48x48xf32>
    %c208 = arith.constant 208 : index
    %c0_12 = arith.constant 0 : index
    %12 = vector.load %arg2[%c208, %c0_12] : memref<424x128xf32, #tpu.memory_space<vmem>>, vector<1x48xf32>
    %c216 = arith.constant 216 : index
    %c0_13 = arith.constant 0 : index
    %13 = vector.load %arg2[%c216, %c0_13] : memref<424x128xf32, #tpu.memory_space<vmem>>, vector<48x5xf32>
    %c264 = arith.constant 264 : index
    %c0_14 = arith.constant 0 : index
    %14 = vector.load %arg2[%c264, %c0_14] : memref<424x128xf32, #tpu.memory_space<vmem>>, vector<1x5xf32>
    %c272 = arith.constant 272 : index
    %c0_15 = arith.constant 0 : index
    %15 = vector.load %arg2[%c272, %c0_15] : memref<424x128xf32, #tpu.memory_space<vmem>>, vector<3x16xf32>
    %c280 = arith.constant 280 : index
    %c0_16 = arith.constant 0 : index
    %16 = vector.load %arg2[%c280, %c0_16] : memref<424x128xf32, #tpu.memory_space<vmem>>, vector<1x16xf32>
    %c288 = arith.constant 288 : index
    %c0_17 = arith.constant 0 : index
    %17 = vector.load %arg2[%c288, %c0_17] : memref<424x128xf32, #tpu.memory_space<vmem>>, vector<16x16xf32>
    %c304 = arith.constant 304 : index
    %c0_18 = arith.constant 0 : index
    %18 = vector.load %arg2[%c304, %c0_18] : memref<424x128xf32, #tpu.memory_space<vmem>>, vector<1x16xf32>
    %c312 = arith.constant 312 : index
    %c0_19 = arith.constant 0 : index
    %19 = vector.load %arg2[%c312, %c0_19] : memref<424x128xf32, #tpu.memory_space<vmem>>, vector<3x16xf32>
    %c320 = arith.constant 320 : index
    %c0_20 = arith.constant 0 : index
    %20 = vector.load %arg2[%c320, %c0_20] : memref<424x128xf32, #tpu.memory_space<vmem>>, vector<1x16xf32>
    %c328 = arith.constant 328 : index
    %c0_21 = arith.constant 0 : index
    %21 = vector.load %arg2[%c328, %c0_21] : memref<424x128xf32, #tpu.memory_space<vmem>>, vector<16x16xf32>
    %c344 = arith.constant 344 : index
    %c0_22 = arith.constant 0 : index
    %22 = vector.load %arg2[%c344, %c0_22] : memref<424x128xf32, #tpu.memory_space<vmem>>, vector<1x16xf32>
    %c352 = arith.constant 352 : index
    %c0_23 = arith.constant 0 : index
    %23 = vector.load %arg2[%c352, %c0_23] : memref<424x128xf32, #tpu.memory_space<vmem>>, vector<32x2xf32>
    %c384 = arith.constant 384 : index
    %c0_24 = arith.constant 0 : index
    %24 = vector.load %arg2[%c384, %c0_24] : memref<424x128xf32, #tpu.memory_space<vmem>>, vector<32x32xf32>
    %c416 = arith.constant 416 : index
    %c0_25 = arith.constant 0 : index
    %25 = vector.load %arg2[%c416, %c0_25] : memref<424x128xf32, #tpu.memory_space<vmem>>, vector<2x32xf32>
    %c0_26 = arith.constant 0 : index
    %c0_27 = arith.constant 0 : index
    %26 = vector.load %arg1[%c0_26, %c0_27] : memref<12x3xf32, #tpu.memory_space<vmem>>, vector<12x3xf32>
    %27 = vector.extract_strided_slice %26 {offsets = [0, 0], sizes = [2, 3], strides = [1, 1]} : vector<12x3xf32> to vector<2x3xf32>
    %28 = vector.extract_strided_slice %26 {offsets = [2, 0], sizes = [2, 3], strides = [1, 1]} : vector<12x3xf32> to vector<2x3xf32>
    %29 = arith.addf %27, %28 : vector<2x3xf32>
    %30 = vector.extract_strided_slice %26 {offsets = [4, 0], sizes = [2, 3], strides = [1, 1]} : vector<12x3xf32> to vector<2x3xf32>
    %31 = arith.addf %29, %30 : vector<2x3xf32>
    %32 = vector.extract_strided_slice %26 {offsets = [6, 0], sizes = [2, 3], strides = [1, 1]} : vector<12x3xf32> to vector<2x3xf32>
    %33 = arith.addf %31, %32 : vector<2x3xf32>
    %34 = vector.extract_strided_slice %26 {offsets = [8, 0], sizes = [2, 3], strides = [1, 1]} : vector<12x3xf32> to vector<2x3xf32>
    %35 = arith.addf %33, %34 : vector<2x3xf32>
    %36 = vector.extract_strided_slice %26 {offsets = [10, 0], sizes = [2, 3], strides = [1, 1]} : vector<12x3xf32> to vector<2x3xf32>
    %37 = arith.addf %35, %36 : vector<2x3xf32>
    %cst = arith.constant 0.166666672 : f32
    %38 = vector.broadcast %cst : f32 to vector<2x3xf32>
    %39 = arith.mulf %37, %38 : vector<2x3xf32>
    %cst_28 = arith.constant dense<0.000000e+00> : vector<2x16xf32>
    %40 = tpu.matmul %39, %15, %cst_28 {dimension_numbers = #tpu.dot_dimension_numbers<[1], [0], [0], [1], [0, 0, 1, 1], [], []>} : vector<2x3xf32>, vector<3x16xf32>, vector<2x16xf32> -> vector<2x16xf32>
    %41 = vector.broadcast %16 : vector<1x16xf32> to vector<2x16xf32>
    %42 = arith.addf %40, %41 : vector<2x16xf32>
    %43 = math.tanh %42 : vector<2x16xf32>
    %cst_29 = arith.constant dense<0.000000e+00> : vector<2x16xf32>
    %44 = tpu.matmul %43, %17, %cst_29 {dimension_numbers = #tpu.dot_dimension_numbers<[1], [0], [0], [1], [0, 0, 1, 1], [], []>} : vector<2x16xf32>, vector<16x16xf32>, vector<2x16xf32> -> vector<2x16xf32>
    %45 = vector.broadcast %18 : vector<1x16xf32> to vector<2x16xf32>
    %46 = arith.addf %44, %45 : vector<2x16xf32>
    %47 = math.tanh %46 : vector<2x16xf32>
    %48 = math.tanh %47 : vector<2x16xf32>
    %cst_30 = arith.constant dense<0.000000e+00> : vector<2x16xf32>
    %49 = tpu.matmul %39, %19, %cst_30 {dimension_numbers = #tpu.dot_dimension_numbers<[1], [0], [0], [1], [0, 0, 1, 1], [], []>} : vector<2x3xf32>, vector<3x16xf32>, vector<2x16xf32> -> vector<2x16xf32>
    %50 = vector.broadcast %20 : vector<1x16xf32> to vector<2x16xf32>
    %51 = arith.addf %49, %50 : vector<2x16xf32>
    %52 = math.tanh %51 : vector<2x16xf32>
    %cst_31 = arith.constant dense<0.000000e+00> : vector<2x16xf32>
    %53 = tpu.matmul %52, %21, %cst_31 {dimension_numbers = #tpu.dot_dimension_numbers<[1], [0], [0], [1], [0, 0, 1, 1], [], []>} : vector<2x16xf32>, vector<16x16xf32>, vector<2x16xf32> -> vector<2x16xf32>
    %54 = vector.broadcast %22 : vector<1x16xf32> to vector<2x16xf32>
    %55 = arith.addf %53, %54 : vector<2x16xf32>
    %56 = math.tanh %55 : vector<2x16xf32>
    %57 = math.tanh %56 : vector<2x16xf32>
    %c0_32 = arith.constant 0 : index
    %c0_33 = arith.constant 0 : index
    %58 = vector.load %arg0[%c0_32, %c0_33] : memref<192x32xf32, #tpu.memory_space<vmem>>, vector<192x32xf32>
    %cst_34 = arith.constant dense<0.000000e+00> : vector<192x32xf32>
    %59 = tpu.matmul %58, %2, %cst_34 {dimension_numbers = #tpu.dot_dimension_numbers<[1], [0], [0], [1], [0, 0, 1, 1], [], []>} : vector<192x32xf32>, vector<32x32xf32>, vector<192x32xf32> -> vector<192x32xf32>
    %60 = vector.broadcast %3 : vector<1x32xf32> to vector<192x32xf32>
    %61 = arith.addf %59, %60 : vector<192x32xf32>
    %cst_35 = arith.constant dense<0.000000e+00> : vector<12x64xf32>
    %62 = tpu.matmul %26, %5, %cst_35 {dimension_numbers = #tpu.dot_dimension_numbers<[1], [0], [0], [1], [0, 0, 1, 1], [], []>} : vector<12x3xf32>, vector<3x64xf32>, vector<12x64xf32> -> vector<12x64xf32>
    %63 = vector.broadcast %7 : vector<1x64xf32> to vector<12x64xf32>
    %64 = arith.addf %62, %63 : vector<12x64xf32>
    %cst_36 = arith.constant dense<0.000000e+00> : vector<2x32xf32>
    %65 = tpu.matmul %48, %0, %cst_36 {dimension_numbers = #tpu.dot_dimension_numbers<[1], [0], [0], [1], [0, 0, 1, 1], [], []>} : vector<2x16xf32>, vector<16x32xf32>, vector<2x32xf32> -> vector<2x32xf32>
    %66 = vector.broadcast %1 : vector<1x32xf32> to vector<2x32xf32>
    %67 = arith.addf %65, %66 : vector<2x32xf32>
    %cst_37 = arith.constant dense<0.000000e+00> : vector<32x32xf32>
    %68 = tpu.matmul %23, %67, %cst_37 {dimension_numbers = #tpu.dot_dimension_numbers<[1], [0], [0], [1], [0, 0, 1, 1], [], []>} : vector<32x2xf32>, vector<2x32xf32>, vector<32x32xf32> -> vector<32x32xf32>
    %69 = vector.extract_strided_slice %61 {offsets = [0, 0], sizes = [32, 32], strides = [1, 1]} : vector<192x32xf32> to vector<32x32xf32>
    %70 = arith.addf %69, %68 : vector<32x32xf32>
    %71 = math.tanh %70 : vector<32x32xf32>
    %72 = vector.broadcast %4 : vector<1x32xf32> to vector<32x32xf32>
    %73 = arith.mulf %71, %72 : vector<32x32xf32>
    %cst_38 = arith.constant dense<0.000000e+00> : vector<32xf32>
    %74 = vector.multi_reduction <add>, %73, %cst_38 [1] : vector<32x32xf32> to vector<32xf32>
    %75 = vector.shape_cast %74 : vector<32xf32> to vector<32x1xf32>
    %cst_39 = arith.constant dense<0.000000e+00> : vector<32x1xf32>
    %76 = tpu.matmul %24, %75, %cst_39 {dimension_numbers = #tpu.dot_dimension_numbers<[1], [0], [0], [1], [0, 0, 1, 1], [], []>} : vector<32x32xf32>, vector<32x1xf32>, vector<32x1xf32> -> vector<32x1xf32>
    %cst_40 = arith.constant dense<0xFF800000> : vector<1xf32>
    %77 = vector.multi_reduction <maximumf>, %76, %cst_40 [0] : vector<32x1xf32> to vector<1xf32>
    %78 = vector.shape_cast %77 : vector<1xf32> to vector<1x1xf32>
    %79 = vector.broadcast %78 : vector<1x1xf32> to vector<32x1xf32>
    %80 = arith.subf %76, %79 : vector<32x1xf32>
    %81 = math.exp %80 : vector<32x1xf32>
    %cst_41 = arith.constant dense<0.000000e+00> : vector<2x1xf32>
    %82 = tpu.matmul %25, %81, %cst_41 {dimension_numbers = #tpu.dot_dimension_numbers<[1], [0], [0], [1], [0, 0, 1, 1], [], []>} : vector<2x32xf32>, vector<32x1xf32>, vector<2x1xf32> -> vector<2x1xf32>
    %c0_42 = arith.constant 0 : index
    %c0_43 = arith.constant 0 : index
    %83 = vector.load %arg0[%c0_42, %c0_43] : memref<192x32xf32, #tpu.memory_space<vmem>>, vector<32x32xf32>
    %84 = vector.broadcast %81 : vector<32x1xf32> to vector<32x32xf32>
    %85 = arith.mulf %84, %83 : vector<32x32xf32>
    %cst_44 = arith.constant dense<0.000000e+00> : vector<2x32xf32>
    %86 = tpu.matmul %25, %85, %cst_44 {dimension_numbers = #tpu.dot_dimension_numbers<[1], [0], [0], [1], [0, 0, 1, 1], [], []>} : vector<2x32xf32>, vector<32x32xf32>, vector<2x32xf32> -> vector<2x32xf32>
    %87 = tpu.reciprocal %82 {approx = true} : vector<2x1xf32> -> vector<2x1xf32>
    %88 = vector.broadcast %87 : vector<2x1xf32> to vector<2x32xf32>
    %89 = arith.mulf %86, %88 : vector<2x32xf32>
    %c0_45 = arith.constant 0 : index
    %c0_46 = arith.constant 0 : index
    %90 = vector.load %arg4[%c0_45, %c0_46] : memref<12x32xf32, #tpu.memory_space<vmem>>, vector<2x32xf32>
    tpu.vector_store %arg4[%c0_45, %c0_46], %89 {strides = array<i32>} : memref<12x32xf32, #tpu.memory_space<vmem>>, vector<2x32xf32>,
    %91 = vector.extract_strided_slice %64 {offsets = [0, 0], sizes = [2, 64], strides = [1, 1]} : vector<12x64xf32> to vector<2x64xf32>
    %cst_47 = arith.constant dense<0.000000e+00> : vector<2x64xf32>
    %92 = tpu.matmul %48, %6, %cst_47 {dimension_numbers = #tpu.dot_dimension_numbers<[1], [0], [0], [1], [0, 0, 1, 1], [], []>} : vector<2x16xf32>, vector<16x64xf32>, vector<2x64xf32> -> vector<2x64xf32>
    %93 = arith.addf %91, %92 : vector<2x64xf32>
    %94 = vector.extract_strided_slice %93 {offsets = [0, 0], sizes = [2, 16], strides = [1, 1]} : vector<2x64xf32> to vector<2x16xf32>
    %95 = arith.negf %94 : vector<2x16xf32>
    %96 = math.exp %95 : vector<2x16xf32>
    %cst_48 = arith.constant 1.000000e+00 : f32
    %97 = vector.broadcast %cst_48 : f32 to vector<2x16xf32>
    %98 = arith.addf %97, %96 : vector<2x16xf32>
    %99 = arith.divf %97, %98 : vector<2x16xf32>
    %100 = vector.extract_strided_slice %93 {offsets = [0, 16], sizes = [2, 16], strides = [1, 1]} : vector<2x64xf32> to vector<2x16xf32>
    %101 = arith.negf %100 : vector<2x16xf32>
    %102 = math.exp %101 : vector<2x16xf32>
    %cst_49 = arith.constant 1.000000e+00 : f32
    %103 = vector.broadcast %cst_49 : f32 to vector<2x16xf32>
    %104 = arith.addf %103, %102 : vector<2x16xf32>
    %105 = arith.divf %103, %104 : vector<2x16xf32>
    %106 = vector.extract_strided_slice %93 {offsets = [0, 32], sizes = [2, 16], strides = [1, 1]} : vector<2x64xf32> to vector<2x16xf32>
    %107 = math.tanh %106 : vector<2x16xf32>
    %108 = vector.extract_strided_slice %93 {offsets = [0, 48], sizes = [2, 16], strides = [1, 1]} : vector<2x64xf32> to vector<2x16xf32>
    %109 = arith.negf %108 : vector<2x16xf32>
    %110 = math.exp %109 : vector<2x16xf32>
    %cst_50 = arith.constant 1.000000e+00 : f32
    %111 = vector.broadcast %cst_50 : f32 to vector<2x16xf32>
    %112 = arith.addf %111, %110 : vector<2x16xf32>
    %113 = arith.divf %111, %112 : vector<2x16xf32>
    %114 = arith.mulf %105, %57 : vector<2x16xf32>
    %115 = arith.mulf %99, %107 : vector<2x16xf32>
    %116 = arith.addf %114, %115 : vector<2x16xf32>
    %117 = math.tanh %116 : vector<2x16xf32>
    %118 = arith.mulf %113, %117 : vector<2x16xf32>
    %c0_51 = arith.constant 0 : index
    %c0_52 = arith.constant 0 : index
    %119 = vector.load %arg5[%c0_51, %c0_52] : memref<12x16xf32, #tpu.memory_space<vmem>>, vector<2x16xf32>
    tpu.vector_store %arg5[%c0_51, %c0_52], %118 {strides = array<i32>} : memref<12x16xf32, #tpu.memory_space<vmem>>, vector<2x16xf32>,
    %cst_53 = arith.constant dense<0.000000e+00> : vector<2x32xf32>
    %120 = tpu.matmul %118, %0, %cst_53 {dimension_numbers = #tpu.dot_dimension_numbers<[1], [0], [0], [1], [0, 0, 1, 1], [], []>} : vector<2x16xf32>, vector<16x32xf32>, vector<2x32xf32> -> vector<2x32xf32>
    %121 = vector.broadcast %1 : vector<1x32xf32> to vector<2x32xf32>
    %122 = arith.addf %120, %121 : vector<2x32xf32>
    %cst_54 = arith.constant dense<0.000000e+00> : vector<32x32xf32>
    %123 = tpu.matmul %23, %122, %cst_54 {dimension_numbers = #tpu.dot_dimension_numbers<[1], [0], [0], [1], [0, 0, 1, 1], [], []>} : vector<32x2xf32>, vector<2x32xf32>, vector<32x32xf32> -> vector<32x32xf32>
    %124 = vector.extract_strided_slice %61 {offsets = [32, 0], sizes = [32, 32], strides = [1, 1]} : vector<192x32xf32> to vector<32x32xf32>
    %125 = arith.addf %124, %123 : vector<32x32xf32>
    %126 = math.tanh %125 : vector<32x32xf32>
    %127 = vector.broadcast %4 : vector<1x32xf32> to vector<32x32xf32>
    %128 = arith.mulf %126, %127 : vector<32x32xf32>
    %cst_55 = arith.constant dense<0.000000e+00> : vector<32xf32>
    %129 = vector.multi_reduction <add>, %128, %cst_55 [1] : vector<32x32xf32> to vector<32xf32>
    %130 = vector.shape_cast %129 : vector<32xf32> to vector<32x1xf32>
    %cst_56 = arith.constant dense<0.000000e+00> : vector<32x1xf32>
    %131 = tpu.matmul %24, %130, %cst_56 {dimension_numbers = #tpu.dot_dimension_numbers<[1], [0], [0], [1], [0, 0, 1, 1], [], []>} : vector<32x32xf32>, vector<32x1xf32>, vector<32x1xf32> -> vector<32x1xf32>
    %cst_57 = arith.constant dense<0xFF800000> : vector<1xf32>
    %132 = vector.multi_reduction <maximumf>, %131, %cst_57 [0] : vector<32x1xf32> to vector<1xf32>
    %133 = vector.shape_cast %132 : vector<1xf32> to vector<1x1xf32>
    %134 = vector.broadcast %133 : vector<1x1xf32> to vector<32x1xf32>
    %135 = arith.subf %131, %134 : vector<32x1xf32>
    %136 = math.exp %135 : vector<32x1xf32>
    %cst_58 = arith.constant dense<0.000000e+00> : vector<2x1xf32>
    %137 = tpu.matmul %25, %136, %cst_58 {dimension_numbers = #tpu.dot_dimension_numbers<[1], [0], [0], [1], [0, 0, 1, 1], [], []>} : vector<2x32xf32>, vector<32x1xf32>, vector<2x1xf32> -> vector<2x1xf32>
    %c32 = arith.constant 32 : index
    %c0_59 = arith.constant 0 : index
    %138 = vector.load %arg0[%c32, %c0_59] : memref<192x32xf32, #tpu.memory_space<vmem>>, vector<32x32xf32>
    %139 = vector.broadcast %136 : vector<32x1xf32> to vector<32x32xf32>
    %140 = arith.mulf %139, %138 : vector<32x32xf32>
    %cst_60 = arith.constant dense<0.000000e+00> : vector<2x32xf32>
    %141 = tpu.matmul %25, %140, %cst_60 {dimension_numbers = #tpu.dot_dimension_numbers<[1], [0], [0], [1], [0, 0, 1, 1], [], []>} : vector<2x32xf32>, vector<32x32xf32>, vector<2x32xf32> -> vector<2x32xf32>
    %142 = tpu.reciprocal %137 {approx = true} : vector<2x1xf32> -> vector<2x1xf32>
    %143 = vector.broadcast %142 : vector<2x1xf32> to vector<2x32xf32>
    %144 = arith.mulf %141, %143 : vector<2x32xf32>
    %c2 = arith.constant 2 : index
    %c0_61 = arith.constant 0 : index
    %145 = vector.load %arg4[%c2, %c0_61] : memref<12x32xf32, #tpu.memory_space<vmem>>, vector<2x32xf32>
    tpu.vector_store %arg4[%c2, %c0_61], %144 {strides = array<i32>} : memref<12x32xf32, #tpu.memory_space<vmem>>, vector<2x32xf32>,
    %146 = vector.extract_strided_slice %64 {offsets = [0, 0], sizes = [2, 64], strides = [1, 1]} : vector<12x64xf32> to vector<2x64xf32>
    %cst_62 = arith.constant dense<0.000000e+00> : vector<2x64xf32>
    %147 = tpu.matmul %118, %6, %cst_62 {dimension_numbers = #tpu.dot_dimension_numbers<[1], [0], [0], [1], [0, 0, 1, 1], [], []>} : vector<2x16xf32>, vector<16x64xf32>, vector<2x64xf32> -> vector<2x64xf32>
    %148 = arith.addf %146, %147 : vector<2x64xf32>
    %149 = vector.extract_strided_slice %148 {offsets = [0, 0], sizes = [2, 16], strides = [1, 1]} : vector<2x64xf32> to vector<2x16xf32>
    %150 = arith.negf %149 : vector<2x16xf32>
    %151 = math.exp %150 : vector<2x16xf32>
    %cst_63 = arith.constant 1.000000e+00 : f32
    %152 = vector.broadcast %cst_63 : f32 to vector<2x16xf32>
    %153 = arith.addf %152, %151 : vector<2x16xf32>
    %154 = arith.divf %152, %153 : vector<2x16xf32>
    %155 = vector.extract_strided_slice %148 {offsets = [0, 16], sizes = [2, 16], strides = [1, 1]} : vector<2x64xf32> to vector<2x16xf32>
    %156 = arith.negf %155 : vector<2x16xf32>
    %157 = math.exp %156 : vector<2x16xf32>
    %cst_64 = arith.constant 1.000000e+00 : f32
    %158 = vector.broadcast %cst_64 : f32 to vector<2x16xf32>
    %159 = arith.addf %158, %157 : vector<2x16xf32>
    %160 = arith.divf %158, %159 : vector<2x16xf32>
    %161 = vector.extract_strided_slice %148 {offsets = [0, 32], sizes = [2, 16], strides = [1, 1]} : vector<2x64xf32> to vector<2x16xf32>
    %162 = math.tanh %161 : vector<2x16xf32>
    %163 = vector.extract_strided_slice %148 {offsets = [0, 48], sizes = [2, 16], strides = [1, 1]} : vector<2x64xf32> to vector<2x16xf32>
    %164 = arith.negf %163 : vector<2x16xf32>
    %165 = math.exp %164 : vector<2x16xf32>
    %cst_65 = arith.constant 1.000000e+00 : f32
    %166 = vector.broadcast %cst_65 : f32 to vector<2x16xf32>
    %167 = arith.addf %166, %165 : vector<2x16xf32>
    %168 = arith.divf %166, %167 : vector<2x16xf32>
    %169 = arith.mulf %160, %116 : vector<2x16xf32>
    %170 = arith.mulf %154, %162 : vector<2x16xf32>
    %171 = arith.addf %169, %170 : vector<2x16xf32>
    %172 = math.tanh %171 : vector<2x16xf32>
    %173 = arith.mulf %168, %172 : vector<2x16xf32>
    %c2_66 = arith.constant 2 : index
    %c0_67 = arith.constant 0 : index
    %174 = vector.load %arg5[%c2_66, %c0_67] : memref<12x16xf32, #tpu.memory_space<vmem>>, vector<2x16xf32>
    tpu.vector_store %arg5[%c2_66, %c0_67], %173 {strides = array<i32>} : memref<12x16xf32, #tpu.memory_space<vmem>>, vector<2x16xf32>,
    %cst_68 = arith.constant dense<0.000000e+00> : vector<2x32xf32>
    %175 = tpu.matmul %173, %0, %cst_68 {dimension_numbers = #tpu.dot_dimension_numbers<[1], [0], [0], [1], [0, 0, 1, 1], [], []>} : vector<2x16xf32>, vector<16x32xf32>, vector<2x32xf32> -> vector<2x32xf32>
    %176 = vector.broadcast %1 : vector<1x32xf32> to vector<2x32xf32>
    %177 = arith.addf %175, %176 : vector<2x32xf32>
    %cst_69 = arith.constant dense<0.000000e+00> : vector<32x32xf32>
    %178 = tpu.matmul %23, %177, %cst_69 {dimension_numbers = #tpu.dot_dimension_numbers<[1], [0], [0], [1], [0, 0, 1, 1], [], []>} : vector<32x2xf32>, vector<2x32xf32>, vector<32x32xf32> -> vector<32x32xf32>
    %179 = vector.extract_strided_slice %61 {offsets = [64, 0], sizes = [32, 32], strides = [1, 1]} : vector<192x32xf32> to vector<32x32xf32>
    %180 = arith.addf %179, %178 : vector<32x32xf32>
    %181 = math.tanh %180 : vector<32x32xf32>
    %182 = vector.broadcast %4 : vector<1x32xf32> to vector<32x32xf32>
    %183 = arith.mulf %181, %182 : vector<32x32xf32>
    %cst_70 = arith.constant dense<0.000000e+00> : vector<32xf32>
    %184 = vector.multi_reduction <add>, %183, %cst_70 [1] : vector<32x32xf32> to vector<32xf32>
    %185 = vector.shape_cast %184 : vector<32xf32> to vector<32x1xf32>
    %cst_71 = arith.constant dense<0.000000e+00> : vector<32x1xf32>
    %186 = tpu.matmul %24, %185, %cst_71 {dimension_numbers = #tpu.dot_dimension_numbers<[1], [0], [0], [1], [0, 0, 1, 1], [], []>} : vector<32x32xf32>, vector<32x1xf32>, vector<32x1xf32> -> vector<32x1xf32>
    %cst_72 = arith.constant dense<0xFF800000> : vector<1xf32>
    %187 = vector.multi_reduction <maximumf>, %186, %cst_72 [0] : vector<32x1xf32> to vector<1xf32>
    %188 = vector.shape_cast %187 : vector<1xf32> to vector<1x1xf32>
    %189 = vector.broadcast %188 : vector<1x1xf32> to vector<32x1xf32>
    %190 = arith.subf %186, %189 : vector<32x1xf32>
    %191 = math.exp %190 : vector<32x1xf32>
    %cst_73 = arith.constant dense<0.000000e+00> : vector<2x1xf32>
    %192 = tpu.matmul %25, %191, %cst_73 {dimension_numbers = #tpu.dot_dimension_numbers<[1], [0], [0], [1], [0, 0, 1, 1], [], []>} : vector<2x32xf32>, vector<32x1xf32>, vector<2x1xf32> -> vector<2x1xf32>
    %c64_74 = arith.constant 64 : index
    %c0_75 = arith.constant 0 : index
    %193 = vector.load %arg0[%c64_74, %c0_75] : memref<192x32xf32, #tpu.memory_space<vmem>>, vector<32x32xf32>
    %194 = vector.broadcast %191 : vector<32x1xf32> to vector<32x32xf32>
    %195 = arith.mulf %194, %193 : vector<32x32xf32>
    %cst_76 = arith.constant dense<0.000000e+00> : vector<2x32xf32>
    %196 = tpu.matmul %25, %195, %cst_76 {dimension_numbers = #tpu.dot_dimension_numbers<[1], [0], [0], [1], [0, 0, 1, 1], [], []>} : vector<2x32xf32>, vector<32x32xf32>, vector<2x32xf32> -> vector<2x32xf32>
    %197 = tpu.reciprocal %192 {approx = true} : vector<2x1xf32> -> vector<2x1xf32>
    %198 = vector.broadcast %197 : vector<2x1xf32> to vector<2x32xf32>
    %199 = arith.mulf %196, %198 : vector<2x32xf32>
    %c4 = arith.constant 4 : index
    %c0_77 = arith.constant 0 : index
    %200 = vector.load %arg4[%c4, %c0_77] : memref<12x32xf32, #tpu.memory_space<vmem>>, vector<2x32xf32>
    tpu.vector_store %arg4[%c4, %c0_77], %199 {strides = array<i32>} : memref<12x32xf32, #tpu.memory_space<vmem>>, vector<2x32xf32>,
    %201 = vector.extract_strided_slice %64 {offsets = [0, 0], sizes = [2, 64], strides = [1, 1]} : vector<12x64xf32> to vector<2x64xf32>
    %cst_78 = arith.constant dense<0.000000e+00> : vector<2x64xf32>
    %202 = tpu.matmul %173, %6, %cst_78 {dimension_numbers = #tpu.dot_dimension_numbers<[1], [0], [0], [1], [0, 0, 1, 1], [], []>} : vector<2x16xf32>, vector<16x64xf32>, vector<2x64xf32> -> vector<2x64xf32>
    %203 = arith.addf %201, %202 : vector<2x64xf32>
    %204 = vector.extract_strided_slice %203 {offsets = [0, 0], sizes = [2, 16], strides = [1, 1]} : vector<2x64xf32> to vector<2x16xf32>
    %205 = arith.negf %204 : vector<2x16xf32>
    %206 = math.exp %205 : vector<2x16xf32>
    %cst_79 = arith.constant 1.000000e+00 : f32
    %207 = vector.broadcast %cst_79 : f32 to vector<2x16xf32>
    %208 = arith.addf %207, %206 : vector<2x16xf32>
    %209 = arith.divf %207, %208 : vector<2x16xf32>
    %210 = vector.extract_strided_slice %203 {offsets = [0, 16], sizes = [2, 16], strides = [1, 1]} : vector<2x64xf32> to vector<2x16xf32>
    %211 = arith.negf %210 : vector<2x16xf32>
    %212 = math.exp %211 : vector<2x16xf32>
    %cst_80 = arith.constant 1.000000e+00 : f32
    %213 = vector.broadcast %cst_80 : f32 to vector<2x16xf32>
    %214 = arith.addf %213, %212 : vector<2x16xf32>
    %215 = arith.divf %213, %214 : vector<2x16xf32>
    %216 = vector.extract_strided_slice %203 {offsets = [0, 32], sizes = [2, 16], strides = [1, 1]} : vector<2x64xf32> to vector<2x16xf32>
    %217 = math.tanh %216 : vector<2x16xf32>
    %218 = vector.extract_strided_slice %203 {offsets = [0, 48], sizes = [2, 16], strides = [1, 1]} : vector<2x64xf32> to vector<2x16xf32>
    %219 = arith.negf %218 : vector<2x16xf32>
    %220 = math.exp %219 : vector<2x16xf32>
    %cst_81 = arith.constant 1.000000e+00 : f32
    %221 = vector.broadcast %cst_81 : f32 to vector<2x16xf32>
    %222 = arith.addf %221, %220 : vector<2x16xf32>
    %223 = arith.divf %221, %222 : vector<2x16xf32>
    %224 = arith.mulf %215, %171 : vector<2x16xf32>
    %225 = arith.mulf %209, %217 : vector<2x16xf32>
    %226 = arith.addf %224, %225 : vector<2x16xf32>
    %227 = math.tanh %226 : vector<2x16xf32>
    %228 = arith.mulf %223, %227 : vector<2x16xf32>
    %229 = vector.extract_strided_slice %64 {offsets = [2, 0], sizes = [2, 64], strides = [1, 1]} : vector<12x64xf32> to vector<2x64xf32>
    %cst_82 = arith.constant dense<0.000000e+00> : vector<2x64xf32>
    %230 = tpu.matmul %228, %6, %cst_82 {dimension_numbers = #tpu.dot_dimension_numbers<[1], [0], [0], [1], [0, 0, 1, 1], [], []>} : vector<2x16xf32>, vector<16x64xf32>, vector<2x64xf32> -> vector<2x64xf32>
    %231 = arith.addf %229, %230 : vector<2x64xf32>
    %232 = vector.extract_strided_slice %231 {offsets = [0, 0], sizes = [2, 16], strides = [1, 1]} : vector<2x64xf32> to vector<2x16xf32>
    %233 = arith.negf %232 : vector<2x16xf32>
    %234 = math.exp %233 : vector<2x16xf32>
    %cst_83 = arith.constant 1.000000e+00 : f32
    %235 = vector.broadcast %cst_83 : f32 to vector<2x16xf32>
    %236 = arith.addf %235, %234 : vector<2x16xf32>
    %237 = arith.divf %235, %236 : vector<2x16xf32>
    %238 = vector.extract_strided_slice %231 {offsets = [0, 16], sizes = [2, 16], strides = [1, 1]} : vector<2x64xf32> to vector<2x16xf32>
    %239 = arith.negf %238 : vector<2x16xf32>
    %240 = math.exp %239 : vector<2x16xf32>
    %cst_84 = arith.constant 1.000000e+00 : f32
    %241 = vector.broadcast %cst_84 : f32 to vector<2x16xf32>
    %242 = arith.addf %241, %240 : vector<2x16xf32>
    %243 = arith.divf %241, %242 : vector<2x16xf32>
    %244 = vector.extract_strided_slice %231 {offsets = [0, 32], sizes = [2, 16], strides = [1, 1]} : vector<2x64xf32> to vector<2x16xf32>
    %245 = math.tanh %244 : vector<2x16xf32>
    %246 = vector.extract_strided_slice %231 {offsets = [0, 48], sizes = [2, 16], strides = [1, 1]} : vector<2x64xf32> to vector<2x16xf32>
    %247 = arith.negf %246 : vector<2x16xf32>
    %248 = math.exp %247 : vector<2x16xf32>
    %cst_85 = arith.constant 1.000000e+00 : f32
    %249 = vector.broadcast %cst_85 : f32 to vector<2x16xf32>
    %250 = arith.addf %249, %248 : vector<2x16xf32>
    %251 = arith.divf %249, %250 : vector<2x16xf32>
    %252 = arith.mulf %243, %226 : vector<2x16xf32>
    %253 = arith.mulf %237, %245 : vector<2x16xf32>
    %254 = arith.addf %252, %253 : vector<2x16xf32>
    %255 = math.tanh %254 : vector<2x16xf32>
    %256 = arith.mulf %251, %255 : vector<2x16xf32>
    %c4_86 = arith.constant 4 : index
    %c0_87 = arith.constant 0 : index
    %257 = vector.load %arg5[%c4_86, %c0_87] : memref<12x16xf32, #tpu.memory_space<vmem>>, vector<2x16xf32>
    tpu.vector_store %arg5[%c4_86, %c0_87], %256 {strides = array<i32>} : memref<12x16xf32, #tpu.memory_space<vmem>>, vector<2x16xf32>,
    %cst_88 = arith.constant dense<0.000000e+00> : vector<2x32xf32>
    %258 = tpu.matmul %256, %0, %cst_88 {dimension_numbers = #tpu.dot_dimension_numbers<[1], [0], [0], [1], [0, 0, 1, 1], [], []>} : vector<2x16xf32>, vector<16x32xf32>, vector<2x32xf32> -> vector<2x32xf32>
    %259 = vector.broadcast %1 : vector<1x32xf32> to vector<2x32xf32>
    %260 = arith.addf %258, %259 : vector<2x32xf32>
    %cst_89 = arith.constant dense<0.000000e+00> : vector<32x32xf32>
    %261 = tpu.matmul %23, %260, %cst_89 {dimension_numbers = #tpu.dot_dimension_numbers<[1], [0], [0], [1], [0, 0, 1, 1], [], []>} : vector<32x2xf32>, vector<2x32xf32>, vector<32x32xf32> -> vector<32x32xf32>
    %262 = vector.extract_strided_slice %61 {offsets = [96, 0], sizes = [32, 32], strides = [1, 1]} : vector<192x32xf32> to vector<32x32xf32>
    %263 = arith.addf %262, %261 : vector<32x32xf32>
    %264 = math.tanh %263 : vector<32x32xf32>
    %265 = vector.broadcast %4 : vector<1x32xf32> to vector<32x32xf32>
    %266 = arith.mulf %264, %265 : vector<32x32xf32>
    %cst_90 = arith.constant dense<0.000000e+00> : vector<32xf32>
    %267 = vector.multi_reduction <add>, %266, %cst_90 [1] : vector<32x32xf32> to vector<32xf32>
    %268 = vector.shape_cast %267 : vector<32xf32> to vector<32x1xf32>
    %cst_91 = arith.constant dense<0.000000e+00> : vector<32x1xf32>
    %269 = tpu.matmul %24, %268, %cst_91 {dimension_numbers = #tpu.dot_dimension_numbers<[1], [0], [0], [1], [0, 0, 1, 1], [], []>} : vector<32x32xf32>, vector<32x1xf32>, vector<32x1xf32> -> vector<32x1xf32>
    %cst_92 = arith.constant dense<0xFF800000> : vector<1xf32>
    %270 = vector.multi_reduction <maximumf>, %269, %cst_92 [0] : vector<32x1xf32> to vector<1xf32>
    %271 = vector.shape_cast %270 : vector<1xf32> to vector<1x1xf32>
    %272 = vector.broadcast %271 : vector<1x1xf32> to vector<32x1xf32>
    %273 = arith.subf %269, %272 : vector<32x1xf32>
    %274 = math.exp %273 : vector<32x1xf32>
    %cst_93 = arith.constant dense<0.000000e+00> : vector<2x1xf32>
    %275 = tpu.matmul %25, %274, %cst_93 {dimension_numbers = #tpu.dot_dimension_numbers<[1], [0], [0], [1], [0, 0, 1, 1], [], []>} : vector<2x32xf32>, vector<32x1xf32>, vector<2x1xf32> -> vector<2x1xf32>
    %c96_94 = arith.constant 96 : index
    %c0_95 = arith.constant 0 : index
    %276 = vector.load %arg0[%c96_94, %c0_95] : memref<192x32xf32, #tpu.memory_space<vmem>>, vector<32x32xf32>
    %277 = vector.broadcast %274 : vector<32x1xf32> to vector<32x32xf32>
    %278 = arith.mulf %277, %276 : vector<32x32xf32>
    %cst_96 = arith.constant dense<0.000000e+00> : vector<2x32xf32>
    %279 = tpu.matmul %25, %278, %cst_96 {dimension_numbers = #tpu.dot_dimension_numbers<[1], [0], [0], [1], [0, 0, 1, 1], [], []>} : vector<2x32xf32>, vector<32x32xf32>, vector<2x32xf32> -> vector<2x32xf32>
    %280 = tpu.reciprocal %275 {approx = true} : vector<2x1xf32> -> vector<2x1xf32>
    %281 = vector.broadcast %280 : vector<2x1xf32> to vector<2x32xf32>
    %282 = arith.mulf %279, %281 : vector<2x32xf32>
    %c6 = arith.constant 6 : index
    %c0_97 = arith.constant 0 : index
    %283 = vector.load %arg4[%c6, %c0_97] : memref<12x32xf32, #tpu.memory_space<vmem>>, vector<2x32xf32>
    tpu.vector_store %arg4[%c6, %c0_97], %282 {strides = array<i32>} : memref<12x32xf32, #tpu.memory_space<vmem>>, vector<2x32xf32>,
    %284 = vector.extract_strided_slice %64 {offsets = [0, 0], sizes = [2, 64], strides = [1, 1]} : vector<12x64xf32> to vector<2x64xf32>
    %cst_98 = arith.constant dense<0.000000e+00> : vector<2x64xf32>
    %285 = tpu.matmul %256, %6, %cst_98 {dimension_numbers = #tpu.dot_dimension_numbers<[1], [0], [0], [1], [0, 0, 1, 1], [], []>} : vector<2x16xf32>, vector<16x64xf32>, vector<2x64xf32> -> vector<2x64xf32>
    %286 = arith.addf %284, %285 : vector<2x64xf32>
    %287 = vector.extract_strided_slice %286 {offsets = [0, 0], sizes = [2, 16], strides = [1, 1]} : vector<2x64xf32> to vector<2x16xf32>
    %288 = arith.negf %287 : vector<2x16xf32>
    %289 = math.exp %288 : vector<2x16xf32>
    %cst_99 = arith.constant 1.000000e+00 : f32
    %290 = vector.broadcast %cst_99 : f32 to vector<2x16xf32>
    %291 = arith.addf %290, %289 : vector<2x16xf32>
    %292 = arith.divf %290, %291 : vector<2x16xf32>
    %293 = vector.extract_strided_slice %286 {offsets = [0, 16], sizes = [2, 16], strides = [1, 1]} : vector<2x64xf32> to vector<2x16xf32>
    %294 = arith.negf %293 : vector<2x16xf32>
    %295 = math.exp %294 : vector<2x16xf32>
    %cst_100 = arith.constant 1.000000e+00 : f32
    %296 = vector.broadcast %cst_100 : f32 to vector<2x16xf32>
    %297 = arith.addf %296, %295 : vector<2x16xf32>
    %298 = arith.divf %296, %297 : vector<2x16xf32>
    %299 = vector.extract_strided_slice %286 {offsets = [0, 32], sizes = [2, 16], strides = [1, 1]} : vector<2x64xf32> to vector<2x16xf32>
    %300 = math.tanh %299 : vector<2x16xf32>
    %301 = vector.extract_strided_slice %286 {offsets = [0, 48], sizes = [2, 16], strides = [1, 1]} : vector<2x64xf32> to vector<2x16xf32>
    %302 = arith.negf %301 : vector<2x16xf32>
    %303 = math.exp %302 : vector<2x16xf32>
    %cst_101 = arith.constant 1.000000e+00 : f32
    %304 = vector.broadcast %cst_101 : f32 to vector<2x16xf32>
    %305 = arith.addf %304, %303 : vector<2x16xf32>
    %306 = arith.divf %304, %305 : vector<2x16xf32>
    %307 = arith.mulf %298, %254 : vector<2x16xf32>
    %308 = arith.mulf %292, %300 : vector<2x16xf32>
    %309 = arith.addf %307, %308 : vector<2x16xf32>
    %310 = math.tanh %309 : vector<2x16xf32>
    %311 = arith.mulf %306, %310 : vector<2x16xf32>
    %312 = vector.extract_strided_slice %64 {offsets = [2, 0], sizes = [2, 64], strides = [1, 1]} : vector<12x64xf32> to vector<2x64xf32>
    %cst_102 = arith.constant dense<0.000000e+00> : vector<2x64xf32>
    %313 = tpu.matmul %311, %6, %cst_102 {dimension_numbers = #tpu.dot_dimension_numbers<[1], [0], [0], [1], [0, 0, 1, 1], [], []>} : vector<2x16xf32>, vector<16x64xf32>, vector<2x64xf32> -> vector<2x64xf32>
    %314 = arith.addf %312, %313 : vector<2x64xf32>
    %315 = vector.extract_strided_slice %314 {offsets = [0, 0], sizes = [2, 16], strides = [1, 1]} : vector<2x64xf32> to vector<2x16xf32>
    %316 = arith.negf %315 : vector<2x16xf32>
    %317 = math.exp %316 : vector<2x16xf32>
    %cst_103 = arith.constant 1.000000e+00 : f32
    %318 = vector.broadcast %cst_103 : f32 to vector<2x16xf32>
    %319 = arith.addf %318, %317 : vector<2x16xf32>
    %320 = arith.divf %318, %319 : vector<2x16xf32>
    %321 = vector.extract_strided_slice %314 {offsets = [0, 16], sizes = [2, 16], strides = [1, 1]} : vector<2x64xf32> to vector<2x16xf32>
    %322 = arith.negf %321 : vector<2x16xf32>
    %323 = math.exp %322 : vector<2x16xf32>
    %cst_104 = arith.constant 1.000000e+00 : f32
    %324 = vector.broadcast %cst_104 : f32 to vector<2x16xf32>
    %325 = arith.addf %324, %323 : vector<2x16xf32>
    %326 = arith.divf %324, %325 : vector<2x16xf32>
    %327 = vector.extract_strided_slice %314 {offsets = [0, 32], sizes = [2, 16], strides = [1, 1]} : vector<2x64xf32> to vector<2x16xf32>
    %328 = math.tanh %327 : vector<2x16xf32>
    %329 = vector.extract_strided_slice %314 {offsets = [0, 48], sizes = [2, 16], strides = [1, 1]} : vector<2x64xf32> to vector<2x16xf32>
    %330 = arith.negf %329 : vector<2x16xf32>
    %331 = math.exp %330 : vector<2x16xf32>
    %cst_105 = arith.constant 1.000000e+00 : f32
    %332 = vector.broadcast %cst_105 : f32 to vector<2x16xf32>
    %333 = arith.addf %332, %331 : vector<2x16xf32>
    %334 = arith.divf %332, %333 : vector<2x16xf32>
    %335 = arith.mulf %326, %309 : vector<2x16xf32>
    %336 = arith.mulf %320, %328 : vector<2x16xf32>
    %337 = arith.addf %335, %336 : vector<2x16xf32>
    %338 = math.tanh %337 : vector<2x16xf32>
    %339 = arith.mulf %334, %338 : vector<2x16xf32>
    %340 = vector.extract_strided_slice %64 {offsets = [4, 0], sizes = [2, 64], strides = [1, 1]} : vector<12x64xf32> to vector<2x64xf32>
    %cst_106 = arith.constant dense<0.000000e+00> : vector<2x64xf32>
    %341 = tpu.matmul %339, %6, %cst_106 {dimension_numbers = #tpu.dot_dimension_numbers<[1], [0], [0], [1], [0, 0, 1, 1], [], []>} : vector<2x16xf32>, vector<16x64xf32>, vector<2x64xf32> -> vector<2x64xf32>
    %342 = arith.addf %340, %341 : vector<2x64xf32>
    %343 = vector.extract_strided_slice %342 {offsets = [0, 0], sizes = [2, 16], strides = [1, 1]} : vector<2x64xf32> to vector<2x16xf32>
    %344 = arith.negf %343 : vector<2x16xf32>
    %345 = math.exp %344 : vector<2x16xf32>
    %cst_107 = arith.constant 1.000000e+00 : f32
    %346 = vector.broadcast %cst_107 : f32 to vector<2x16xf32>
    %347 = arith.addf %346, %345 : vector<2x16xf32>
    %348 = arith.divf %346, %347 : vector<2x16xf32>
    %349 = vector.extract_strided_slice %342 {offsets = [0, 16], sizes = [2, 16], strides = [1, 1]} : vector<2x64xf32> to vector<2x16xf32>
    %350 = arith.negf %349 : vector<2x16xf32>
    %351 = math.exp %350 : vector<2x16xf32>
    %cst_108 = arith.constant 1.000000e+00 : f32
    %352 = vector.broadcast %cst_108 : f32 to vector<2x16xf32>
    %353 = arith.addf %352, %351 : vector<2x16xf32>
    %354 = arith.divf %352, %353 : vector<2x16xf32>
    %355 = vector.extract_strided_slice %342 {offsets = [0, 32], sizes = [2, 16], strides = [1, 1]} : vector<2x64xf32> to vector<2x16xf32>
    %356 = math.tanh %355 : vector<2x16xf32>
    %357 = vector.extract_strided_slice %342 {offsets = [0, 48], sizes = [2, 16], strides = [1, 1]} : vector<2x64xf32> to vector<2x16xf32>
    %358 = arith.negf %357 : vector<2x16xf32>
    %359 = math.exp %358 : vector<2x16xf32>
    %cst_109 = arith.constant 1.000000e+00 : f32
    %360 = vector.broadcast %cst_109 : f32 to vector<2x16xf32>
    %361 = arith.addf %360, %359 : vector<2x16xf32>
    %362 = arith.divf %360, %361 : vector<2x16xf32>
    %363 = arith.mulf %354, %337 : vector<2x16xf32>
    %364 = arith.mulf %348, %356 : vector<2x16xf32>
    %365 = arith.addf %363, %364 : vector<2x16xf32>
    %366 = math.tanh %365 : vector<2x16xf32>
    %367 = arith.mulf %362, %366 : vector<2x16xf32>
    %c6_110 = arith.constant 6 : index
    %c0_111 = arith.constant 0 : index
    %368 = vector.load %arg5[%c6_110, %c0_111] : memref<12x16xf32, #tpu.memory_space<vmem>>, vector<2x16xf32>
    tpu.vector_store %arg5[%c6_110, %c0_111], %367 {strides = array<i32>} : memref<12x16xf32, #tpu.memory_space<vmem>>, vector<2x16xf32>,
    %cst_112 = arith.constant dense<0.000000e+00> : vector<2x32xf32>
    %369 = tpu.matmul %367, %0, %cst_112 {dimension_numbers = #tpu.dot_dimension_numbers<[1], [0], [0], [1], [0, 0, 1, 1], [], []>} : vector<2x16xf32>, vector<16x32xf32>, vector<2x32xf32> -> vector<2x32xf32>
    %370 = vector.broadcast %1 : vector<1x32xf32> to vector<2x32xf32>
    %371 = arith.addf %369, %370 : vector<2x32xf32>
    %cst_113 = arith.constant dense<0.000000e+00> : vector<32x32xf32>
    %372 = tpu.matmul %23, %371, %cst_113 {dimension_numbers = #tpu.dot_dimension_numbers<[1], [0], [0], [1], [0, 0, 1, 1], [], []>} : vector<32x2xf32>, vector<2x32xf32>, vector<32x32xf32> -> vector<32x32xf32>
    %373 = vector.extract_strided_slice %61 {offsets = [128, 0], sizes = [32, 32], strides = [1, 1]} : vector<192x32xf32> to vector<32x32xf32>
    %374 = arith.addf %373, %372 : vector<32x32xf32>
    %375 = math.tanh %374 : vector<32x32xf32>
    %376 = vector.broadcast %4 : vector<1x32xf32> to vector<32x32xf32>
    %377 = arith.mulf %375, %376 : vector<32x32xf32>
    %cst_114 = arith.constant dense<0.000000e+00> : vector<32xf32>
    %378 = vector.multi_reduction <add>, %377, %cst_114 [1] : vector<32x32xf32> to vector<32xf32>
    %379 = vector.shape_cast %378 : vector<32xf32> to vector<32x1xf32>
    %cst_115 = arith.constant dense<0.000000e+00> : vector<32x1xf32>
    %380 = tpu.matmul %24, %379, %cst_115 {dimension_numbers = #tpu.dot_dimension_numbers<[1], [0], [0], [1], [0, 0, 1, 1], [], []>} : vector<32x32xf32>, vector<32x1xf32>, vector<32x1xf32> -> vector<32x1xf32>
    %cst_116 = arith.constant dense<0xFF800000> : vector<1xf32>
    %381 = vector.multi_reduction <maximumf>, %380, %cst_116 [0] : vector<32x1xf32> to vector<1xf32>
    %382 = vector.shape_cast %381 : vector<1xf32> to vector<1x1xf32>
    %383 = vector.broadcast %382 : vector<1x1xf32> to vector<32x1xf32>
    %384 = arith.subf %380, %383 : vector<32x1xf32>
    %385 = math.exp %384 : vector<32x1xf32>
    %cst_117 = arith.constant dense<0.000000e+00> : vector<2x1xf32>
    %386 = tpu.matmul %25, %385, %cst_117 {dimension_numbers = #tpu.dot_dimension_numbers<[1], [0], [0], [1], [0, 0, 1, 1], [], []>} : vector<2x32xf32>, vector<32x1xf32>, vector<2x1xf32> -> vector<2x1xf32>
    %c128 = arith.constant 128 : index
    %c0_118 = arith.constant 0 : index
    %387 = vector.load %arg0[%c128, %c0_118] : memref<192x32xf32, #tpu.memory_space<vmem>>, vector<32x32xf32>
    %388 = vector.broadcast %385 : vector<32x1xf32> to vector<32x32xf32>
    %389 = arith.mulf %388, %387 : vector<32x32xf32>
    %cst_119 = arith.constant dense<0.000000e+00> : vector<2x32xf32>
    %390 = tpu.matmul %25, %389, %cst_119 {dimension_numbers = #tpu.dot_dimension_numbers<[1], [0], [0], [1], [0, 0, 1, 1], [], []>} : vector<2x32xf32>, vector<32x32xf32>, vector<2x32xf32> -> vector<2x32xf32>
    %391 = tpu.reciprocal %386 {approx = true} : vector<2x1xf32> -> vector<2x1xf32>
    %392 = vector.broadcast %391 : vector<2x1xf32> to vector<2x32xf32>
    %393 = arith.mulf %390, %392 : vector<2x32xf32>
    %c8 = arith.constant 8 : index
    %c0_120 = arith.constant 0 : index
    %394 = vector.load %arg4[%c8, %c0_120] : memref<12x32xf32, #tpu.memory_space<vmem>>, vector<2x32xf32>
    tpu.vector_store %arg4[%c8, %c0_120], %393 {strides = array<i32>} : memref<12x32xf32, #tpu.memory_space<vmem>>, vector<2x32xf32>,
    %395 = vector.extract_strided_slice %64 {offsets = [0, 0], sizes = [2, 64], strides = [1, 1]} : vector<12x64xf32> to vector<2x64xf32>
    %cst_121 = arith.constant dense<0.000000e+00> : vector<2x64xf32>
    %396 = tpu.matmul %367, %6, %cst_121 {dimension_numbers = #tpu.dot_dimension_numbers<[1], [0], [0], [1], [0, 0, 1, 1], [], []>} : vector<2x16xf32>, vector<16x64xf32>, vector<2x64xf32> -> vector<2x64xf32>
    %397 = arith.addf %395, %396 : vector<2x64xf32>
    %398 = vector.extract_strided_slice %397 {offsets = [0, 0], sizes = [2, 16], strides = [1, 1]} : vector<2x64xf32> to vector<2x16xf32>
    %399 = arith.negf %398 : vector<2x16xf32>
    %400 = math.exp %399 : vector<2x16xf32>
    %cst_122 = arith.constant 1.000000e+00 : f32
    %401 = vector.broadcast %cst_122 : f32 to vector<2x16xf32>
    %402 = arith.addf %401, %400 : vector<2x16xf32>
    %403 = arith.divf %401, %402 : vector<2x16xf32>
    %404 = vector.extract_strided_slice %397 {offsets = [0, 16], sizes = [2, 16], strides = [1, 1]} : vector<2x64xf32> to vector<2x16xf32>
    %405 = arith.negf %404 : vector<2x16xf32>
    %406 = math.exp %405 : vector<2x16xf32>
    %cst_123 = arith.constant 1.000000e+00 : f32
    %407 = vector.broadcast %cst_123 : f32 to vector<2x16xf32>
    %408 = arith.addf %407, %406 : vector<2x16xf32>
    %409 = arith.divf %407, %408 : vector<2x16xf32>
    %410 = vector.extract_strided_slice %397 {offsets = [0, 32], sizes = [2, 16], strides = [1, 1]} : vector<2x64xf32> to vector<2x16xf32>
    %411 = math.tanh %410 : vector<2x16xf32>
    %412 = vector.extract_strided_slice %397 {offsets = [0, 48], sizes = [2, 16], strides = [1, 1]} : vector<2x64xf32> to vector<2x16xf32>
    %413 = arith.negf %412 : vector<2x16xf32>
    %414 = math.exp %413 : vector<2x16xf32>
    %cst_124 = arith.constant 1.000000e+00 : f32
    %415 = vector.broadcast %cst_124 : f32 to vector<2x16xf32>
    %416 = arith.addf %415, %414 : vector<2x16xf32>
    %417 = arith.divf %415, %416 : vector<2x16xf32>
    %418 = arith.mulf %409, %365 : vector<2x16xf32>
    %419 = arith.mulf %403, %411 : vector<2x16xf32>
    %420 = arith.addf %418, %419 : vector<2x16xf32>
    %421 = math.tanh %420 : vector<2x16xf32>
    %422 = arith.mulf %417, %421 : vector<2x16xf32>
    %423 = vector.extract_strided_slice %64 {offsets = [2, 0], sizes = [2, 64], strides = [1, 1]} : vector<12x64xf32> to vector<2x64xf32>
    %cst_125 = arith.constant dense<0.000000e+00> : vector<2x64xf32>
    %424 = tpu.matmul %422, %6, %cst_125 {dimension_numbers = #tpu.dot_dimension_numbers<[1], [0], [0], [1], [0, 0, 1, 1], [], []>} : vector<2x16xf32>, vector<16x64xf32>, vector<2x64xf32> -> vector<2x64xf32>
    %425 = arith.addf %423, %424 : vector<2x64xf32>
    %426 = vector.extract_strided_slice %425 {offsets = [0, 0], sizes = [2, 16], strides = [1, 1]} : vector<2x64xf32> to vector<2x16xf32>
    %427 = arith.negf %426 : vector<2x16xf32>
    %428 = math.exp %427 : vector<2x16xf32>
    %cst_126 = arith.constant 1.000000e+00 : f32
    %429 = vector.broadcast %cst_126 : f32 to vector<2x16xf32>
    %430 = arith.addf %429, %428 : vector<2x16xf32>
    %431 = arith.divf %429, %430 : vector<2x16xf32>
    %432 = vector.extract_strided_slice %425 {offsets = [0, 16], sizes = [2, 16], strides = [1, 1]} : vector<2x64xf32> to vector<2x16xf32>
    %433 = arith.negf %432 : vector<2x16xf32>
    %434 = math.exp %433 : vector<2x16xf32>
    %cst_127 = arith.constant 1.000000e+00 : f32
    %435 = vector.broadcast %cst_127 : f32 to vector<2x16xf32>
    %436 = arith.addf %435, %434 : vector<2x16xf32>
    %437 = arith.divf %435, %436 : vector<2x16xf32>
    %438 = vector.extract_strided_slice %425 {offsets = [0, 32], sizes = [2, 16], strides = [1, 1]} : vector<2x64xf32> to vector<2x16xf32>
    %439 = math.tanh %438 : vector<2x16xf32>
    %440 = vector.extract_strided_slice %425 {offsets = [0, 48], sizes = [2, 16], strides = [1, 1]} : vector<2x64xf32> to vector<2x16xf32>
    %441 = arith.negf %440 : vector<2x16xf32>
    %442 = math.exp %441 : vector<2x16xf32>
    %cst_128 = arith.constant 1.000000e+00 : f32
    %443 = vector.broadcast %cst_128 : f32 to vector<2x16xf32>
    %444 = arith.addf %443, %442 : vector<2x16xf32>
    %445 = arith.divf %443, %444 : vector<2x16xf32>
    %446 = arith.mulf %437, %420 : vector<2x16xf32>
    %447 = arith.mulf %431, %439 : vector<2x16xf32>
    %448 = arith.addf %446, %447 : vector<2x16xf32>
    %449 = math.tanh %448 : vector<2x16xf32>
    %450 = arith.mulf %445, %449 : vector<2x16xf32>
    %451 = vector.extract_strided_slice %64 {offsets = [4, 0], sizes = [2, 64], strides = [1, 1]} : vector<12x64xf32> to vector<2x64xf32>
    %cst_129 = arith.constant dense<0.000000e+00> : vector<2x64xf32>
    %452 = tpu.matmul %450, %6, %cst_129 {dimension_numbers = #tpu.dot_dimension_numbers<[1], [0], [0], [1], [0, 0, 1, 1], [], []>} : vector<2x16xf32>, vector<16x64xf32>, vector<2x64xf32> -> vector<2x64xf32>
    %453 = arith.addf %451, %452 : vector<2x64xf32>
    %454 = vector.extract_strided_slice %453 {offsets = [0, 0], sizes = [2, 16], strides = [1, 1]} : vector<2x64xf32> to vector<2x16xf32>
    %455 = arith.negf %454 : vector<2x16xf32>
    %456 = math.exp %455 : vector<2x16xf32>
    %cst_130 = arith.constant 1.000000e+00 : f32
    %457 = vector.broadcast %cst_130 : f32 to vector<2x16xf32>
    %458 = arith.addf %457, %456 : vector<2x16xf32>
    %459 = arith.divf %457, %458 : vector<2x16xf32>
    %460 = vector.extract_strided_slice %453 {offsets = [0, 16], sizes = [2, 16], strides = [1, 1]} : vector<2x64xf32> to vector<2x16xf32>
    %461 = arith.negf %460 : vector<2x16xf32>
    %462 = math.exp %461 : vector<2x16xf32>
    %cst_131 = arith.constant 1.000000e+00 : f32
    %463 = vector.broadcast %cst_131 : f32 to vector<2x16xf32>
    %464 = arith.addf %463, %462 : vector<2x16xf32>
    %465 = arith.divf %463, %464 : vector<2x16xf32>
    %466 = vector.extract_strided_slice %453 {offsets = [0, 32], sizes = [2, 16], strides = [1, 1]} : vector<2x64xf32> to vector<2x16xf32>
    %467 = math.tanh %466 : vector<2x16xf32>
    %468 = vector.extract_strided_slice %453 {offsets = [0, 48], sizes = [2, 16], strides = [1, 1]} : vector<2x64xf32> to vector<2x16xf32>
    %469 = arith.negf %468 : vector<2x16xf32>
    %470 = math.exp %469 : vector<2x16xf32>
    %cst_132 = arith.constant 1.000000e+00 : f32
    %471 = vector.broadcast %cst_132 : f32 to vector<2x16xf32>
    %472 = arith.addf %471, %470 : vector<2x16xf32>
    %473 = arith.divf %471, %472 : vector<2x16xf32>
    %474 = arith.mulf %465, %448 : vector<2x16xf32>
    %475 = arith.mulf %459, %467 : vector<2x16xf32>
    %476 = arith.addf %474, %475 : vector<2x16xf32>
    %477 = math.tanh %476 : vector<2x16xf32>
    %478 = arith.mulf %473, %477 : vector<2x16xf32>
    %479 = vector.extract_strided_slice %64 {offsets = [6, 0], sizes = [2, 64], strides = [1, 1]} : vector<12x64xf32> to vector<2x64xf32>
    %cst_133 = arith.constant dense<0.000000e+00> : vector<2x64xf32>
    %480 = tpu.matmul %478, %6, %cst_133 {dimension_numbers = #tpu.dot_dimension_numbers<[1], [0], [0], [1], [0, 0, 1, 1], [], []>} : vector<2x16xf32>, vector<16x64xf32>, vector<2x64xf32> -> vector<2x64xf32>
    %481 = arith.addf %479, %480 : vector<2x64xf32>
    %482 = vector.extract_strided_slice %481 {offsets = [0, 0], sizes = [2, 16], strides = [1, 1]} : vector<2x64xf32> to vector<2x16xf32>
    %483 = arith.negf %482 : vector<2x16xf32>
    %484 = math.exp %483 : vector<2x16xf32>
    %cst_134 = arith.constant 1.000000e+00 : f32
    %485 = vector.broadcast %cst_134 : f32 to vector<2x16xf32>
    %486 = arith.addf %485, %484 : vector<2x16xf32>
    %487 = arith.divf %485, %486 : vector<2x16xf32>
    %488 = vector.extract_strided_slice %481 {offsets = [0, 16], sizes = [2, 16], strides = [1, 1]} : vector<2x64xf32> to vector<2x16xf32>
    %489 = arith.negf %488 : vector<2x16xf32>
    %490 = math.exp %489 : vector<2x16xf32>
    %cst_135 = arith.constant 1.000000e+00 : f32
    %491 = vector.broadcast %cst_135 : f32 to vector<2x16xf32>
    %492 = arith.addf %491, %490 : vector<2x16xf32>
    %493 = arith.divf %491, %492 : vector<2x16xf32>
    %494 = vector.extract_strided_slice %481 {offsets = [0, 32], sizes = [2, 16], strides = [1, 1]} : vector<2x64xf32> to vector<2x16xf32>
    %495 = math.tanh %494 : vector<2x16xf32>
    %496 = vector.extract_strided_slice %481 {offsets = [0, 48], sizes = [2, 16], strides = [1, 1]} : vector<2x64xf32> to vector<2x16xf32>
    %497 = arith.negf %496 : vector<2x16xf32>
    %498 = math.exp %497 : vector<2x16xf32>
    %cst_136 = arith.constant 1.000000e+00 : f32
    %499 = vector.broadcast %cst_136 : f32 to vector<2x16xf32>
    %500 = arith.addf %499, %498 : vector<2x16xf32>
    %501 = arith.divf %499, %500 : vector<2x16xf32>
    %502 = arith.mulf %493, %476 : vector<2x16xf32>
    %503 = arith.mulf %487, %495 : vector<2x16xf32>
    %504 = arith.addf %502, %503 : vector<2x16xf32>
    %505 = math.tanh %504 : vector<2x16xf32>
    %506 = arith.mulf %501, %505 : vector<2x16xf32>
    %c8_137 = arith.constant 8 : index
    %c0_138 = arith.constant 0 : index
    %507 = vector.load %arg5[%c8_137, %c0_138] : memref<12x16xf32, #tpu.memory_space<vmem>>, vector<2x16xf32>
    tpu.vector_store %arg5[%c8_137, %c0_138], %506 {strides = array<i32>} : memref<12x16xf32, #tpu.memory_space<vmem>>, vector<2x16xf32>,
    %cst_139 = arith.constant dense<0.000000e+00> : vector<2x32xf32>
    %508 = tpu.matmul %506, %0, %cst_139 {dimension_numbers = #tpu.dot_dimension_numbers<[1], [0], [0], [1], [0, 0, 1, 1], [], []>} : vector<2x16xf32>, vector<16x32xf32>, vector<2x32xf32> -> vector<2x32xf32>
    %509 = vector.broadcast %1 : vector<1x32xf32> to vector<2x32xf32>
    %510 = arith.addf %508, %509 : vector<2x32xf32>
    %cst_140 = arith.constant dense<0.000000e+00> : vector<32x32xf32>
    %511 = tpu.matmul %23, %510, %cst_140 {dimension_numbers = #tpu.dot_dimension_numbers<[1], [0], [0], [1], [0, 0, 1, 1], [], []>} : vector<32x2xf32>, vector<2x32xf32>, vector<32x32xf32> -> vector<32x32xf32>
    %512 = vector.extract_strided_slice %61 {offsets = [160, 0], sizes = [32, 32], strides = [1, 1]} : vector<192x32xf32> to vector<32x32xf32>
    %513 = arith.addf %512, %511 : vector<32x32xf32>
    %514 = math.tanh %513 : vector<32x32xf32>
    %515 = vector.broadcast %4 : vector<1x32xf32> to vector<32x32xf32>
    %516 = arith.mulf %514, %515 : vector<32x32xf32>
    %cst_141 = arith.constant dense<0.000000e+00> : vector<32xf32>
    %517 = vector.multi_reduction <add>, %516, %cst_141 [1] : vector<32x32xf32> to vector<32xf32>
    %518 = vector.shape_cast %517 : vector<32xf32> to vector<32x1xf32>
    %cst_142 = arith.constant dense<0.000000e+00> : vector<32x1xf32>
    %519 = tpu.matmul %24, %518, %cst_142 {dimension_numbers = #tpu.dot_dimension_numbers<[1], [0], [0], [1], [0, 0, 1, 1], [], []>} : vector<32x32xf32>, vector<32x1xf32>, vector<32x1xf32> -> vector<32x1xf32>
    %cst_143 = arith.constant dense<0xFF800000> : vector<1xf32>
    %520 = vector.multi_reduction <maximumf>, %519, %cst_143 [0] : vector<32x1xf32> to vector<1xf32>
    %521 = vector.shape_cast %520 : vector<1xf32> to vector<1x1xf32>
    %522 = vector.broadcast %521 : vector<1x1xf32> to vector<32x1xf32>
    %523 = arith.subf %519, %522 : vector<32x1xf32>
    %524 = math.exp %523 : vector<32x1xf32>
    %cst_144 = arith.constant dense<0.000000e+00> : vector<2x1xf32>
    %525 = tpu.matmul %25, %524, %cst_144 {dimension_numbers = #tpu.dot_dimension_numbers<[1], [0], [0], [1], [0, 0, 1, 1], [], []>} : vector<2x32xf32>, vector<32x1xf32>, vector<2x1xf32> -> vector<2x1xf32>
    %c160_145 = arith.constant 160 : index
    %c0_146 = arith.constant 0 : index
    %526 = vector.load %arg0[%c160_145, %c0_146] : memref<192x32xf32, #tpu.memory_space<vmem>>, vector<32x32xf32>
    %527 = vector.broadcast %524 : vector<32x1xf32> to vector<32x32xf32>
    %528 = arith.mulf %527, %526 : vector<32x32xf32>
    %cst_147 = arith.constant dense<0.000000e+00> : vector<2x32xf32>
    %529 = tpu.matmul %25, %528, %cst_147 {dimension_numbers = #tpu.dot_dimension_numbers<[1], [0], [0], [1], [0, 0, 1, 1], [], []>} : vector<2x32xf32>, vector<32x32xf32>, vector<2x32xf32> -> vector<2x32xf32>
    %530 = tpu.reciprocal %525 {approx = true} : vector<2x1xf32> -> vector<2x1xf32>
    %531 = vector.broadcast %530 : vector<2x1xf32> to vector<2x32xf32>
    %532 = arith.mulf %529, %531 : vector<2x32xf32>
    %c10 = arith.constant 10 : index
    %c0_148 = arith.constant 0 : index
    %533 = vector.load %arg4[%c10, %c0_148] : memref<12x32xf32, #tpu.memory_space<vmem>>, vector<2x32xf32>
    tpu.vector_store %arg4[%c10, %c0_148], %532 {strides = array<i32>} : memref<12x32xf32, #tpu.memory_space<vmem>>, vector<2x32xf32>,
    %534 = vector.extract_strided_slice %64 {offsets = [0, 0], sizes = [2, 64], strides = [1, 1]} : vector<12x64xf32> to vector<2x64xf32>
    %cst_149 = arith.constant dense<0.000000e+00> : vector<2x64xf32>
    %535 = tpu.matmul %506, %6, %cst_149 {dimension_numbers = #tpu.dot_dimension_numbers<[1], [0], [0], [1], [0, 0, 1, 1], [], []>} : vector<2x16xf32>, vector<16x64xf32>, vector<2x64xf32> -> vector<2x64xf32>
    %536 = arith.addf %534, %535 : vector<2x64xf32>
    %537 = vector.extract_strided_slice %536 {offsets = [0, 0], sizes = [2, 16], strides = [1, 1]} : vector<2x64xf32> to vector<2x16xf32>
    %538 = arith.negf %537 : vector<2x16xf32>
    %539 = math.exp %538 : vector<2x16xf32>
    %cst_150 = arith.constant 1.000000e+00 : f32
    %540 = vector.broadcast %cst_150 : f32 to vector<2x16xf32>
    %541 = arith.addf %540, %539 : vector<2x16xf32>
    %542 = arith.divf %540, %541 : vector<2x16xf32>
    %543 = vector.extract_strided_slice %536 {offsets = [0, 16], sizes = [2, 16], strides = [1, 1]} : vector<2x64xf32> to vector<2x16xf32>
    %544 = arith.negf %543 : vector<2x16xf32>
    %545 = math.exp %544 : vector<2x16xf32>
    %cst_151 = arith.constant 1.000000e+00 : f32
    %546 = vector.broadcast %cst_151 : f32 to vector<2x16xf32>
    %547 = arith.addf %546, %545 : vector<2x16xf32>
    %548 = arith.divf %546, %547 : vector<2x16xf32>
    %549 = vector.extract_strided_slice %536 {offsets = [0, 32], sizes = [2, 16], strides = [1, 1]} : vector<2x64xf32> to vector<2x16xf32>
    %550 = math.tanh %549 : vector<2x16xf32>
    %551 = vector.extract_strided_slice %536 {offsets = [0, 48], sizes = [2, 16], strides = [1, 1]} : vector<2x64xf32> to vector<2x16xf32>
    %552 = arith.negf %551 : vector<2x16xf32>
    %553 = math.exp %552 : vector<2x16xf32>
    %cst_152 = arith.constant 1.000000e+00 : f32
    %554 = vector.broadcast %cst_152 : f32 to vector<2x16xf32>
    %555 = arith.addf %554, %553 : vector<2x16xf32>
    %556 = arith.divf %554, %555 : vector<2x16xf32>
    %557 = arith.mulf %548, %504 : vector<2x16xf32>
    %558 = arith.mulf %542, %550 : vector<2x16xf32>
    %559 = arith.addf %557, %558 : vector<2x16xf32>
    %560 = math.tanh %559 : vector<2x16xf32>
    %561 = arith.mulf %556, %560 : vector<2x16xf32>
    %562 = vector.extract_strided_slice %64 {offsets = [2, 0], sizes = [2, 64], strides = [1, 1]} : vector<12x64xf32> to vector<2x64xf32>
    %cst_153 = arith.constant dense<0.000000e+00> : vector<2x64xf32>
    %563 = tpu.matmul %561, %6, %cst_153 {dimension_numbers = #tpu.dot_dimension_numbers<[1], [0], [0], [1], [0, 0, 1, 1], [], []>} : vector<2x16xf32>, vector<16x64xf32>, vector<2x64xf32> -> vector<2x64xf32>
    %564 = arith.addf %562, %563 : vector<2x64xf32>
    %565 = vector.extract_strided_slice %564 {offsets = [0, 0], sizes = [2, 16], strides = [1, 1]} : vector<2x64xf32> to vector<2x16xf32>
    %566 = arith.negf %565 : vector<2x16xf32>
    %567 = math.exp %566 : vector<2x16xf32>
    %cst_154 = arith.constant 1.000000e+00 : f32
    %568 = vector.broadcast %cst_154 : f32 to vector<2x16xf32>
    %569 = arith.addf %568, %567 : vector<2x16xf32>
    %570 = arith.divf %568, %569 : vector<2x16xf32>
    %571 = vector.extract_strided_slice %564 {offsets = [0, 16], sizes = [2, 16], strides = [1, 1]} : vector<2x64xf32> to vector<2x16xf32>
    %572 = arith.negf %571 : vector<2x16xf32>
    %573 = math.exp %572 : vector<2x16xf32>
    %cst_155 = arith.constant 1.000000e+00 : f32
    %574 = vector.broadcast %cst_155 : f32 to vector<2x16xf32>
    %575 = arith.addf %574, %573 : vector<2x16xf32>
    %576 = arith.divf %574, %575 : vector<2x16xf32>
    %577 = vector.extract_strided_slice %564 {offsets = [0, 32], sizes = [2, 16], strides = [1, 1]} : vector<2x64xf32> to vector<2x16xf32>
    %578 = math.tanh %577 : vector<2x16xf32>
    %579 = vector.extract_strided_slice %564 {offsets = [0, 48], sizes = [2, 16], strides = [1, 1]} : vector<2x64xf32> to vector<2x16xf32>
    %580 = arith.negf %579 : vector<2x16xf32>
    %581 = math.exp %580 : vector<2x16xf32>
    %cst_156 = arith.constant 1.000000e+00 : f32
    %582 = vector.broadcast %cst_156 : f32 to vector<2x16xf32>
    %583 = arith.addf %582, %581 : vector<2x16xf32>
    %584 = arith.divf %582, %583 : vector<2x16xf32>
    %585 = arith.mulf %576, %559 : vector<2x16xf32>
    %586 = arith.mulf %570, %578 : vector<2x16xf32>
    %587 = arith.addf %585, %586 : vector<2x16xf32>
    %588 = math.tanh %587 : vector<2x16xf32>
    %589 = arith.mulf %584, %588 : vector<2x16xf32>
    %590 = vector.extract_strided_slice %64 {offsets = [4, 0], sizes = [2, 64], strides = [1, 1]} : vector<12x64xf32> to vector<2x64xf32>
    %cst_157 = arith.constant dense<0.000000e+00> : vector<2x64xf32>
    %591 = tpu.matmul %589, %6, %cst_157 {dimension_numbers = #tpu.dot_dimension_numbers<[1], [0], [0], [1], [0, 0, 1, 1], [], []>} : vector<2x16xf32>, vector<16x64xf32>, vector<2x64xf32> -> vector<2x64xf32>
    %592 = arith.addf %590, %591 : vector<2x64xf32>
    %593 = vector.extract_strided_slice %592 {offsets = [0, 0], sizes = [2, 16], strides = [1, 1]} : vector<2x64xf32> to vector<2x16xf32>
    %594 = arith.negf %593 : vector<2x16xf32>
    %595 = math.exp %594 : vector<2x16xf32>
    %cst_158 = arith.constant 1.000000e+00 : f32
    %596 = vector.broadcast %cst_158 : f32 to vector<2x16xf32>
    %597 = arith.addf %596, %595 : vector<2x16xf32>
    %598 = arith.divf %596, %597 : vector<2x16xf32>
    %599 = vector.extract_strided_slice %592 {offsets = [0, 16], sizes = [2, 16], strides = [1, 1]} : vector<2x64xf32> to vector<2x16xf32>
    %600 = arith.negf %599 : vector<2x16xf32>
    %601 = math.exp %600 : vector<2x16xf32>
    %cst_159 = arith.constant 1.000000e+00 : f32
    %602 = vector.broadcast %cst_159 : f32 to vector<2x16xf32>
    %603 = arith.addf %602, %601 : vector<2x16xf32>
    %604 = arith.divf %602, %603 : vector<2x16xf32>
    %605 = vector.extract_strided_slice %592 {offsets = [0, 32], sizes = [2, 16], strides = [1, 1]} : vector<2x64xf32> to vector<2x16xf32>
    %606 = math.tanh %605 : vector<2x16xf32>
    %607 = vector.extract_strided_slice %592 {offsets = [0, 48], sizes = [2, 16], strides = [1, 1]} : vector<2x64xf32> to vector<2x16xf32>
    %608 = arith.negf %607 : vector<2x16xf32>
    %609 = math.exp %608 : vector<2x16xf32>
    %cst_160 = arith.constant 1.000000e+00 : f32
    %610 = vector.broadcast %cst_160 : f32 to vector<2x16xf32>
    %611 = arith.addf %610, %609 : vector<2x16xf32>
    %612 = arith.divf %610, %611 : vector<2x16xf32>
    %613 = arith.mulf %604, %587 : vector<2x16xf32>
    %614 = arith.mulf %598, %606 : vector<2x16xf32>
    %615 = arith.addf %613, %614 : vector<2x16xf32>
    %616 = math.tanh %615 : vector<2x16xf32>
    %617 = arith.mulf %612, %616 : vector<2x16xf32>
    %618 = vector.extract_strided_slice %64 {offsets = [6, 0], sizes = [2, 64], strides = [1, 1]} : vector<12x64xf32> to vector<2x64xf32>
    %cst_161 = arith.constant dense<0.000000e+00> : vector<2x64xf32>
    %619 = tpu.matmul %617, %6, %cst_161 {dimension_numbers = #tpu.dot_dimension_numbers<[1], [0], [0], [1], [0, 0, 1, 1], [], []>} : vector<2x16xf32>, vector<16x64xf32>, vector<2x64xf32> -> vector<2x64xf32>
    %620 = arith.addf %618, %619 : vector<2x64xf32>
    %621 = vector.extract_strided_slice %620 {offsets = [0, 0], sizes = [2, 16], strides = [1, 1]} : vector<2x64xf32> to vector<2x16xf32>
    %622 = arith.negf %621 : vector<2x16xf32>
    %623 = math.exp %622 : vector<2x16xf32>
    %cst_162 = arith.constant 1.000000e+00 : f32
    %624 = vector.broadcast %cst_162 : f32 to vector<2x16xf32>
    %625 = arith.addf %624, %623 : vector<2x16xf32>
    %626 = arith.divf %624, %625 : vector<2x16xf32>
    %627 = vector.extract_strided_slice %620 {offsets = [0, 16], sizes = [2, 16], strides = [1, 1]} : vector<2x64xf32> to vector<2x16xf32>
    %628 = arith.negf %627 : vector<2x16xf32>
    %629 = math.exp %628 : vector<2x16xf32>
    %cst_163 = arith.constant 1.000000e+00 : f32
    %630 = vector.broadcast %cst_163 : f32 to vector<2x16xf32>
    %631 = arith.addf %630, %629 : vector<2x16xf32>
    %632 = arith.divf %630, %631 : vector<2x16xf32>
    %633 = vector.extract_strided_slice %620 {offsets = [0, 32], sizes = [2, 16], strides = [1, 1]} : vector<2x64xf32> to vector<2x16xf32>
    %634 = math.tanh %633 : vector<2x16xf32>
    %635 = vector.extract_strided_slice %620 {offsets = [0, 48], sizes = [2, 16], strides = [1, 1]} : vector<2x64xf32> to vector<2x16xf32>
    %636 = arith.negf %635 : vector<2x16xf32>
    %637 = math.exp %636 : vector<2x16xf32>
    %cst_164 = arith.constant 1.000000e+00 : f32
    %638 = vector.broadcast %cst_164 : f32 to vector<2x16xf32>
    %639 = arith.addf %638, %637 : vector<2x16xf32>
    %640 = arith.divf %638, %639 : vector<2x16xf32>
    %641 = arith.mulf %632, %615 : vector<2x16xf32>
    %642 = arith.mulf %626, %634 : vector<2x16xf32>
    %643 = arith.addf %641, %642 : vector<2x16xf32>
    %644 = math.tanh %643 : vector<2x16xf32>
    %645 = arith.mulf %640, %644 : vector<2x16xf32>
    %646 = vector.extract_strided_slice %64 {offsets = [8, 0], sizes = [2, 64], strides = [1, 1]} : vector<12x64xf32> to vector<2x64xf32>
    %cst_165 = arith.constant dense<0.000000e+00> : vector<2x64xf32>
    %647 = tpu.matmul %645, %6, %cst_165 {dimension_numbers = #tpu.dot_dimension_numbers<[1], [0], [0], [1], [0, 0, 1, 1], [], []>} : vector<2x16xf32>, vector<16x64xf32>, vector<2x64xf32> -> vector<2x64xf32>
    %648 = arith.addf %646, %647 : vector<2x64xf32>
    %649 = vector.extract_strided_slice %648 {offsets = [0, 0], sizes = [2, 16], strides = [1, 1]} : vector<2x64xf32> to vector<2x16xf32>
    %650 = arith.negf %649 : vector<2x16xf32>
    %651 = math.exp %650 : vector<2x16xf32>
    %cst_166 = arith.constant 1.000000e+00 : f32
    %652 = vector.broadcast %cst_166 : f32 to vector<2x16xf32>
    %653 = arith.addf %652, %651 : vector<2x16xf32>
    %654 = arith.divf %652, %653 : vector<2x16xf32>
    %655 = vector.extract_strided_slice %648 {offsets = [0, 16], sizes = [2, 16], strides = [1, 1]} : vector<2x64xf32> to vector<2x16xf32>
    %656 = arith.negf %655 : vector<2x16xf32>
    %657 = math.exp %656 : vector<2x16xf32>
    %cst_167 = arith.constant 1.000000e+00 : f32
    %658 = vector.broadcast %cst_167 : f32 to vector<2x16xf32>
    %659 = arith.addf %658, %657 : vector<2x16xf32>
    %660 = arith.divf %658, %659 : vector<2x16xf32>
    %661 = vector.extract_strided_slice %648 {offsets = [0, 32], sizes = [2, 16], strides = [1, 1]} : vector<2x64xf32> to vector<2x16xf32>
    %662 = math.tanh %661 : vector<2x16xf32>
    %663 = vector.extract_strided_slice %648 {offsets = [0, 48], sizes = [2, 16], strides = [1, 1]} : vector<2x64xf32> to vector<2x16xf32>
    %664 = arith.negf %663 : vector<2x16xf32>
    %665 = math.exp %664 : vector<2x16xf32>
    %cst_168 = arith.constant 1.000000e+00 : f32
    %666 = vector.broadcast %cst_168 : f32 to vector<2x16xf32>
    %667 = arith.addf %666, %665 : vector<2x16xf32>
    %668 = arith.divf %666, %667 : vector<2x16xf32>
    %669 = arith.mulf %660, %643 : vector<2x16xf32>
    %670 = arith.mulf %654, %662 : vector<2x16xf32>
    %671 = arith.addf %669, %670 : vector<2x16xf32>
    %672 = math.tanh %671 : vector<2x16xf32>
    %673 = arith.mulf %668, %672 : vector<2x16xf32>
    %c10_169 = arith.constant 10 : index
    %c0_170 = arith.constant 0 : index
    %674 = vector.load %arg5[%c10_169, %c0_170] : memref<12x16xf32, #tpu.memory_space<vmem>>, vector<2x16xf32>
    tpu.vector_store %arg5[%c10_169, %c0_170], %673 {strides = array<i32>} : memref<12x16xf32, #tpu.memory_space<vmem>>, vector<2x16xf32>,
    %c0_171 = arith.constant 0 : index
    %c0_172 = arith.constant 0 : index
    %675 = vector.load %arg4[%c0_171, %c0_172] : memref<12x32xf32, #tpu.memory_space<vmem>>, vector<12x32xf32>
    %c0_173 = arith.constant 0 : index
    %c0_174 = arith.constant 0 : index
    %676 = vector.load %arg5[%c0_173, %c0_174] : memref<12x16xf32, #tpu.memory_space<vmem>>, vector<12x16xf32>
    %cst_175 = arith.constant dense<0.000000e+00> : vector<12x48xf32>
    %677 = tpu.matmul %675, %8, %cst_175 {dimension_numbers = #tpu.dot_dimension_numbers<[1], [0], [0], [1], [0, 0, 1, 1], [], []>} : vector<12x32xf32>, vector<32x48xf32>, vector<12x48xf32> -> vector<12x48xf32>
    %cst_176 = arith.constant dense<0.000000e+00> : vector<12x48xf32>
    %678 = tpu.matmul %676, %9, %cst_176 {dimension_numbers = #tpu.dot_dimension_numbers<[1], [0], [0], [1], [0, 0, 1, 1], [], []>} : vector<12x16xf32>, vector<16x48xf32>, vector<12x48xf32> -> vector<12x48xf32>
    %679 = arith.addf %677, %678 : vector<12x48xf32>
    %680 = vector.broadcast %10 : vector<1x48xf32> to vector<12x48xf32>
    %681 = arith.addf %679, %680 : vector<12x48xf32>
    %cst_177 = arith.constant dense<0.000000e+00> : vector<12x48xf32>
    %682 = tpu.matmul %681, %11, %cst_177 {dimension_numbers = #tpu.dot_dimension_numbers<[1], [0], [0], [1], [0, 0, 1, 1], [], []>} : vector<12x48xf32>, vector<48x48xf32>, vector<12x48xf32> -> vector<12x48xf32>
    %683 = vector.broadcast %12 : vector<1x48xf32> to vector<12x48xf32>
    %684 = arith.addf %682, %683 : vector<12x48xf32>
    %cst_178 = arith.constant dense<0.000000e+00> : vector<12x5xf32>
    %685 = tpu.matmul %684, %13, %cst_178 {dimension_numbers = #tpu.dot_dimension_numbers<[1], [0], [0], [1], [0, 0, 1, 1], [], []>} : vector<12x48xf32>, vector<48x5xf32>, vector<12x5xf32> -> vector<12x5xf32>
    %686 = vector.broadcast %14 : vector<1x5xf32> to vector<12x5xf32>
    %687 = arith.addf %685, %686 : vector<12x5xf32>
    %c0_179 = arith.constant 0 : index
    %c0_180 = arith.constant 0 : index
    %688 = vector.load %arg3[%c0_179, %c0_180] : memref<12x5xf32, #tpu.memory_space<vmem>>, vector<12x5xf32>
    tpu.vector_store %arg3[%c0_179, %c0_180], %687 {strides = array<i32>} : memref<12x5xf32, #tpu.memory_space<vmem>>, vector<12x5xf32>,
    return
  }
}

</mosaic_0001>

<llo_original>
// kernel: _forward_impl.1
$region0: #{_forward_impl.1}
  #allocation0 [shape = 'u32[]', space=smem, size = 0x4, offset = 0x4, fixed_abs, tag = 'smem constant byte address 0x4 - core index']
  #allocation1 [shape = 'u32[72,128]{1,0:T(1,128)}', space=vmem, size = 0x9000, scoped, tag = 'internal scratch']
  #allocation2 [shape = 'f32[12,32]{1,0:T(8,128)}', space=vmem, size = 0x2000, scoped, tag = 'scratch operand']
  #allocation3 [shape = 'f32[12,16]{1,0:T(8,128)}', space=vmem, size = 0x2000, scoped, tag = 'scratch operand']
  %s0 = inlined_call_operand.vmem [shape: f32[192,32], index: 0, kind: input, shape index: {}]
  %s1 = inlined_call_operand.vmem [shape: f32[12,3], index: 1, kind: input, shape index: {}]
  %s2 = inlined_call_operand.vmem [shape: f32[424,128], index: 2, kind: input, shape index: {}]
  %s3 = inlined_call_operand.vmem [shape: f32[12,5], index: 3, kind: output, shape index: {}]
  %s4 = sld [smem:[#allocation0]]
  $region22: #{_forward_impl.1} parent=0
    _
  %s6 = ssub.s32 1, %s4
  %s7 = scalar_select 0, %s6, %s4
  // Predicated region
  $region2: #{_forward_impl.1} parent=0 // pred_check
    _
  $region3: #{_forward_impl.1} parent=0 // pred_check_branch
    %9 = sbr.rel (0) target = $region5
  $region4: #{_forward_impl.1} parent=0 // pred_region
    _
  $region5: #{_forward_impl.1} parent=0 // pred_fallthru
    _
  // Predicated region
  $region6: #{_forward_impl.1} parent=0 // pred_check
    _
  $region7: #{_forward_impl.1} parent=0 // pred_check_branch
    %11 = sbr.rel (0) target = $region9
  $region8: #{_forward_impl.1} parent=0 // pred_region
    _
  $region9: #{_forward_impl.1} parent=0 // pred_fallthru
    _
  // Predicated region
  $region10: #{_forward_impl.1} parent=0 // pred_check
    _
  $region11: #{_forward_impl.1} parent=0 // pred_check_branch
    %13 = sbr.rel (0) target = $region13
  $region12: #{_forward_impl.1} parent=0 // pred_region
    _
  $region13: #{_forward_impl.1} parent=0 // pred_fallthru
    _
  %v14 = vld [vmem:[%s2] sm:$0xff]
  %v15 = vld [vmem:[%s2 + $0x8] sm:$0xff]
  %v16 = vld [vmem:[%s2 + $0x10] sm:$0x1]
  %v17 = vld [vmem:[%s2 + $0x18] sm:$0xff]
  %v18 = vld [vmem:[%s2 + $0x20] sm:$0xff]
  %v19 = vld [vmem:[%s2 + $0x28] sm:$0xff]
  %v20 = vld [vmem:[%s2 + $0x30] sm:$0xff]
  %v21 = vld [vmem:[%s2 + $0x38] sm:$0x1]
  %v22 = vld [vmem:[%s2 + $0x40] sm:$0x1]
  %v23 = vld [vmem:[%s2 + $0x48] sm:$0x7]
  %v24 = vld [vmem:[%s2 + $0x50] sm:$0xff]
  %v25 = vld [vmem:[%s2 + $0x58] sm:$0xff]
  %v26 = vld [vmem:[%s2 + $0x60] sm:$0x1]
  %v27 = vld [vmem:[%s2 + $0x68] sm:$0xff]
  %v28 = vld [vmem:[%s2 + $0x70] sm:$0xff]
  %v29 = vld [vmem:[%s2 + $0x78] sm:$0xff]
  %v30 = vld [vmem:[%s2 + $0x80] sm:$0xff]
  %v31 = vld [vmem:[%s2 + $0x88] sm:$0xff]
  %v32 = vld [vmem:[%s2 + $0x90] sm:$0xff]
  %v33 = vld [vmem:[%s2 + $0x98] sm:$0x1]
  %v34 = vld [vmem:[%s2 + $0xa0] sm:$0xff]
  %v35 = vld [vmem:[%s2 + $0xa8] sm:$0xff]
  %v36 = vld [vmem:[%s2 + $0xb0] sm:$0xff]
  %v37 = vld [vmem:[%s2 + $0xb8] sm:$0xff]
  %v38 = vld [vmem:[%s2 + $0xc0] sm:$0xff]
  %v39 = vld [vmem:[%s2 + $0xc8] sm:$0xff]
  %v40 = vld [vmem:[%s2 + $0xd0] sm:$0x1]
  %v41 = vld [vmem:[%s2 + $0xd8] sm:$0xff]
  %v42 = vld [vmem:[%s2 + $0xe0] sm:$0xff]
  %v43 = vld [vmem:[%s2 + $0xe8] sm:$0xff]
  %v44 = vld [vmem:[%s2 + $0xf0] sm:$0xff]
  %v45 = vld [vmem:[%s2 + $0xf8] sm:$0xff]
  %v46 = vld [vmem:[%s2 + $0x100] sm:$0xff]
  %v47 = vld [vmem:[%s2 + $0x108] sm:$0x1]
  %v48 = vld [vmem:[%s2 + $0x110] sm:$0x7]
  %v49 = vld [vmem:[%s2 + $0x118] sm:$0x1]
  %v50 = vld [vmem:[%s2 + $0x120] sm:$0xff]
  %v51 = vld [vmem:[%s2 + $0x128] sm:$0xff]
  %v52 = vld [vmem:[%s2 + $0x130] sm:$0x1]
  %v53 = vld [vmem:[%s2 + $0x138] sm:$0x7]
  %v54 = vld [vmem:[%s2 + $0x140] sm:$0x1]
  %v55 = vld [vmem:[%s2 + $0x148] sm:$0xff]
  %v56 = vld [vmem:[%s2 + $0x150] sm:$0xff]
  %v57 = vld [vmem:[%s2 + $0x158] sm:$0x1]
  %v58 = vld [vmem:[%s2 + $0x160] sm:$0xff]
  %v59 = vld [vmem:[%s2 + $0x168] sm:$0xff]
  %v60 = vld [vmem:[%s2 + $0x170] sm:$0xff]
  %v61 = vld [vmem:[%s2 + $0x178] sm:$0xff]
  %v62 = vld [vmem:[%s2 + $0x180] sm:$0xff]
  %v63 = vld [vmem:[%s2 + $0x188] sm:$0xff]
  %v64 = vld [vmem:[%s2 + $0x190] sm:$0xff]
  %v65 = vld [vmem:[%s2 + $0x198] sm:$0xff]
  %v66 = vld [vmem:[%s2 + $0x1a0] sm:$0x3]
  %v67 = vld [vmem:[%s1] sm:$0xff]
  %v68 = vld [vmem:[%s1 + $0x8] sm:$0xf]
  %v70 = vrot.slane %v67, 2
  %v72 = vadd.f32 %v67, %v70
  %v73 = vrot.slane %v67, 4
  %v75 = vadd.f32 %v72, %v73
  %v76 = vrot.slane %v67, 6
  %v78 = vadd.f32 %v75, %v76
  %v79 = vadd.f32 %v78, %v68
  %v81 = vrot.slane %v68, 2
  %v83 = vadd.f32 %v79, %v81
  %v84 = vmul.f32 %v83, 0.16666667
  %v85 = vperm.slane %v49, 0
  %vm86 = vcmask 23552
  %v88 = vsel %vm86, %v84, 0
  %vm90 = vcmask 1042432
  %v92 = vsel %vm90, %v48, 0
  %94 = vmatpush.msra.mxu0 0.0
  %95 = vmatpush.msra.mxu0 0.0
  %96 = vmatpush.msra.mxu0 0.0
  %97 = vmatpush.msra.mxu0 0.0
  %98 = vmatpush.msra.mxu0 0.0
  %99 = vmatpush.msra.mxu0 0.0
  %100 = vmatpush.msra.mxu0 0.0
  %101 = vmatpush.msra.mxu0 0.0
  %102 = vmatpush.msra.mxu0 0.0
  %103 = vmatpush.msra.mxu0 0.0
  %104 = vmatpush.msra.mxu0 0.0
  %105 = vmatpush.msra.mxu0 0.0
  %106 = vmatpush.msra.mxu0 0.0
  %107 = vmatpush.msra.mxu0 0.0
  %108 = vmatpush.msra.mxu0 0.0
  %109 = vmatpush.msra.mxu0 %v92
  %110 = vmatmul.f32.gmra.mxu0 %v88
  %v111 = vpop.f32.mrf.mxu0
  %v112 = vadd.f32 %v85, %v111
  %113 = vdwg.mxu0
  %v114 = vtanh.pop %v112
  %v115 = vperm.slane %v52, 0
  %vm116 = vcmask 130048
  %v118 = vsel %vm116, %v114, 0
  %120 = vmatpush.msra.mxu0 0.0
  %121 = vmatpush.msra.mxu0 0.0
  %122 = vmatpush.msra.mxu0 0.0
  %123 = vmatpush.msra.mxu0 0.0
  %124 = vmatpush.msra.mxu0 0.0
  %125 = vmatpush.msra.mxu0 0.0
  %126 = vmatpush.msra.mxu0 0.0
  %127 = vmatpush.msra.mxu0 0.0
  %128 = vmatpush.msra.mxu0 0.0
  %129 = vmatpush.msra.mxu0 0.0
  %130 = vmatpush.msra.mxu0 0.0
  %131 = vmatpush.msra.mxu0 0.0
  %132 = vmatpush.msra.mxu0 0.0
  %133 = vmatpush.msra.mxu0 0.0
  %134 = vmatpush.msra.mxu0 %v51
  %135 = vmatpush.msra.mxu0 %v50
  %136 = vmatmul.f32.gmra.mxu0 %v118
  %v137 = vpop.f32.mrf.mxu0
  %v138 = vadd.f32 %v115, %v137
  %139 = vdwg.mxu0
  %v140 = vtanh.pop %v138
  %v141 = vtanh.pop %v140
  %v142 = vperm.slane %v54, 0
  %v144 = vsel %vm90, %v53, 0
  %146 = vmatpush.msra.mxu0 0.0
  %147 = vmatpush.msra.mxu0 0.0
  %148 = vmatpush.msra.mxu0 0.0
  %149 = vmatpush.msra.mxu0 0.0
  %150 = vmatpush.msra.mxu0 0.0
  %151 = vmatpush.msra.mxu0 0.0
  %152 = vmatpush.msra.mxu0 0.0
  %153 = vmatpush.msra.mxu0 0.0
  %154 = vmatpush.msra.mxu0 0.0
  %155 = vmatpush.msra.mxu0 0.0
  %156 = vmatpush.msra.mxu0 0.0
  %157 = vmatpush.msra.mxu0 0.0
  %158 = vmatpush.msra.mxu0 0.0
  %159 = vmatpush.msra.mxu0 0.0
  %160 = vmatpush.msra.mxu0 0.0
  %161 = vmatpush.msra.mxu0 %v144
  %162 = vmatmul.f32.gmra.mxu0 %v88
  %v163 = vpop.f32.mrf.mxu0
  %v164 = vadd.f32 %v142, %v163
  %165 = vdwg.mxu0
  %v166 = vtanh.pop %v164
  %v167 = vperm.slane %v57, 0
  %v169 = vsel %vm116, %v166, 0
  %171 = vmatpush.msra.mxu0 0.0
  %172 = vmatpush.msra.mxu0 0.0
  %173 = vmatpush.msra.mxu0 0.0
  %174 = vmatpush.msra.mxu0 0.0
  %175 = vmatpush.msra.mxu0 0.0
  %176 = vmatpush.msra.mxu0 0.0
  %177 = vmatpush.msra.mxu0 0.0
  %178 = vmatpush.msra.mxu0 0.0
  %179 = vmatpush.msra.mxu0 0.0
  %180 = vmatpush.msra.mxu0 0.0
  %181 = vmatpush.msra.mxu0 0.0
  %182 = vmatpush.msra.mxu0 0.0
  %183 = vmatpush.msra.mxu0 0.0
  %184 = vmatpush.msra.mxu0 0.0
  %185 = vmatpush.msra.mxu0 %v56
  %186 = vmatpush.msra.mxu0 %v55
  %187 = vmatmul.f32.gmra.mxu0 %v169
  %v188 = vpop.f32.mrf.mxu0
  %v189 = vadd.f32 %v167, %v188
  %190 = vdwg.mxu0
  %v191 = vtanh.pop %v189
  %v192 = vtanh.pop %v191
  %v193 = vld [vmem:[%s0] sm:$0xff]
  %v194 = vld [vmem:[%s0 + $0x8] sm:$0xff]
  %v195 = vld [vmem:[%s0 + $0x10] sm:$0xff]
  %v196 = vld [vmem:[%s0 + $0x18] sm:$0xff]
  %v197 = vld [vmem:[%s0 + $0x20] sm:$0xff]
  %v198 = vld [vmem:[%s0 + $0x28] sm:$0xff]
  %v199 = vld [vmem:[%s0 + $0x30] sm:$0xff]
  %v200 = vld [vmem:[%s0 + $0x38] sm:$0xff]
  %v201 = vld [vmem:[%s0 + $0x40] sm:$0xff]
  %v202 = vld [vmem:[%s0 + $0x48] sm:$0xff]
  %v203 = vld [vmem:[%s0 + $0x50] sm:$0xff]
  %v204 = vld [vmem:[%s0 + $0x58] sm:$0xff]
  %v205 = vld [vmem:[%s0 + $0x60] sm:$0xff]
  %v206 = vld [vmem:[%s0 + $0x68] sm:$0xff]
  %v207 = vld [vmem:[%s0 + $0x70] sm:$0xff]
  %v208 = vld [vmem:[%s0 + $0x78] sm:$0xff]
  %v209 = vld [vmem:[%s0 + $0x80] sm:$0xff]
  %v210 = vld [vmem:[%s0 + $0x88] sm:$0xff]
  %v211 = vld [vmem:[%s0 + $0x90] sm:$0xff]
  %v212 = vld [vmem:[%s0 + $0x98] sm:$0xff]
  %v213 = vld [vmem:[%s0 + $0xa0] sm:$0xff]
  %v214 = vld [vmem:[%s0 + $0xa8] sm:$0xff]
  %v215 = vld [vmem:[%s0 + $0xb0] sm:$0xff]
  %v216 = vld [vmem:[%s0 + $0xb8] sm:$0xff]
  %v217 = vperm.slane %v21, 0
  %vm218 = vcmask 261120
  %v220 = vsel %vm218, %v193, 0
  %v223 = vsel %vm218, %v194, 0
  %v226 = vsel %vm218, %v195, 0
  %v229 = vsel %vm218, %v196, 0
  %v232 = vsel %vm218, %v197, 0
  %v235 = vsel %vm218, %v198, 0
  %v238 = vsel %vm218, %v199, 0
  %v241 = vsel %vm218, %v200, 0
  %v244 = vsel %vm218, %v201, 0
  %v247 = vsel %vm218, %v202, 0
  %v250 = vsel %vm218, %v203, 0
  %v253 = vsel %vm218, %v204, 0
  %v256 = vsel %vm218, %v205, 0
  %v259 = vsel %vm218, %v206, 0
  %v262 = vsel %vm218, %v207, 0
  %v265 = vsel %vm218, %v208, 0
  %v268 = vsel %vm218, %v209, 0
  %v271 = vsel %vm218, %v210, 0
  %v274 = vsel %vm218, %v211, 0
  %v277 = vsel %vm218, %v212, 0
  %v280 = vsel %vm218, %v213, 0
  %v283 = vsel %vm218, %v214, 0
  %v286 = vsel %vm218, %v215, 0
  %v289 = vsel %vm218, %v216, 0
  %291 = vmatpush.msra.mxu0 0.0
  %292 = vmatpush.msra.mxu0 0.0
  %293 = vmatpush.msra.mxu0 0.0
  %294 = vmatpush.msra.mxu0 0.0
  %295 = vmatpush.msra.mxu0 0.0
  %296 = vmatpush.msra.mxu0 0.0
  %297 = vmatpush.msra.mxu0 0.0
  %298 = vmatpush.msra.mxu0 0.0
  %299 = vmatpush.msra.mxu0 0.0
  %300 = vmatpush.msra.mxu0 0.0
  %301 = vmatpush.msra.mxu0 0.0
  %302 = vmatpush.msra.mxu0 0.0
  %303 = vmatpush.msra.mxu0 %v20
  %304 = vmatpush.msra.mxu0 %v19
  %305 = vmatpush.msra.mxu0 %v18
  %306 = vmatpush.msra.mxu0 %v17
  %307 = vmatmul.f32.gmra.mxu0 %v220
  %v308 = vpop.f32.mrf.mxu0
  %v309 = vadd.f32 %v217, %v308
  %310 = vmatmul.f32.gmra.mxu0 %v223
  %v311 = vpop.f32.mrf.mxu0
  %v312 = vadd.f32 %v217, %v311
  %313 = vmatmul.f32.gmra.mxu0 %v226
  %v314 = vpop.f32.mrf.mxu0
  %v315 = vadd.f32 %v217, %v314
  %316 = vmatmul.f32.gmra.mxu0 %v229
  %v317 = vpop.f32.mrf.mxu0
  %v318 = vadd.f32 %v217, %v317
  %319 = vmatmul.f32.gmra.mxu0 %v232
  %v320 = vpop.f32.mrf.mxu0
  %v321 = vadd.f32 %v217, %v320
  %322 = vmatmul.f32.gmra.mxu0 %v235
  %v323 = vpop.f32.mrf.mxu0
  %v324 = vadd.f32 %v217, %v323
  %325 = vmatmul.f32.gmra.mxu0 %v238
  %v326 = vpop.f32.mrf.mxu0
  %v327 = vadd.f32 %v217, %v326
  %328 = vmatmul.f32.gmra.mxu0 %v241
  %v329 = vpop.f32.mrf.mxu0
  %v330 = vadd.f32 %v217, %v329
  %331 = vmatmul.f32.gmra.mxu0 %v244
  %v332 = vpop.f32.mrf.mxu0
  %v333 = vadd.f32 %v217, %v332
  %334 = vmatmul.f32.gmra.mxu0 %v247
  %v335 = vpop.f32.mrf.mxu0
  %v336 = vadd.f32 %v217, %v335
  %337 = vmatmul.f32.gmra.mxu0 %v250
  %v338 = vpop.f32.mrf.mxu0
  %v339 = vadd.f32 %v217, %v338
  %340 = vmatmul.f32.gmra.mxu0 %v253
  %v341 = vpop.f32.mrf.mxu0
  %v342 = vadd.f32 %v217, %v341
  %343 = vmatmul.f32.gmra.mxu0 %v256
  %v344 = vpop.f32.mrf.mxu0
  %v345 = vadd.f32 %v217, %v344
  %346 = vmatmul.f32.gmra.mxu0 %v259
  %v347 = vpop.f32.mrf.mxu0
  %v348 = vadd.f32 %v217, %v347
  %349 = vmatmul.f32.gmra.mxu0 %v262
  %v350 = vpop.f32.mrf.mxu0
  %v351 = vadd.f32 %v217, %v350
  %352 = vmatmul.f32.gmra.mxu0 %v265
  %v353 = vpop.f32.mrf.mxu0
  %v354 = vadd.f32 %v217, %v353
  %355 = vmatmul.f32.gmra.mxu0 %v268
  %v356 = vpop.f32.mrf.mxu0
  %v357 = vadd.f32 %v217, %v356
  %358 = vmatmul.f32.gmra.mxu0 %v271
  %v359 = vpop.f32.mrf.mxu0
  %v360 = vadd.f32 %v217, %v359
  %361 = vmatmul.f32.gmra.mxu0 %v274
  %v362 = vpop.f32.mrf.mxu0
  %v363 = vadd.f32 %v217, %v362
  %364 = vmatmul.f32.gmra.mxu0 %v277
  %v365 = vpop.f32.mrf.mxu0
  %v366 = vadd.f32 %v217, %v365
  %367 = vmatmul.f32.gmra.mxu0 %v280
  %v368 = vpop.f32.mrf.mxu0
  %v369 = vadd.f32 %v217, %v368
  %370 = vmatmul.f32.gmra.mxu0 %v283
  %v371 = vpop.f32.mrf.mxu0
  %v372 = vadd.f32 %v217, %v371
  %373 = vmatmul.f32.gmra.mxu0 %v286
  %v374 = vpop.f32.mrf.mxu0
  %v375 = vadd.f32 %v217, %v374
  %376 = vmatmul.f32.gmra.mxu0 %v289
  %v377 = vpop.f32.mrf.mxu0
  %v378 = vadd.f32 %v217, %v377
  %379 = vdwg.mxu0
  %v380 = vperm.slane %v26, 0
  %v381 = vsel %vm86, %v67, 0
  %v383 = vsel %vm86, %v68, 0
  %v386 = vsel %vm90, %v23, 0
  %388 = vmatpush.msra.mxu0 0.0
  %389 = vmatpush.msra.mxu0 0.0
  %390 = vmatpush.msra.mxu0 0.0
  %391 = vmatpush.msra.mxu0 0.0
  %392 = vmatpush.msra.mxu0 0.0
  %393 = vmatpush.msra.mxu0 0.0
  %394 = vmatpush.msra.mxu0 0.0
  %395 = vmatpush.msra.mxu0 0.0
  %396 = vmatpush.msra.mxu0 0.0
  %397 = vmatpush.msra.mxu0 0.0
  %398 = vmatpush.msra.mxu0 0.0
  %399 = vmatpush.msra.mxu0 0.0
  %400 = vmatpush.msra.mxu0 0.0
  %401 = vmatpush.msra.mxu0 0.0
  %402 = vmatpush.msra.mxu0 0.0
  %403 = vmatpush.msra.mxu0 %v386
  %404 = vmatmul.f32.gmra.mxu0 %v381
  %v405 = vpop.f32.mrf.mxu0
  %v406 = vadd.f32 %v380, %v405
  %407 = vmatmul.f32.gmra.mxu0 %v383
  %v408 = vpop.f32.mrf.mxu0
  %v409 = vadd.f32 %v380, %v408
  %410 = vdwg.mxu0
  %v411 = vperm.slane %v16, 0
  %v413 = vsel %vm116, %v141, 0
  %415 = vmatpush.msra.mxu0 0.0
  %416 = vmatpush.msra.mxu0 0.0
  %417 = vmatpush.msra.mxu0 0.0
  %418 = vmatpush.msra.mxu0 0.0
  %419 = vmatpush.msra.mxu0 0.0
  %420 = vmatpush.msra.mxu0 0.0
  %421 = vmatpush.msra.mxu0 0.0
  %422 = vmatpush.msra.mxu0 0.0
  %423 = vmatpush.msra.mxu0 0.0
  %424 = vmatpush.msra.mxu0 0.0
  %425 = vmatpush.msra.mxu0 0.0
  %426 = vmatpush.msra.mxu0 0.0
  %427 = vmatpush.msra.mxu0 0.0
  %428 = vmatpush.msra.mxu0 0.0
  %429 = vmatpush.msra.mxu0 %v15
  %430 = vmatpush.msra.mxu0 %v14
  %431 = vmatmul.f32.gmra.mxu0 %v413
  %v432 = vpop.f32.mrf.mxu0
  %v433 = vadd.f32 %v411, %v432
  %434 = vdwg.mxu0
  %vm435 = vcmask 15360
  %v437 = vsel %vm435, %v58, 0
  %v440 = vsel %vm435, %v59, 0
  %v443 = vsel %vm435, %v60, 0
  %v446 = vsel %vm435, %v61, 0
  %vm448 = vcmask 1041408
  %v450 = vsel %vm448, %v433, 0
  %452 = vmatpush.msra.mxu0 0.0
  %453 = vmatpush.msra.mxu0 0.0
  %454 = vmatpush.msra.mxu0 0.0
  %455 = vmatpush.msra.mxu0 0.0
  %456 = vmatpush.msra.mxu0 0.0
  %457 = vmatpush.msra.mxu0 0.0
  %458 = vmatpush.msra.mxu0 0.0
  %459 = vmatpush.msra.mxu0 0.0
  %460 = vmatpush.msra.mxu0 0.0
  %461 = vmatpush.msra.mxu0 0.0
  %462 = vmatpush.msra.mxu0 0.0
  %463 = vmatpush.msra.mxu0 0.0
  %464 = vmatpush.msra.mxu0 0.0
  %465 = vmatpush.msra.mxu0 0.0
  %466 = vmatpush.msra.mxu0 0.0
  %467 = vmatpush.msra.mxu0 %v450
  %468 = vmatmul.f32.gmra.mxu0 %v437
  %v469 = vpop.f32.mrf.mxu0
  %v470 = vadd.f32 0.0, %v469
  %471 = vmatmul.f32.gmra.mxu0 %v440
  %v472 = vpop.f32.mrf.mxu0
  %v473 = vadd.f32 0.0, %v472
  %474 = vmatmul.f32.gmra.mxu0 %v443
  %v475 = vpop.f32.mrf.mxu0
  %v476 = vadd.f32 0.0, %v475
  %477 = vmatmul.f32.gmra.mxu0 %v446
  %v478 = vpop.f32.mrf.mxu0
  %v479 = vadd.f32 0.0, %v478
  %480 = vdwg.mxu0
  %v481 = vadd.f32 %v309, %v470
  %v482 = vadd.f32 %v312, %v473
  %v483 = vadd.f32 %v315, %v476
  %v484 = vadd.f32 %v318, %v479
  %v485 = vtanh.pop %v481
  %v486 = vtanh.pop %v482
  %v487 = vtanh.pop %v483
  %v488 = vtanh.pop %v484
  %v489 = vperm.slane %v22, 0
  %v490 = vmul.f32 %v485, %v489
  %v491 = vmul.f32 %v486, %v489
  %v492 = vmul.f32 %v487, %v489
  %v493 = vmul.f32 %v488, %v489
  %v494 = vsel %vm218, %v490, 0.0
  %495 = vadd.xlane.f32.xlu0 %v494
  %v496 = vpop.xlane.xlu0 %495
  %v497 = vsel %vm218, %v491, 0.0
  %498 = vadd.xlane.f32.xlu0 %v497
  %v499 = vpop.xlane.xlu0 %498
  %v500 = vsel %vm218, %v492, 0.0
  %501 = vadd.xlane.f32.xlu0 %v500
  %v502 = vpop.xlane.xlu0 %501
  %v503 = vsel %vm218, %v493, 0.0
  %504 = vadd.xlane.f32.xlu0 %v503
  %v505 = vpop.xlane.xlu0 %504
  %v507 = vsel %vm218, %v62, 0
  %v510 = vsel %vm218, %v63, 0
  %v513 = vsel %vm218, %v64, 0
  %v516 = vsel %vm218, %v65, 0
  %518 = vmatpush.msra.mxu0 0.0
  %519 = vmatpush.msra.mxu0 0.0
  %520 = vmatpush.msra.mxu0 0.0
  %521 = vmatpush.msra.mxu0 0.0
  %522 = vmatpush.msra.mxu0 0.0
  %523 = vmatpush.msra.mxu0 0.0
  %524 = vmatpush.msra.mxu0 0.0
  %525 = vmatpush.msra.mxu0 0.0
  %526 = vmatpush.msra.mxu0 0.0
  %527 = vmatpush.msra.mxu0 0.0
  %528 = vmatpush.msra.mxu0 0.0
  %529 = vmatpush.msra.mxu0 0.0
  %530 = vmatpush.msra.mxu0 %v505
  %531 = vmatpush.msra.mxu0 %v502
  %532 = vmatpush.msra.mxu0 %v499
  %533 = vmatpush.msra.mxu0 %v496
  %534 = vmatmul.f32.gmra.mxu0 %v507
  %v535 = vpop.f32.mrf.mxu0
  %v536 = vadd.f32 0.0, %v535
  %537 = vmatmul.f32.gmra.mxu0 %v510
  %v538 = vpop.f32.mrf.mxu0
  %v539 = vadd.f32 0.0, %v538
  %540 = vmatmul.f32.gmra.mxu0 %v513
  %v541 = vpop.f32.mrf.mxu0
  %v542 = vadd.f32 0.0, %v541
  %543 = vmatmul.f32.gmra.mxu0 %v516
  %v544 = vpop.f32.mrf.mxu0
  %v545 = vadd.f32 0.0, %v544
  %546 = vdwg.mxu0
  %vm547 = vcmask 7168
  %v548 = vsel %vm547, %v536, -inf
  %v549 = vsel %vm547, %v539, -inf
  %v550 = vsel %vm547, %v542, -inf
  %v551 = vsel %vm547, %v545, -inf
  %v552 = vmax.f32 %v548, %v549
  %v553 = vmax.f32 %v550, %v551
  %v554 = vmax.f32 %v552, %v553
  %v555 = vrot.slane %v554, 4
  %v556 = vmax.f32 %v554, %v555
  %v557 = vrot.slane %v556, 2
  %v558 = vmax.f32 %v556, %v557
  %v559 = vrot.slane %v558, 1
  %v560 = vmax.f32 %v558, %v559
  %v561 = vsub.f32 %v536, %v560
  %v562 = vsub.f32 %v539, %v560
  %v563 = vsub.f32 %v542, %v560
  %v564 = vsub.f32 %v545, %v560
  %v565 = vmul.f32 %v561, 1.442695
  %v566 = vpow.pop %v565
  %v567 = vmul.f32 %v562, 1.442695
  %v568 = vpow.pop %v567
  %v569 = vmul.f32 %v563, 1.442695
  %v570 = vpow.pop %v569
  %v571 = vmul.f32 %v564, 1.442695
  %v572 = vpow.pop %v571
  %v574 = vsel %vm218, %v66, 0
  %576 = vmatpush.msra.mxu0 0.0
  %577 = vmatpush.msra.mxu0 0.0
  %578 = vmatpush.msra.mxu0 0.0
  %579 = vmatpush.msra.mxu0 0.0
  %580 = vmatpush.msra.mxu0 0.0
  %581 = vmatpush.msra.mxu0 0.0
  %582 = vmatpush.msra.mxu0 0.0
  %583 = vmatpush.msra.mxu0 0.0
  %584 = vmatpush.msra.mxu0 0.0
  %585 = vmatpush.msra.mxu0 0.0
  %586 = vmatpush.msra.mxu0 0.0
  %587 = vmatpush.msra.mxu0 0.0
  %588 = vmatpush.msra.mxu0 %v572
  %589 = vmatpush.msra.mxu0 %v570
  %590 = vmatpush.msra.mxu0 %v568
  %591 = vmatpush.msra.mxu0 %v566
  %592 = vmatmul.f32.gmra.mxu0 %v574
  %v593 = vpop.f32.mrf.mxu0
  %v594 = vadd.f32 0.0, %v593
  %595 = vdwg.mxu0
  %v596 = vld [vmem:[%s0] sm:$0xff]
  %v597 = vld [vmem:[%s0 + $0x8] sm:$0xff]
  %v598 = vld [vmem:[%s0 + $0x10] sm:$0xff]
  %v599 = vld [vmem:[%s0 + $0x18] sm:$0xff]
  %601 = vset.pattern.permute.xlu0 0
  %602 = vperm.xlu0 %601, %v566
  %v603 = vpop.permute.xlu0 %602
  %606 = vset.pattern.permute.xlu0 0
  %607 = vperm.xlu0 %606, %v568
  %v608 = vpop.permute.xlu0 %607
  %611 = vset.pattern.permute.xlu0 0
  %612 = vperm.xlu0 %611, %v570
  %v613 = vpop.permute.xlu0 %612
  %616 = vset.pattern.permute.xlu0 0
  %617 = vperm.xlu0 %616, %v572
  %v618 = vpop.permute.xlu0 %617
  %v620 = vmul.f32 %v603, %v596
  %v621 = vmul.f32 %v608, %v597
  %v622 = vmul.f32 %v613, %v598
  %v623 = vmul.f32 %v618, %v599
  %624 = vmatpush.msra.mxu0 0.0
  %625 = vmatpush.msra.mxu0 0.0
  %626 = vmatpush.msra.mxu0 0.0
  %627 = vmatpush.msra.mxu0 0.0
  %628 = vmatpush.msra.mxu0 0.0
  %629 = vmatpush.msra.mxu0 0.0
  %630 = vmatpush.msra.mxu0 0.0
  %631 = vmatpush.msra.mxu0 0.0
  %632 = vmatpush.msra.mxu0 0.0
  %633 = vmatpush.msra.mxu0 0.0
  %634 = vmatpush.msra.mxu0 0.0
  %635 = vmatpush.msra.mxu0 0.0
  %636 = vmatpush.msra.mxu0 %v623
  %637 = vmatpush.msra.mxu0 %v622
  %638 = vmatpush.msra.mxu0 %v621
  %639 = vmatpush.msra.mxu0 %v620
  %640 = vmatmul.f32.gmra.mxu0 %v574
  %v641 = vpop.f32.mrf.mxu0
  %v642 = vadd.f32 0.0, %v641
  %643 = vdwg.mxu0
  %v644 = vrcp.pop %v594
  %646 = vset.pattern.permute.xlu0 0
  %647 = vperm.xlu0 %646, %v644
  %v648 = vpop.permute.xlu0 %647
  %v650 = vmul.f32 %v642, %v648
  %vm651 = vcmask 254976
  %652 = vst.msk [vmem:[#allocation2] sm:$0x3] %vm651, %v650
  %653 = vmatpush.msra.mxu0 0.0
  %654 = vmatpush.msra.mxu0 0.0
  %655 = vmatpush.msra.mxu0 0.0
  %656 = vmatpush.msra.mxu0 0.0
  %657 = vmatpush.msra.mxu0 0.0
  %658 = vmatpush.msra.mxu0 0.0
  %659 = vmatpush.msra.mxu0 0.0
  %660 = vmatpush.msra.mxu0 0.0
  %661 = vmatpush.msra.mxu0 0.0
  %662 = vmatpush.msra.mxu0 0.0
  %663 = vmatpush.msra.mxu0 0.0
  %664 = vmatpush.msra.mxu0 0.0
  %665 = vmatpush.msra.mxu0 0.0
  %666 = vmatpush.msra.mxu0 0.0
  %667 = vmatpush.msra.mxu0 %v25
  %668 = vmatpush.msra.mxu0 %v24
  %669 = vmatmul.f32.gmra.mxu0 %v413
  %v670 = vpop.f32.mrf.mxu0
  %v671 = vadd.f32 0.0, %v670
  %672 = vdwg.mxu0
  %v673 = vadd.f32 %v406, %v671
  %v674 = vxor.u32 %v673, 2147483648
  %v675 = vmul.f32 %v674, 1.442695
  %v676 = vpow.pop %v675
  %v677 = vadd.f32 %v676, 1.0
  %v678 = vrcp.pop %v677
  %v679 = vmul.f32 %v677, %v678
  %v680 = vsub.f32 1.0, %v679
  %v681 = vmul.f32 %v678, %v680
  %v682 = vadd.f32 %v678, %v681
  %vm683 = vweird.f32 %v677
  %vm684 = vweird.f32 %v678
  %vm685 = vmor %vm683, %vm684
  %v686 = vsel %vm685, %v678, %v682
  %v687 = vand.u32 2147483647, %v677
  %vm688 = vcmp.eq.f32.partialorder %v687, 8.507059e+37
  %v689 = vand.u32 %v677, 2147483648
  %v690 = vor.u32 1.1754944e-38, %v689
  %v691 = vsel %vm688, %v690, %v686
  %v692 = vmul.f32 1.0, %v691
  %v693 = vtanh.pop %v673
  %695 = vrot.lane.b32.xlu0 %v192, 16
  %v696 = vpop.permute.xlu0 %695
  %v698 = vmul.f32 %v692, %v696
  %700 = vrot.lane.b32.xlu0 %v693, 96
  %v701 = vpop.permute.xlu0 %700
  %v703 = vmul.f32 %v692, %v701
  %705 = vrot.lane.b32.xlu0 %v703, 16
  %v706 = vpop.permute.xlu0 %705
  %v708 = vadd.f32 %v698, %v706
  %v709 = vtanh.pop %v708
  %711 = vrot.lane.b32.xlu0 %v709, 32
  %v712 = vpop.permute.xlu0 %711
  %v714 = vmul.f32 %v692, %v712
  %716 = vrot.lane.b32.xlu0 %v714, 80
  %v717 = vpop.permute.xlu0 %716
  %vm719 = vcmask 123904
  %720 = vst.msk [vmem:[#allocation3] sm:$0x3] %vm719, %v717
  %v721 = vsel %vm116, %v717, 0
  %723 = vmatpush.msra.mxu0 0.0
  %724 = vmatpush.msra.mxu0 0.0
  %725 = vmatpush.msra.mxu0 0.0
  %726 = vmatpush.msra.mxu0 0.0
  %727 = vmatpush.msra.mxu0 0.0
  %728 = vmatpush.msra.mxu0 0.0
  %729 = vmatpush.msra.mxu0 0.0
  %730 = vmatpush.msra.mxu0 0.0
  %731 = vmatpush.msra.mxu0 0.0
  %732 = vmatpush.msra.mxu0 0.0
  %733 = vmatpush.msra.mxu0 0.0
  %734 = vmatpush.msra.mxu0 0.0
  %735 = vmatpush.msra.mxu0 0.0
  %736 = vmatpush.msra.mxu0 0.0
  %737 = vmatpush.msra.mxu0 %v15
  %738 = vmatpush.msra.mxu0 %v14
  %739 = vmatmul.f32.gmra.mxu0 %v721
  %v740 = vpop.f32.mrf.mxu0
  %v741 = vadd.f32 %v411, %v740
  %742 = vdwg.mxu0
  %v744 = vsel %vm448, %v741, 0
  %746 = vmatpush.msra.mxu0 0.0
  %747 = vmatpush.msra.mxu0 0.0
  %748 = vmatpush.msra.mxu0 0.0
  %749 = vmatpush.msra.mxu0 0.0
  %750 = vmatpush.msra.mxu0 0.0
  %751 = vmatpush.msra.mxu0 0.0
  %752 = vmatpush.msra.mxu0 0.0
  %753 = vmatpush.msra.mxu0 0.0
  %754 = vmatpush.msra.mxu0 0.0
  %755 = vmatpush.msra.mxu0 0.0
  %756 = vmatpush.msra.mxu0 0.0
  %757 = vmatpush.msra.mxu0 0.0
  %758 = vmatpush.msra.mxu0 0.0
  %759 = vmatpush.msra.mxu0 0.0
  %760 = vmatpush.msra.mxu0 0.0
  %761 = vmatpush.msra.mxu0 %v744
  %762 = vmatmul.f32.gmra.mxu0 %v437
  %v763 = vpop.f32.mrf.mxu0
  %v764 = vadd.f32 0.0, %v763
  %765 = vmatmul.f32.gmra.mxu0 %v440
  %v766 = vpop.f32.mrf.mxu0
  %v767 = vadd.f32 0.0, %v766
  %768 = vmatmul.f32.gmra.mxu0 %v443
  %v769 = vpop.f32.mrf.mxu0
  %v770 = vadd.f32 0.0, %v769
  %771 = vmatmul.f32.gmra.mxu0 %v446
  %v772 = vpop.f32.mrf.mxu0
  %v773 = vadd.f32 0.0, %v772
  %774 = vdwg.mxu0
  %v775 = vadd.f32 %v321, %v764
  %v776 = vadd.f32 %v324, %v767
  %v777 = vadd.f32 %v327, %v770
  %v778 = vadd.f32 %v330, %v773
  %v779 = vtanh.pop %v775
  %v780 = vtanh.pop %v776
  %v781 = vtanh.pop %v777
  %v782 = vtanh.pop %v778
  %v783 = vmul.f32 %v779, %v489
  %v784 = vmul.f32 %v780, %v489
  %v785 = vmul.f32 %v781, %v489
  %v786 = vmul.f32 %v782, %v489
  %v787 = vsel %vm218, %v783, 0.0
  %788 = vadd.xlane.f32.xlu0 %v787
  %v789 = vpop.xlane.xlu0 %788
  %v790 = vsel %vm218, %v784, 0.0
  %791 = vadd.xlane.f32.xlu0 %v790
  %v792 = vpop.xlane.xlu0 %791
  %v793 = vsel %vm218, %v785, 0.0
  %794 = vadd.xlane.f32.xlu0 %v793
  %v795 = vpop.xlane.xlu0 %794
  %v796 = vsel %vm218, %v786, 0.0
  %797 = vadd.xlane.f32.xlu0 %v796
  %v798 = vpop.xlane.xlu0 %797
  %799 = vmatpush.msra.mxu0 0.0
  %800 = vmatpush.msra.mxu0 0.0
  %801 = vmatpush.msra.mxu0 0.0
  %802 = vmatpush.msra.mxu0 0.0
  %803 = vmatpush.msra.mxu0 0.0
  %804 = vmatpush.msra.mxu0 0.0
  %805 = vmatpush.msra.mxu0 0.0
  %806 = vmatpush.msra.mxu0 0.0
  %807 = vmatpush.msra.mxu0 0.0
  %808 = vmatpush.msra.mxu0 0.0
  %809 = vmatpush.msra.mxu0 0.0
  %810 = vmatpush.msra.mxu0 0.0
  %811 = vmatpush.msra.mxu0 %v798
  %812 = vmatpush.msra.mxu0 %v795
  %813 = vmatpush.msra.mxu0 %v792
  %814 = vmatpush.msra.mxu0 %v789
  %815 = vmatmul.f32.gmra.mxu0 %v507
  %v816 = vpop.f32.mrf.mxu0
  %v817 = vadd.f32 0.0, %v816
  %818 = vmatmul.f32.gmra.mxu0 %v510
  %v819 = vpop.f32.mrf.mxu0
  %v820 = vadd.f32 0.0, %v819
  %821 = vmatmul.f32.gmra.mxu0 %v513
  %v822 = vpop.f32.mrf.mxu0
  %v823 = vadd.f32 0.0, %v822
  %824 = vmatmul.f32.gmra.mxu0 %v516
  %v825 = vpop.f32.mrf.mxu0
  %v826 = vadd.f32 0.0, %v825
  %827 = vdwg.mxu0
  %v828 = vsel %vm547, %v817, -inf
  %v829 = vsel %vm547, %v820, -inf
  %v830 = vsel %vm547, %v823, -inf
  %v831 = vsel %vm547, %v826, -inf
  %v832 = vmax.f32 %v828, %v829
  %v833 = vmax.f32 %v830, %v831
  %v834 = vmax.f32 %v832, %v833
  %v835 = vrot.slane %v834, 4
  %v836 = vmax.f32 %v834, %v835
  %v837 = vrot.slane %v836, 2
  %v838 = vmax.f32 %v836, %v837
  %v839 = vrot.slane %v838, 1
  %v840 = vmax.f32 %v838, %v839
  %v841 = vsub.f32 %v817, %v840
  %v842 = vsub.f32 %v820, %v840
  %v843 = vsub.f32 %v823, %v840
  %v844 = vsub.f32 %v826, %v840
  %v845 = vmul.f32 %v841, 1.442695
  %v846 = vpow.pop %v845
  %v847 = vmul.f32 %v842, 1.442695
  %v848 = vpow.pop %v847
  %v849 = vmul.f32 %v843, 1.442695
  %v850 = vpow.pop %v849
  %v851 = vmul.f32 %v844, 1.442695
  %v852 = vpow.pop %v851
  %853 = vmatpush.msra.mxu0 0.0
  %854 = vmatpush.msra.mxu0 0.0
  %855 = vmatpush.msra.mxu0 0.0
  %856 = vmatpush.msra.mxu0 0.0
  %857 = vmatpush.msra.mxu0 0.0
  %858 = vmatpush.msra.mxu0 0.0
  %859 = vmatpush.msra.mxu0 0.0
  %860 = vmatpush.msra.mxu0 0.0
  %861 = vmatpush.msra.mxu0 0.0
  %862 = vmatpush.msra.mxu0 0.0
  %863 = vmatpush.msra.mxu0 0.0
  %864 = vmatpush.msra.mxu0 0.0
  %865 = vmatpush.msra.mxu0 %v852
  %866 = vmatpush.msra.mxu0 %v850
  %867 = vmatpush.msra.mxu0 %v848
  %868 = vmatpush.msra.mxu0 %v846
  %869 = vmatmul.f32.gmra.mxu0 %v574
  %v870 = vpop.f32.mrf.mxu0
  %v871 = vadd.f32 0.0, %v870
  %872 = vdwg.mxu0
  %v873 = vld [vmem:[%s0 + $0x20] sm:$0xff]
  %v874 = vld [vmem:[%s0 + $0x28] sm:$0xff]
  %v875 = vld [vmem:[%s0 + $0x30] sm:$0xff]
  %v876 = vld [vmem:[%s0 + $0x38] sm:$0xff]
  %878 = vset.pattern.permute.xlu0 0
  %879 = vperm.xlu0 %878, %v846
  %v880 = vpop.permute.xlu0 %879
  %883 = vset.pattern.permute.xlu0 0
  %884 = vperm.xlu0 %883, %v848
  %v885 = vpop.permute.xlu0 %884
  %888 = vset.pattern.permute.xlu0 0
  %889 = vperm.xlu0 %888, %v850
  %v890 = vpop.permute.xlu0 %889
  %893 = vset.pattern.permute.xlu0 0
  %894 = vperm.xlu0 %893, %v852
  %v895 = vpop.permute.xlu0 %894
  %v897 = vmul.f32 %v880, %v873
  %v898 = vmul.f32 %v885, %v874
  %v899 = vmul.f32 %v890, %v875
  %v900 = vmul.f32 %v895, %v876
  %901 = vmatpush.msra.mxu0 0.0
  %902 = vmatpush.msra.mxu0 0.0
  %903 = vmatpush.msra.mxu0 0.0
  %904 = vmatpush.msra.mxu0 0.0
  %905 = vmatpush.msra.mxu0 0.0
  %906 = vmatpush.msra.mxu0 0.0
  %907 = vmatpush.msra.mxu0 0.0
  %908 = vmatpush.msra.mxu0 0.0
  %909 = vmatpush.msra.mxu0 0.0
  %910 = vmatpush.msra.mxu0 0.0
  %911 = vmatpush.msra.mxu0 0.0
  %912 = vmatpush.msra.mxu0 0.0
  %913 = vmatpush.msra.mxu0 %v900
  %914 = vmatpush.msra.mxu0 %v899
  %915 = vmatpush.msra.mxu0 %v898
  %916 = vmatpush.msra.mxu0 %v897
  %917 = vmatmul.f32.gmra.mxu0 %v574
  %v918 = vpop.f32.mrf.mxu0
  %v919 = vadd.f32 0.0, %v918
  %920 = vdwg.mxu0
  %v921 = vrcp.pop %v871
  %923 = vset.pattern.permute.xlu0 0
  %924 = vperm.xlu0 %923, %v921
  %v925 = vpop.permute.xlu0 %924
  %v927 = vmul.f32 %v919, %v925
  %928 = vst.msk [vmem:[#allocation2 + $0x2] sm:$0x3] %vm651, %v927
  %929 = vmatpush.msra.mxu0 0.0
  %930 = vmatpush.msra.mxu0 0.0
  %931 = vmatpush.msra.mxu0 0.0
  %932 = vmatpush.msra.mxu0 0.0
  %933 = vmatpush.msra.mxu0 0.0
  %934 = vmatpush.msra.mxu0 0.0
  %935 = vmatpush.msra.mxu0 0.0
  %936 = vmatpush.msra.mxu0 0.0
  %937 = vmatpush.msra.mxu0 0.0
  %938 = vmatpush.msra.mxu0 0.0
  %939 = vmatpush.msra.mxu0 0.0
  %940 = vmatpush.msra.mxu0 0.0
  %941 = vmatpush.msra.mxu0 0.0
  %942 = vmatpush.msra.mxu0 0.0
  %943 = vmatpush.msra.mxu0 %v25
  %944 = vmatpush.msra.mxu0 %v24
  %945 = vmatmul.f32.gmra.mxu0 %v721
  %v946 = vpop.f32.mrf.mxu0
  %v947 = vadd.f32 0.0, %v946
  %948 = vdwg.mxu0
  %v949 = vadd.f32 %v406, %v947
  %v950 = vxor.u32 %v949, 2147483648
  %v951 = vmul.f32 %v950, 1.442695
  %v952 = vpow.pop %v951
  %v953 = vadd.f32 %v952, 1.0
  %v954 = vrcp.pop %v953
  %v955 = vmul.f32 %v953, %v954
  %v956 = vsub.f32 1.0, %v955
  %v957 = vmul.f32 %v954, %v956
  %v958 = vadd.f32 %v954, %v957
  %vm959 = vweird.f32 %v953
  %vm960 = vweird.f32 %v954
  %vm961 = vmor %vm959, %vm960
  %v962 = vsel %vm961, %v954, %v958
  %v963 = vand.u32 2147483647, %v953
  %vm964 = vcmp.eq.f32.partialorder %v963, 8.507059e+37
  %v965 = vand.u32 %v953, 2147483648
  %v966 = vor.u32 1.1754944e-38, %v965
  %v967 = vsel %vm964, %v966, %v962
  %v968 = vmul.f32 1.0, %v967
  %v969 = vtanh.pop %v949
  %v970 = vmul.f32 %v968, %v708
  %972 = vrot.lane.b32.xlu0 %v969, 96
  %v973 = vpop.permute.xlu0 %972
  %v975 = vmul.f32 %v968, %v973
  %977 = vrot.lane.b32.xlu0 %v975, 16
  %v978 = vpop.permute.xlu0 %977
  %v980 = vadd.f32 %v970, %v978
  %v981 = vtanh.pop %v980
  %983 = vrot.lane.b32.xlu0 %v981, 32
  %v984 = vpop.permute.xlu0 %983
  %v986 = vmul.f32 %v968, %v984
  %988 = vrot.lane.b32.xlu0 %v986, 80
  %v989 = vpop.permute.xlu0 %988
  %991 = vst.msk [vmem:[#allocation3 + $0x2] sm:$0x3] %vm719, %v989
  %v992 = vsel %vm116, %v989, 0
  %994 = vmatpush.msra.mxu0 0.0
  %995 = vmatpush.msra.mxu0 0.0
  %996 = vmatpush.msra.mxu0 0.0
  %997 = vmatpush.msra.mxu0 0.0
  %998 = vmatpush.msra.mxu0 0.0
  %999 = vmatpush.msra.mxu0 0.0
  %1000 = vmatpush.msra.mxu0 0.0
  %1001 = vmatpush.msra.mxu0 0.0
  %1002 = vmatpush.msra.mxu0 0.0
  %1003 = vmatpush.msra.mxu0 0.0
  %1004 = vmatpush.msra.mxu0 0.0
  %1005 = vmatpush.msra.mxu0 0.0
  %1006 = vmatpush.msra.mxu0 0.0
  %1007 = vmatpush.msra.mxu0 0.0
  %1008 = vmatpush.msra.mxu0 %v15
  %1009 = vmatpush.msra.mxu0 %v14
  %1010 = vmatmul.f32.gmra.mxu0 %v992
  %v1011 = vpop.f32.mrf.mxu0
  %v1012 = vadd.f32 %v411, %v1011
  %1013 = vdwg.mxu0
  %v1015 = vsel %vm448, %v1012, 0
  %1017 = vmatpush.msra.mxu0 0.0
  %1018 = vmatpush.msra.mxu0 0.0
  %1019 = vmatpush.msra.mxu0 0.0
  %1020 = vmatpush.msra.mxu0 0.0
  %1021 = vmatpush.msra.mxu0 0.0
  %1022 = vmatpush.msra.mxu0 0.0
  %1023 = vmatpush.msra.mxu0 0.0
  %1024 = vmatpush.msra.mxu0 0.0
  %1025 = vmatpush.msra.mxu0 0.0
  %1026 = vmatpush.msra.mxu0 0.0
  %1027 = vmatpush.msra.mxu0 0.0
  %1028 = vmatpush.msra.mxu0 0.0
  %1029 = vmatpush.msra.mxu0 0.0
  %1030 = vmatpush.msra.mxu0 0.0
  %1031 = vmatpush.msra.mxu0 0.0
  %1032 = vmatpush.msra.mxu0 %v1015
  %1033 = vmatmul.f32.gmra.mxu0 %v437
  %v1034 = vpop.f32.mrf.mxu0
  %v1035 = vadd.f32 0.0, %v1034
  %1036 = vmatmul.f32.gmra.mxu0 %v440
  %v1037 = vpop.f32.mrf.mxu0
  %v1038 = vadd.f32 0.0, %v1037
  %1039 = vmatmul.f32.gmra.mxu0 %v443
  %v1040 = vpop.f32.mrf.mxu0
  %v1041 = vadd.f32 0.0, %v1040
  %1042 = vmatmul.f32.gmra.mxu0 %v446
  %v1043 = vpop.f32.mrf.mxu0
  %v1044 = vadd.f32 0.0, %v1043
  %1045 = vdwg.mxu0
  %v1046 = vadd.f32 %v333, %v1035
  %v1047 = vadd.f32 %v336, %v1038
  %v1048 = vadd.f32 %v339, %v1041
  %v1049 = vadd.f32 %v342, %v1044
  %v1050 = vtanh.pop %v1046
  %v1051 = vtanh.pop %v1047
  %v1052 = vtanh.pop %v1048
  %v1053 = vtanh.pop %v1049
  %v1054 = vmul.f32 %v1050, %v489
  %v1055 = vmul.f32 %v1051, %v489
  %v1056 = vmul.f32 %v1052, %v489
  %v1057 = vmul.f32 %v1053, %v489
  %v1058 = vsel %vm218, %v1054, 0.0
  %1059 = vadd.xlane.f32.xlu0 %v1058
  %v1060 = vpop.xlane.xlu0 %1059
  %v1061 = vsel %vm218, %v1055, 0.0
  %1062 = vadd.xlane.f32.xlu0 %v1061
  %v1063 = vpop.xlane.xlu0 %1062
  %v1064 = vsel %vm218, %v1056, 0.0
  %1065 = vadd.xlane.f32.xlu0 %v1064
  %v1066 = vpop.xlane.xlu0 %1065
  %v1067 = vsel %vm218, %v1057, 0.0
  %1068 = vadd.xlane.f32.xlu0 %v1067
  %v1069 = vpop.xlane.xlu0 %1068
  %1070 = vmatpush.msra.mxu0 0.0
  %1071 = vmatpush.msra.mxu0 0.0
  %1072 = vmatpush.msra.mxu0 0.0
  %1073 = vmatpush.msra.mxu0 0.0
  %1074 = vmatpush.msra.mxu0 0.0
  %1075 = vmatpush.msra.mxu0 0.0
  %1076 = vmatpush.msra.mxu0 0.0
  %1077 = vmatpush.msra.mxu0 0.0
  %1078 = vmatpush.msra.mxu0 0.0
  %1079 = vmatpush.msra.mxu0 0.0
  %1080 = vmatpush.msra.mxu0 0.0
  %1081 = vmatpush.msra.mxu0 0.0
  %1082 = vmatpush.msra.mxu0 %v1069
  %1083 = vmatpush.msra.mxu0 %v1066
  %1084 = vmatpush.msra.mxu0 %v1063
  %1085 = vmatpush.msra.mxu0 %v1060
  %1086 = vmatmul.f32.gmra.mxu0 %v507
  %v1087 = vpop.f32.mrf.mxu0
  %v1088 = vadd.f32 0.0, %v1087
  %1089 = vmatmul.f32.gmra.mxu0 %v510
  %v1090 = vpop.f32.mrf.mxu0
  %v1091 = vadd.f32 0.0, %v1090
  %1092 = vmatmul.f32.gmra.mxu0 %v513
  %v1093 = vpop.f32.mrf.mxu0
  %v1094 = vadd.f32 0.0, %v1093
  %1095 = vmatmul.f32.gmra.mxu0 %v516
  %v1096 = vpop.f32.mrf.mxu0
  %v1097 = vadd.f32 0.0, %v1096
  %1098 = vdwg.mxu0
  %v1099 = vsel %vm547, %v1088, -inf
  %v1100 = vsel %vm547, %v1091, -inf
  %v1101 = vsel %vm547, %v1094, -inf
  %v1102 = vsel %vm547, %v1097, -inf
  %v1103 = vmax.f32 %v1099, %v1100
  %v1104 = vmax.f32 %v1101, %v1102
  %v1105 = vmax.f32 %v1103, %v1104
  %v1106 = vrot.slane %v1105, 4
  %v1107 = vmax.f32 %v1105, %v1106
  %v1108 = vrot.slane %v1107, 2
  %v1109 = vmax.f32 %v1107, %v1108
  %v1110 = vrot.slane %v1109, 1
  %v1111 = vmax.f32 %v1109, %v1110
  %v1112 = vsub.f32 %v1088, %v1111
  %v1113 = vsub.f32 %v1091, %v1111
  %v1114 = vsub.f32 %v1094, %v1111
  %v1115 = vsub.f32 %v1097, %v1111
  %v1116 = vmul.f32 %v1112, 1.442695
  %v1117 = vpow.pop %v1116
  %v1118 = vmul.f32 %v1113, 1.442695
  %v1119 = vpow.pop %v1118
  %v1120 = vmul.f32 %v1114, 1.442695
  %v1121 = vpow.pop %v1120
  %v1122 = vmul.f32 %v1115, 1.442695
  %v1123 = vpow.pop %v1122
  %1124 = vmatpush.msra.mxu0 0.0
  %1125 = vmatpush.msra.mxu0 0.0
  %1126 = vmatpush.msra.mxu0 0.0
  %1127 = vmatpush.msra.mxu0 0.0
  %1128 = vmatpush.msra.mxu0 0.0
  %1129 = vmatpush.msra.mxu0 0.0
  %1130 = vmatpush.msra.mxu0 0.0
  %1131 = vmatpush.msra.mxu0 0.0
  %1132 = vmatpush.msra.mxu0 0.0
  %1133 = vmatpush.msra.mxu0 0.0
  %1134 = vmatpush.msra.mxu0 0.0
  %1135 = vmatpush.msra.mxu0 0.0
  %1136 = vmatpush.msra.mxu0 %v1123
  %1137 = vmatpush.msra.mxu0 %v1121
  %1138 = vmatpush.msra.mxu0 %v1119
  %1139 = vmatpush.msra.mxu0 %v1117
  %1140 = vmatmul.f32.gmra.mxu0 %v574
  %v1141 = vpop.f32.mrf.mxu0
  %v1142 = vadd.f32 0.0, %v1141
  %1143 = vdwg.mxu0
  %v1144 = vld [vmem:[%s0 + $0x40] sm:$0xff]
  %v1145 = vld [vmem:[%s0 + $0x48] sm:$0xff]
  %v1146 = vld [vmem:[%s0 + $0x50] sm:$0xff]
  %v1147 = vld [vmem:[%s0 + $0x58] sm:$0xff]
  %1149 = vset.pattern.permute.xlu0 0
  %1150 = vperm.xlu0 %1149, %v1117
  %v1151 = vpop.permute.xlu0 %1150
  %1154 = vset.pattern.permute.xlu0 0
  %1155 = vperm.xlu0 %1154, %v1119
  %v1156 = vpop.permute.xlu0 %1155
  %1159 = vset.pattern.permute.xlu0 0
  %1160 = vperm.xlu0 %1159, %v1121
  %v1161 = vpop.permute.xlu0 %1160
  %1164 = vset.pattern.permute.xlu0 0
  %1165 = vperm.xlu0 %1164, %v1123
  %v1166 = vpop.permute.xlu0 %1165
  %v1168 = vmul.f32 %v1151, %v1144
  %v1169 = vmul.f32 %v1156, %v1145
  %v1170 = vmul.f32 %v1161, %v1146
  %v1171 = vmul.f32 %v1166, %v1147
  %1172 = vmatpush.msra.mxu0 0.0
  %1173 = vmatpush.msra.mxu0 0.0
  %1174 = vmatpush.msra.mxu0 0.0
  %1175 = vmatpush.msra.mxu0 0.0
  %1176 = vmatpush.msra.mxu0 0.0
  %1177 = vmatpush.msra.mxu0 0.0
  %1178 = vmatpush.msra.mxu0 0.0
  %1179 = vmatpush.msra.mxu0 0.0
  %1180 = vmatpush.msra.mxu0 0.0
  %1181 = vmatpush.msra.mxu0 0.0
  %1182 = vmatpush.msra.mxu0 0.0
  %1183 = vmatpush.msra.mxu0 0.0
  %1184 = vmatpush.msra.mxu0 %v1171
  %1185 = vmatpush.msra.mxu0 %v1170
  %1186 = vmatpush.msra.mxu0 %v1169
  %1187 = vmatpush.msra.mxu0 %v1168
  %1188 = vmatmul.f32.gmra.mxu0 %v574
  %v1189 = vpop.f32.mrf.mxu0
  %v1190 = vadd.f32 0.0, %v1189
  %1191 = vdwg.mxu0
  %v1192 = vrcp.pop %v1142
  %1194 = vset.pattern.permute.xlu0 0
  %1195 = vperm.xlu0 %1194, %v1192
  %v1196 = vpop.permute.xlu0 %1195
  %v1198 = vmul.f32 %v1190, %v1196
  %1199 = vst.msk [vmem:[#allocation2 + $0x4] sm:$0x3] %vm651, %v1198
  %1200 = vmatpush.msra.mxu0 0.0
  %1201 = vmatpush.msra.mxu0 0.0
  %1202 = vmatpush.msra.mxu0 0.0
  %1203 = vmatpush.msra.mxu0 0.0
  %1204 = vmatpush.msra.mxu0 0.0
  %1205 = vmatpush.msra.mxu0 0.0
  %1206 = vmatpush.msra.mxu0 0.0
  %1207 = vmatpush.msra.mxu0 0.0
  %1208 = vmatpush.msra.mxu0 0.0
  %1209 = vmatpush.msra.mxu0 0.0
  %1210 = vmatpush.msra.mxu0 0.0
  %1211 = vmatpush.msra.mxu0 0.0
  %1212 = vmatpush.msra.mxu0 0.0
  %1213 = vmatpush.msra.mxu0 0.0
  %1214 = vmatpush.msra.mxu0 %v25
  %1215 = vmatpush.msra.mxu0 %v24
  %1216 = vmatmul.f32.gmra.mxu0 %v992
  %v1217 = vpop.f32.mrf.mxu0
  %v1218 = vadd.f32 0.0, %v1217
  %1219 = vdwg.mxu0
  %v1220 = vadd.f32 %v406, %v1218
  %v1221 = vxor.u32 %v1220, 2147483648
  %v1222 = vmul.f32 %v1221, 1.442695
  %v1223 = vpow.pop %v1222
  %v1224 = vadd.f32 %v1223, 1.0
  %v1225 = vrcp.pop %v1224
  %v1226 = vmul.f32 %v1224, %v1225
  %v1227 = vsub.f32 1.0, %v1226
  %v1228 = vmul.f32 %v1225, %v1227
  %v1229 = vadd.f32 %v1225, %v1228
  %vm1230 = vweird.f32 %v1224
  %vm1231 = vweird.f32 %v1225
  %vm1232 = vmor %vm1230, %vm1231
  %v1233 = vsel %vm1232, %v1225, %v1229
  %v1234 = vand.u32 2147483647, %v1224
  %vm1235 = vcmp.eq.f32.partialorder %v1234, 8.507059e+37
  %v1236 = vand.u32 %v1224, 2147483648
  %v1237 = vor.u32 1.1754944e-38, %v1236
  %v1238 = vsel %vm1235, %v1237, %v1233
  %v1239 = vmul.f32 1.0, %v1238
  %v1240 = vtanh.pop %v1220
  %v1241 = vmul.f32 %v1239, %v980
  %1243 = vrot.lane.b32.xlu0 %v1240, 96
  %v1244 = vpop.permute.xlu0 %1243
  %v1246 = vmul.f32 %v1239, %v1244
  %1248 = vrot.lane.b32.xlu0 %v1246, 16
  %v1249 = vpop.permute.xlu0 %1248
  %v1251 = vadd.f32 %v1241, %v1249
  %v1252 = vtanh.pop %v1251
  %1254 = vrot.lane.b32.xlu0 %v1252, 32
  %v1255 = vpop.permute.xlu0 %1254
  %v1257 = vmul.f32 %v1239, %v1255
  %1259 = vrot.lane.b32.xlu0 %v1257, 80
  %v1260 = vpop.permute.xlu0 %1259
  %v1261 = vsel %vm116, %v1260, 0
  %1263 = vmatpush.msra.mxu0 0.0
  %1264 = vmatpush.msra.mxu0 0.0
  %1265 = vmatpush.msra.mxu0 0.0
  %1266 = vmatpush.msra.mxu0 0.0
  %1267 = vmatpush.msra.mxu0 0.0
  %1268 = vmatpush.msra.mxu0 0.0
  %1269 = vmatpush.msra.mxu0 0.0
  %1270 = vmatpush.msra.mxu0 0.0
  %1271 = vmatpush.msra.mxu0 0.0
  %1272 = vmatpush.msra.mxu0 0.0
  %1273 = vmatpush.msra.mxu0 0.0
  %1274 = vmatpush.msra.mxu0 0.0
  %1275 = vmatpush.msra.mxu0 0.0
  %1276 = vmatpush.msra.mxu0 0.0
  %1277 = vmatpush.msra.mxu0 %v25
  %1278 = vmatpush.msra.mxu0 %v24
  %1279 = vmatmul.f32.gmra.mxu0 %v1261
  %v1280 = vpop.f32.mrf.mxu0
  %v1281 = vadd.f32 0.0, %v1280
  %1282 = vdwg.mxu0
  %v1284 = vrot.slane %v1281, 6
  %v1286 = vadd.f32 %v406, %v1284
  %v1287 = vxor.u32 %v1286, 2147483648
  %v1288 = vmul.f32 %v1287, 1.442695
  %v1289 = vpow.pop %v1288
  %v1290 = vadd.f32 %v1289, 1.0
  %v1291 = vrcp.pop %v1290
  %v1292 = vmul.f32 %v1290, %v1291
  %v1293 = vsub.f32 1.0, %v1292
  %v1294 = vmul.f32 %v1291, %v1293
  %v1295 = vadd.f32 %v1291, %v1294
  %vm1296 = vweird.f32 %v1290
  %vm1297 = vweird.f32 %v1291
  %vm1298 = vmor %vm1296, %vm1297
  %v1299 = vsel %vm1298, %v1291, %v1295
  %v1300 = vand.u32 2147483647, %v1290
  %vm1301 = vcmp.eq.f32.partialorder %v1300, 8.507059e+37
  %v1302 = vand.u32 %v1290, 2147483648
  %v1303 = vor.u32 1.1754944e-38, %v1302
  %v1304 = vsel %vm1301, %v1303, %v1299
  %v1305 = vmul.f32 1.0, %v1304
  %v1306 = vtanh.pop %v1286
  %v1308 = vrot.slane %v1251, 6
  %v1310 = vmul.f32 %v1305, %v1308
  %1312 = vrot.lane.b32.xlu0 %v1306, 96
  %v1313 = vpop.permute.xlu0 %1312
  %v1315 = vmul.f32 %v1305, %v1313
  %1317 = vrot.lane.b32.xlu0 %v1315, 16
  %v1318 = vpop.permute.xlu0 %1317
  %v1320 = vadd.f32 %v1310, %v1318
  %v1321 = vtanh.pop %v1320
  %1323 = vrot.lane.b32.xlu0 %v1321, 32
  %v1324 = vpop.permute.xlu0 %1323
  %v1326 = vmul.f32 %v1305, %v1324
  %1328 = vrot.lane.b32.xlu0 %v1326, 80
  %v1329 = vpop.permute.xlu0 %1328
  %vm1331 = vcmask 125954
  %1332 = vst.msk [vmem:[#allocation3 + $0x2] sm:$0xc] %vm1331, %v1329
  %v1333 = vrot.slane %v1326, 2
  %1334 = vrot.lane.b32.xlu0 %v1333, 80
  %v1335 = vpop.permute.xlu0 %1334
  %v1336 = vsel %vm116, %v1335, 0
  %1338 = vmatpush.msra.mxu0 0.0
  %1339 = vmatpush.msra.mxu0 0.0
  %1340 = vmatpush.msra.mxu0 0.0
  %1341 = vmatpush.msra.mxu0 0.0
  %1342 = vmatpush.msra.mxu0 0.0
  %1343 = vmatpush.msra.mxu0 0.0
  %1344 = vmatpush.msra.mxu0 0.0
  %1345 = vmatpush.msra.mxu0 0.0
  %1346 = vmatpush.msra.mxu0 0.0
  %1347 = vmatpush.msra.mxu0 0.0
  %1348 = vmatpush.msra.mxu0 0.0
  %1349 = vmatpush.msra.mxu0 0.0
  %1350 = vmatpush.msra.mxu0 0.0
  %1351 = vmatpush.msra.mxu0 0.0
  %1352 = vmatpush.msra.mxu0 %v15
  %1353 = vmatpush.msra.mxu0 %v14
  %1354 = vmatmul.f32.gmra.mxu0 %v1336
  %v1355 = vpop.f32.mrf.mxu0
  %v1356 = vadd.f32 %v411, %v1355
  %1357 = vdwg.mxu0
  %v1359 = vsel %vm448, %v1356, 0
  %1361 = vmatpush.msra.mxu0 0.0
  %1362 = vmatpush.msra.mxu0 0.0
  %1363 = vmatpush.msra.mxu0 0.0
  %1364 = vmatpush.msra.mxu0 0.0
  %1365 = vmatpush.msra.mxu0 0.0
  %1366 = vmatpush.msra.mxu0 0.0
  %1367 = vmatpush.msra.mxu0 0.0
  %1368 = vmatpush.msra.mxu0 0.0
  %1369 = vmatpush.msra.mxu0 0.0
  %1370 = vmatpush.msra.mxu0 0.0
  %1371 = vmatpush.msra.mxu0 0.0
  %1372 = vmatpush.msra.mxu0 0.0
  %1373 = vmatpush.msra.mxu0 0.0
  %1374 = vmatpush.msra.mxu0 0.0
  %1375 = vmatpush.msra.mxu0 0.0
  %1376 = vmatpush.msra.mxu0 %v1359
  %1377 = vmatmul.f32.gmra.mxu0 %v437
  %v1378 = vpop.f32.mrf.mxu0
  %v1379 = vadd.f32 0.0, %v1378
  %1380 = vmatmul.f32.gmra.mxu0 %v440
  %v1381 = vpop.f32.mrf.mxu0
  %v1382 = vadd.f32 0.0, %v1381
  %1383 = vmatmul.f32.gmra.mxu0 %v443
  %v1384 = vpop.f32.mrf.mxu0
  %v1385 = vadd.f32 0.0, %v1384
  %1386 = vmatmul.f32.gmra.mxu0 %v446
  %v1387 = vpop.f32.mrf.mxu0
  %v1388 = vadd.f32 0.0, %v1387
  %1389 = vdwg.mxu0
  %v1390 = vadd.f32 %v345, %v1379
  %v1391 = vadd.f32 %v348, %v1382
  %v1392 = vadd.f32 %v351, %v1385
  %v1393 = vadd.f32 %v354, %v1388
  %v1394 = vtanh.pop %v1390
  %v1395 = vtanh.pop %v1391
  %v1396 = vtanh.pop %v1392
  %v1397 = vtanh.pop %v1393
  %v1398 = vmul.f32 %v1394, %v489
  %v1399 = vmul.f32 %v1395, %v489
  %v1400 = vmul.f32 %v1396, %v489
  %v1401 = vmul.f32 %v1397, %v489
  %v1402 = vsel %vm218, %v1398, 0.0
  %1403 = vadd.xlane.f32.xlu0 %v1402
  %v1404 = vpop.xlane.xlu0 %1403
  %v1405 = vsel %vm218, %v1399, 0.0
  %1406 = vadd.xlane.f32.xlu0 %v1405
  %v1407 = vpop.xlane.xlu0 %1406
  %v1408 = vsel %vm218, %v1400, 0.0
  %1409 = vadd.xlane.f32.xlu0 %v1408
  %v1410 = vpop.xlane.xlu0 %1409
  %v1411 = vsel %vm218, %v1401, 0.0
  %1412 = vadd.xlane.f32.xlu0 %v1411
  %v1413 = vpop.xlane.xlu0 %1412
  %1414 = vmatpush.msra.mxu0 0.0
  %1415 = vmatpush.msra.mxu0 0.0
  %1416 = vmatpush.msra.mxu0 0.0
  %1417 = vmatpush.msra.mxu0 0.0
  %1418 = vmatpush.msra.mxu0 0.0
  %1419 = vmatpush.msra.mxu0 0.0
  %1420 = vmatpush.msra.mxu0 0.0
  %1421 = vmatpush.msra.mxu0 0.0
  %1422 = vmatpush.msra.mxu0 0.0
  %1423 = vmatpush.msra.mxu0 0.0
  %1424 = vmatpush.msra.mxu0 0.0
  %1425 = vmatpush.msra.mxu0 0.0
  %1426 = vmatpush.msra.mxu0 %v1413
  %1427 = vmatpush.msra.mxu0 %v1410
  %1428 = vmatpush.msra.mxu0 %v1407
  %1429 = vmatpush.msra.mxu0 %v1404
  %1430 = vmatmul.f32.gmra.mxu0 %v507
  %v1431 = vpop.f32.mrf.mxu0
  %v1432 = vadd.f32 0.0, %v1431
  %1433 = vmatmul.f32.gmra.mxu0 %v510
  %v1434 = vpop.f32.mrf.mxu0
  %v1435 = vadd.f32 0.0, %v1434
  %1436 = vmatmul.f32.gmra.mxu0 %v513
  %v1437 = vpop.f32.mrf.mxu0
  %v1438 = vadd.f32 0.0, %v1437
  %1439 = vmatmul.f32.gmra.mxu0 %v516
  %v1440 = vpop.f32.mrf.mxu0
  %v1441 = vadd.f32 0.0, %v1440
  %1442 = vdwg.mxu0
  %v1443 = vsel %vm547, %v1432, -inf
  %v1444 = vsel %vm547, %v1435, -inf
  %v1445 = vsel %vm547, %v1438, -inf
  %v1446 = vsel %vm547, %v1441, -inf
  %v1447 = vmax.f32 %v1443, %v1444
  %v1448 = vmax.f32 %v1445, %v1446
  %v1449 = vmax.f32 %v1447, %v1448
  %v1450 = vrot.slane %v1449, 4
  %v1451 = vmax.f32 %v1449, %v1450
  %v1452 = vrot.slane %v1451, 2
  %v1453 = vmax.f32 %v1451, %v1452
  %v1454 = vrot.slane %v1453, 1
  %v1455 = vmax.f32 %v1453, %v1454
  %v1456 = vsub.f32 %v1432, %v1455
  %v1457 = vsub.f32 %v1435, %v1455
  %v1458 = vsub.f32 %v1438, %v1455
  %v1459 = vsub.f32 %v1441, %v1455
  %v1460 = vmul.f32 %v1456, 1.442695
  %v1461 = vpow.pop %v1460
  %v1462 = vmul.f32 %v1457, 1.442695
  %v1463 = vpow.pop %v1462
  %v1464 = vmul.f32 %v1458, 1.442695
  %v1465 = vpow.pop %v1464
  %v1466 = vmul.f32 %v1459, 1.442695
  %v1467 = vpow.pop %v1466
  %1468 = vmatpush.msra.mxu0 0.0
  %1469 = vmatpush.msra.mxu0 0.0
  %1470 = vmatpush.msra.mxu0 0.0
  %1471 = vmatpush.msra.mxu0 0.0
  %1472 = vmatpush.msra.mxu0 0.0
  %1473 = vmatpush.msra.mxu0 0.0
  %1474 = vmatpush.msra.mxu0 0.0
  %1475 = vmatpush.msra.mxu0 0.0
  %1476 = vmatpush.msra.mxu0 0.0
  %1477 = vmatpush.msra.mxu0 0.0
  %1478 = vmatpush.msra.mxu0 0.0
  %1479 = vmatpush.msra.mxu0 0.0
  %1480 = vmatpush.msra.mxu0 %v1467
  %1481 = vmatpush.msra.mxu0 %v1465
  %1482 = vmatpush.msra.mxu0 %v1463
  %1483 = vmatpush.msra.mxu0 %v1461
  %1484 = vmatmul.f32.gmra.mxu0 %v574
  %v1485 = vpop.f32.mrf.mxu0
  %v1486 = vadd.f32 0.0, %v1485
  %1487 = vdwg.mxu0
  %v1488 = vld [vmem:[%s0 + $0x60] sm:$0xff]
  %v1489 = vld [vmem:[%s0 + $0x68] sm:$0xff]
  %v1490 = vld [vmem:[%s0 + $0x70] sm:$0xff]
  %v1491 = vld [vmem:[%s0 + $0x78] sm:$0xff]
  %1493 = vset.pattern.permute.xlu0 0
  %1494 = vperm.xlu0 %1493, %v1461
  %v1495 = vpop.permute.xlu0 %1494
  %1498 = vset.pattern.permute.xlu0 0
  %1499 = vperm.xlu0 %1498, %v1463
  %v1500 = vpop.permute.xlu0 %1499
  %1503 = vset.pattern.permute.xlu0 0
  %1504 = vperm.xlu0 %1503, %v1465
  %v1505 = vpop.permute.xlu0 %1504
  %1508 = vset.pattern.permute.xlu0 0
  %1509 = vperm.xlu0 %1508, %v1467
  %v1510 = vpop.permute.xlu0 %1509
  %v1512 = vmul.f32 %v1495, %v1488
  %v1513 = vmul.f32 %v1500, %v1489
  %v1514 = vmul.f32 %v1505, %v1490
  %v1515 = vmul.f32 %v1510, %v1491
  %1516 = vmatpush.msra.mxu0 0.0
  %1517 = vmatpush.msra.mxu0 0.0
  %1518 = vmatpush.msra.mxu0 0.0
  %1519 = vmatpush.msra.mxu0 0.0
  %1520 = vmatpush.msra.mxu0 0.0
  %1521 = vmatpush.msra.mxu0 0.0
  %1522 = vmatpush.msra.mxu0 0.0
  %1523 = vmatpush.msra.mxu0 0.0
  %1524 = vmatpush.msra.mxu0 0.0
  %1525 = vmatpush.msra.mxu0 0.0
  %1526 = vmatpush.msra.mxu0 0.0
  %1527 = vmatpush.msra.mxu0 0.0
  %1528 = vmatpush.msra.mxu0 %v1515
  %1529 = vmatpush.msra.mxu0 %v1514
  %1530 = vmatpush.msra.mxu0 %v1513
  %1531 = vmatpush.msra.mxu0 %v1512
  %1532 = vmatmul.f32.gmra.mxu0 %v574
  %v1533 = vpop.f32.mrf.mxu0
  %v1534 = vadd.f32 0.0, %v1533
  %1535 = vdwg.mxu0
  %v1536 = vrcp.pop %v1486
  %1538 = vset.pattern.permute.xlu0 0
  %1539 = vperm.xlu0 %1538, %v1536
  %v1540 = vpop.permute.xlu0 %1539
  %v1542 = vmul.f32 %v1534, %v1540
  %1543 = vst.msk [vmem:[#allocation2 + $0x6] sm:$0x3] %vm651, %v1542
  %1544 = vmatpush.msra.mxu0 0.0
  %1545 = vmatpush.msra.mxu0 0.0
  %1546 = vmatpush.msra.mxu0 0.0
  %1547 = vmatpush.msra.mxu0 0.0
  %1548 = vmatpush.msra.mxu0 0.0
  %1549 = vmatpush.msra.mxu0 0.0
  %1550 = vmatpush.msra.mxu0 0.0
  %1551 = vmatpush.msra.mxu0 0.0
  %1552 = vmatpush.msra.mxu0 0.0
  %1553 = vmatpush.msra.mxu0 0.0
  %1554 = vmatpush.msra.mxu0 0.0
  %1555 = vmatpush.msra.mxu0 0.0
  %1556 = vmatpush.msra.mxu0 0.0
  %1557 = vmatpush.msra.mxu0 0.0
  %1558 = vmatpush.msra.mxu0 %v25
  %1559 = vmatpush.msra.mxu0 %v24
  %1560 = vmatmul.f32.gmra.mxu0 %v1336
  %v1561 = vpop.f32.mrf.mxu0
  %v1562 = vadd.f32 0.0, %v1561
  %1563 = vdwg.mxu0
  %v1564 = vadd.f32 %v406, %v1562
  %v1565 = vxor.u32 %v1564, 2147483648
  %v1566 = vmul.f32 %v1565, 1.442695
  %v1567 = vpow.pop %v1566
  %v1568 = vadd.f32 %v1567, 1.0
  %v1569 = vrcp.pop %v1568
  %v1570 = vmul.f32 %v1568, %v1569
  %v1571 = vsub.f32 1.0, %v1570
  %v1572 = vmul.f32 %v1569, %v1571
  %v1573 = vadd.f32 %v1569, %v1572
  %vm1574 = vweird.f32 %v1568
  %vm1575 = vweird.f32 %v1569
  %vm1576 = vmor %vm1574, %vm1575
  %v1577 = vsel %vm1576, %v1569, %v1573
  %v1578 = vand.u32 2147483647, %v1568
  %vm1579 = vcmp.eq.f32.partialorder %v1578, 8.507059e+37
  %v1580 = vand.u32 %v1568, 2147483648
  %v1581 = vor.u32 1.1754944e-38, %v1580
  %v1582 = vsel %vm1579, %v1581, %v1577
  %v1583 = vmul.f32 1.0, %v1582
  %v1584 = vtanh.pop %v1564
  %v1586 = vrot.slane %v1320, 2
  %v1588 = vmul.f32 %v1583, %v1586
  %1590 = vrot.lane.b32.xlu0 %v1584, 96
  %v1591 = vpop.permute.xlu0 %1590
  %v1593 = vmul.f32 %v1583, %v1591
  %1595 = vrot.lane.b32.xlu0 %v1593, 16
  %v1596 = vpop.permute.xlu0 %1595
  %v1598 = vadd.f32 %v1588, %v1596
  %v1599 = vtanh.pop %v1598
  %1601 = vrot.lane.b32.xlu0 %v1599, 32
  %v1602 = vpop.permute.xlu0 %1601
  %v1604 = vmul.f32 %v1583, %v1602
  %1606 = vrot.lane.b32.xlu0 %v1604, 80
  %v1607 = vpop.permute.xlu0 %1606
  %v1608 = vsel %vm116, %v1607, 0
  %1610 = vmatpush.msra.mxu0 0.0
  %1611 = vmatpush.msra.mxu0 0.0
  %1612 = vmatpush.msra.mxu0 0.0
  %1613 = vmatpush.msra.mxu0 0.0
  %1614 = vmatpush.msra.mxu0 0.0
  %1615 = vmatpush.msra.mxu0 0.0
  %1616 = vmatpush.msra.mxu0 0.0
  %1617 = vmatpush.msra.mxu0 0.0
  %1618 = vmatpush.msra.mxu0 0.0
  %1619 = vmatpush.msra.mxu0 0.0
  %1620 = vmatpush.msra.mxu0 0.0
  %1621 = vmatpush.msra.mxu0 0.0
  %1622 = vmatpush.msra.mxu0 0.0
  %1623 = vmatpush.msra.mxu0 0.0
  %1624 = vmatpush.msra.mxu0 %v25
  %1625 = vmatpush.msra.mxu0 %v24
  %1626 = vmatmul.f32.gmra.mxu0 %v1608
  %v1627 = vpop.f32.mrf.mxu0
  %v1628 = vadd.f32 0.0, %v1627
  %1629 = vdwg.mxu0
  %v1631 = vrot.slane %v1628, 6
  %v1633 = vadd.f32 %v406, %v1631
  %v1634 = vxor.u32 %v1633, 2147483648
  %v1635 = vmul.f32 %v1634, 1.442695
  %v1636 = vpow.pop %v1635
  %v1637 = vadd.f32 %v1636, 1.0
  %v1638 = vrcp.pop %v1637
  %v1639 = vmul.f32 %v1637, %v1638
  %v1640 = vsub.f32 1.0, %v1639
  %v1641 = vmul.f32 %v1638, %v1640
  %v1642 = vadd.f32 %v1638, %v1641
  %vm1643 = vweird.f32 %v1637
  %vm1644 = vweird.f32 %v1638
  %vm1645 = vmor %vm1643, %vm1644
  %v1646 = vsel %vm1645, %v1638, %v1642
  %v1647 = vand.u32 2147483647, %v1637
  %vm1648 = vcmp.eq.f32.partialorder %v1647, 8.507059e+37
  %v1649 = vand.u32 %v1637, 2147483648
  %v1650 = vor.u32 1.1754944e-38, %v1649
  %v1651 = vsel %vm1648, %v1650, %v1646
  %v1652 = vmul.f32 1.0, %v1651
  %v1653 = vtanh.pop %v1633
  %v1655 = vrot.slane %v1598, 6
  %v1657 = vmul.f32 %v1652, %v1655
  %1659 = vrot.lane.b32.xlu0 %v1653, 96
  %v1660 = vpop.permute.xlu0 %1659
  %v1662 = vmul.f32 %v1652, %v1660
  %1664 = vrot.lane.b32.xlu0 %v1662, 16
  %v1665 = vpop.permute.xlu0 %1664
  %v1667 = vadd.f32 %v1657, %v1665
  %v1668 = vtanh.pop %v1667
  %1670 = vrot.lane.b32.xlu0 %v1668, 32
  %v1671 = vpop.permute.xlu0 %1670
  %v1673 = vmul.f32 %v1652, %v1671
  %v1675 = vrot.slane %v1673, 2
  %1676 = vrot.lane.b32.xlu0 %v1675, 80
  %v1677 = vpop.permute.xlu0 %1676
  %v1678 = vsel %vm116, %v1677, 0
  %1680 = vmatpush.msra.mxu0 0.0
  %1681 = vmatpush.msra.mxu0 0.0
  %1682 = vmatpush.msra.mxu0 0.0
  %1683 = vmatpush.msra.mxu0 0.0
  %1684 = vmatpush.msra.mxu0 0.0
  %1685 = vmatpush.msra.mxu0 0.0
  %1686 = vmatpush.msra.mxu0 0.0
  %1687 = vmatpush.msra.mxu0 0.0
  %1688 = vmatpush.msra.mxu0 0.0
  %1689 = vmatpush.msra.mxu0 0.0
  %1690 = vmatpush.msra.mxu0 0.0
  %1691 = vmatpush.msra.mxu0 0.0
  %1692 = vmatpush.msra.mxu0 0.0
  %1693 = vmatpush.msra.mxu0 0.0
  %1694 = vmatpush.msra.mxu0 %v25
  %1695 = vmatpush.msra.mxu0 %v24
  %1696 = vmatmul.f32.gmra.mxu0 %v1678
  %v1697 = vpop.f32.mrf.mxu0
  %v1698 = vadd.f32 0.0, %v1697
  %1699 = vdwg.mxu0
  %v1701 = vrot.slane %v1698, 4
  %v1703 = vadd.f32 %v406, %v1701
  %v1704 = vxor.u32 %v1703, 2147483648
  %v1705 = vmul.f32 %v1704, 1.442695
  %v1706 = vpow.pop %v1705
  %v1707 = vadd.f32 %v1706, 1.0
  %v1708 = vrcp.pop %v1707
  %v1709 = vmul.f32 %v1707, %v1708
  %v1710 = vsub.f32 1.0, %v1709
  %v1711 = vmul.f32 %v1708, %v1710
  %v1712 = vadd.f32 %v1708, %v1711
  %vm1713 = vweird.f32 %v1707
  %vm1714 = vweird.f32 %v1708
  %vm1715 = vmor %vm1713, %vm1714
  %v1716 = vsel %vm1715, %v1708, %v1712
  %v1717 = vand.u32 2147483647, %v1707
  %vm1718 = vcmp.eq.f32.partialorder %v1717, 8.507059e+37
  %v1719 = vand.u32 %v1707, 2147483648
  %v1720 = vor.u32 1.1754944e-38, %v1719
  %v1721 = vsel %vm1718, %v1720, %v1716
  %v1722 = vmul.f32 1.0, %v1721
  %v1723 = vtanh.pop %v1703
  %v1725 = vrot.slane %v1667, 6
  %v1727 = vmul.f32 %v1722, %v1725
  %1729 = vrot.lane.b32.xlu0 %v1723, 96
  %v1730 = vpop.permute.xlu0 %1729
  %v1732 = vmul.f32 %v1722, %v1730
  %1734 = vrot.lane.b32.xlu0 %v1732, 16
  %v1735 = vpop.permute.xlu0 %1734
  %v1737 = vadd.f32 %v1727, %v1735
  %v1738 = vtanh.pop %v1737
  %1740 = vrot.lane.b32.xlu0 %v1738, 32
  %v1741 = vpop.permute.xlu0 %1740
  %v1743 = vmul.f32 %v1722, %v1741
  %1745 = vrot.lane.b32.xlu0 %v1743, 80
  %v1746 = vpop.permute.xlu0 %1745
  %vm1748 = vcmask 128004
  %1749 = vst.msk [vmem:[#allocation3 + $0x2] sm:$0x30] %vm1748, %v1746
  %v1750 = vrot.slane %v1743, 4
  %1751 = vrot.lane.b32.xlu0 %v1750, 80
  %v1752 = vpop.permute.xlu0 %1751
  %v1753 = vsel %vm116, %v1752, 0
  %1755 = vmatpush.msra.mxu0 0.0
  %1756 = vmatpush.msra.mxu0 0.0
  %1757 = vmatpush.msra.mxu0 0.0
  %1758 = vmatpush.msra.mxu0 0.0
  %1759 = vmatpush.msra.mxu0 0.0
  %1760 = vmatpush.msra.mxu0 0.0
  %1761 = vmatpush.msra.mxu0 0.0
  %1762 = vmatpush.msra.mxu0 0.0
  %1763 = vmatpush.msra.mxu0 0.0
  %1764 = vmatpush.msra.mxu0 0.0
  %1765 = vmatpush.msra.mxu0 0.0
  %1766 = vmatpush.msra.mxu0 0.0
  %1767 = vmatpush.msra.mxu0 0.0
  %1768 = vmatpush.msra.mxu0 0.0
  %1769 = vmatpush.msra.mxu0 %v15
  %1770 = vmatpush.msra.mxu0 %v14
  %1771 = vmatmul.f32.gmra.mxu0 %v1753
  %v1772 = vpop.f32.mrf.mxu0
  %v1773 = vadd.f32 %v411, %v1772
  %1774 = vdwg.mxu0
  %v1776 = vsel %vm448, %v1773, 0
  %1778 = vmatpush.msra.mxu0 0.0
  %1779 = vmatpush.msra.mxu0 0.0
  %1780 = vmatpush.msra.mxu0 0.0
  %1781 = vmatpush.msra.mxu0 0.0
  %1782 = vmatpush.msra.mxu0 0.0
  %1783 = vmatpush.msra.mxu0 0.0
  %1784 = vmatpush.msra.mxu0 0.0
  %1785 = vmatpush.msra.mxu0 0.0
  %1786 = vmatpush.msra.mxu0 0.0
  %1787 = vmatpush.msra.mxu0 0.0
  %1788 = vmatpush.msra.mxu0 0.0
  %1789 = vmatpush.msra.mxu0 0.0
  %1790 = vmatpush.msra.mxu0 0.0
  %1791 = vmatpush.msra.mxu0 0.0
  %1792 = vmatpush.msra.mxu0 0.0
  %1793 = vmatpush.msra.mxu0 %v1776
  %1794 = vmatmul.f32.gmra.mxu0 %v437
  %v1795 = vpop.f32.mrf.mxu0
  %v1796 = vadd.f32 0.0, %v1795
  %1797 = vmatmul.f32.gmra.mxu0 %v440
  %v1798 = vpop.f32.mrf.mxu0
  %v1799 = vadd.f32 0.0, %v1798
  %1800 = vmatmul.f32.gmra.mxu0 %v443
  %v1801 = vpop.f32.mrf.mxu0
  %v1802 = vadd.f32 0.0, %v1801
  %1803 = vmatmul.f32.gmra.mxu0 %v446
  %v1804 = vpop.f32.mrf.mxu0
  %v1805 = vadd.f32 0.0, %v1804
  %1806 = vdwg.mxu0
  %v1807 = vadd.f32 %v357, %v1796
  %v1808 = vadd.f32 %v360, %v1799
  %v1809 = vadd.f32 %v363, %v1802
  %v1810 = vadd.f32 %v366, %v1805
  %v1811 = vtanh.pop %v1807
  %v1812 = vtanh.pop %v1808
  %v1813 = vtanh.pop %v1809
  %v1814 = vtanh.pop %v1810
  %v1815 = vmul.f32 %v1811, %v489
  %v1816 = vmul.f32 %v1812, %v489
  %v1817 = vmul.f32 %v1813, %v489
  %v1818 = vmul.f32 %v1814, %v489
  %v1819 = vsel %vm218, %v1815, 0.0
  %1820 = vadd.xlane.f32.xlu0 %v1819
  %v1821 = vpop.xlane.xlu0 %1820
  %v1822 = vsel %vm218, %v1816, 0.0
  %1823 = vadd.xlane.f32.xlu0 %v1822
  %v1824 = vpop.xlane.xlu0 %1823
  %v1825 = vsel %vm218, %v1817, 0.0
  %1826 = vadd.xlane.f32.xlu0 %v1825
  %v1827 = vpop.xlane.xlu0 %1826
  %v1828 = vsel %vm218, %v1818, 0.0
  %1829 = vadd.xlane.f32.xlu0 %v1828
  %v1830 = vpop.xlane.xlu0 %1829
  %1831 = vmatpush.msra.mxu0 0.0
  %1832 = vmatpush.msra.mxu0 0.0
  %1833 = vmatpush.msra.mxu0 0.0
  %1834 = vmatpush.msra.mxu0 0.0
  %1835 = vmatpush.msra.mxu0 0.0
  %1836 = vmatpush.msra.mxu0 0.0
  %1837 = vmatpush.msra.mxu0 0.0
  %1838 = vmatpush.msra.mxu0 0.0
  %1839 = vmatpush.msra.mxu0 0.0
  %1840 = vmatpush.msra.mxu0 0.0
  %1841 = vmatpush.msra.mxu0 0.0
  %1842 = vmatpush.msra.mxu0 0.0
  %1843 = vmatpush.msra.mxu0 %v1830
  %1844 = vmatpush.msra.mxu0 %v1827
  %1845 = vmatpush.msra.mxu0 %v1824
  %1846 = vmatpush.msra.mxu0 %v1821
  %1847 = vmatmul.f32.gmra.mxu0 %v507
  %v1848 = vpop.f32.mrf.mxu0
  %v1849 = vadd.f32 0.0, %v1848
  %1850 = vmatmul.f32.gmra.mxu0 %v510
  %v1851 = vpop.f32.mrf.mxu0
  %v1852 = vadd.f32 0.0, %v1851
  %1853 = vmatmul.f32.gmra.mxu0 %v513
  %v1854 = vpop.f32.mrf.mxu0
  %v1855 = vadd.f32 0.0, %v1854
  %1856 = vmatmul.f32.gmra.mxu0 %v516
  %v1857 = vpop.f32.mrf.mxu0
  %v1858 = vadd.f32 0.0, %v1857
  %1859 = vdwg.mxu0
  %v1860 = vsel %vm547, %v1849, -inf
  %v1861 = vsel %vm547, %v1852, -inf
  %v1862 = vsel %vm547, %v1855, -inf
  %v1863 = vsel %vm547, %v1858, -inf
  %v1864 = vmax.f32 %v1860, %v1861
  %v1865 = vmax.f32 %v1862, %v1863
  %v1866 = vmax.f32 %v1864, %v1865
  %v1867 = vrot.slane %v1866, 4
  %v1868 = vmax.f32 %v1866, %v1867
  %v1869 = vrot.slane %v1868, 2
  %v1870 = vmax.f32 %v1868, %v1869
  %v1871 = vrot.slane %v1870, 1
  %v1872 = vmax.f32 %v1870, %v1871
  %v1873 = vsub.f32 %v1849, %v1872
  %v1874 = vsub.f32 %v1852, %v1872
  %v1875 = vsub.f32 %v1855, %v1872
  %v1876 = vsub.f32 %v1858, %v1872
  %v1877 = vmul.f32 %v1873, 1.442695
  %v1878 = vpow.pop %v1877
  %v1879 = vmul.f32 %v1874, 1.442695
  %v1880 = vpow.pop %v1879
  %v1881 = vmul.f32 %v1875, 1.442695
  %v1882 = vpow.pop %v1881
  %v1883 = vmul.f32 %v1876, 1.442695
  %v1884 = vpow.pop %v1883
  %1885 = vmatpush.msra.mxu0 0.0
  %1886 = vmatpush.msra.mxu0 0.0
  %1887 = vmatpush.msra.mxu0 0.0
  %1888 = vmatpush.msra.mxu0 0.0
  %1889 = vmatpush.msra.mxu0 0.0
  %1890 = vmatpush.msra.mxu0 0.0
  %1891 = vmatpush.msra.mxu0 0.0
  %1892 = vmatpush.msra.mxu0 0.0
  %1893 = vmatpush.msra.mxu0 0.0
  %1894 = vmatpush.msra.mxu0 0.0
  %1895 = vmatpush.msra.mxu0 0.0
  %1896 = vmatpush.msra.mxu0 0.0
  %1897 = vmatpush.msra.mxu0 %v1884
  %1898 = vmatpush.msra.mxu0 %v1882
  %1899 = vmatpush.msra.mxu0 %v1880
  %1900 = vmatpush.msra.mxu0 %v1878
  %1901 = vmatmul.f32.gmra.mxu0 %v574
  %v1902 = vpop.f32.mrf.mxu0
  %v1903 = vadd.f32 0.0, %v1902
  %1904 = vdwg.mxu0
  %v1905 = vld [vmem:[%s0 + $0x80] sm:$0xff]
  %v1906 = vld [vmem:[%s0 + $0x88] sm:$0xff]
  %v1907 = vld [vmem:[%s0 + $0x90] sm:$0xff]
  %v1908 = vld [vmem:[%s0 + $0x98] sm:$0xff]
  %1910 = vset.pattern.permute.xlu0 0
  %1911 = vperm.xlu0 %1910, %v1878
  %v1912 = vpop.permute.xlu0 %1911
  %1915 = vset.pattern.permute.xlu0 0
  %1916 = vperm.xlu0 %1915, %v1880
  %v1917 = vpop.permute.xlu0 %1916
  %1920 = vset.pattern.permute.xlu0 0
  %1921 = vperm.xlu0 %1920, %v1882
  %v1922 = vpop.permute.xlu0 %1921
  %1925 = vset.pattern.permute.xlu0 0
  %1926 = vperm.xlu0 %1925, %v1884
  %v1927 = vpop.permute.xlu0 %1926
  %v1929 = vmul.f32 %v1912, %v1905
  %v1930 = vmul.f32 %v1917, %v1906
  %v1931 = vmul.f32 %v1922, %v1907
  %v1932 = vmul.f32 %v1927, %v1908
  %1933 = vmatpush.msra.mxu0 0.0
  %1934 = vmatpush.msra.mxu0 0.0
  %1935 = vmatpush.msra.mxu0 0.0
  %1936 = vmatpush.msra.mxu0 0.0
  %1937 = vmatpush.msra.mxu0 0.0
  %1938 = vmatpush.msra.mxu0 0.0
  %1939 = vmatpush.msra.mxu0 0.0
  %1940 = vmatpush.msra.mxu0 0.0
  %1941 = vmatpush.msra.mxu0 0.0
  %1942 = vmatpush.msra.mxu0 0.0
  %1943 = vmatpush.msra.mxu0 0.0
  %1944 = vmatpush.msra.mxu0 0.0
  %1945 = vmatpush.msra.mxu0 %v1932
  %1946 = vmatpush.msra.mxu0 %v1931
  %1947 = vmatpush.msra.mxu0 %v1930
  %1948 = vmatpush.msra.mxu0 %v1929
  %1949 = vmatmul.f32.gmra.mxu0 %v574
  %v1950 = vpop.f32.mrf.mxu0
  %v1951 = vadd.f32 0.0, %v1950
  %1952 = vdwg.mxu0
  %v1953 = vrcp.pop %v1903
  %1955 = vset.pattern.permute.xlu0 0
  %1956 = vperm.xlu0 %1955, %v1953
  %v1957 = vpop.permute.xlu0 %1956
  %v1959 = vmul.f32 %v1951, %v1957
  %1960 = vst.msk [vmem:[#allocation2 + $0x8] sm:$0x3] %vm651, %v1959
  %1961 = vmatpush.msra.mxu0 0.0
  %1962 = vmatpush.msra.mxu0 0.0
  %1963 = vmatpush.msra.mxu0 0.0
  %1964 = vmatpush.msra.mxu0 0.0
  %1965 = vmatpush.msra.mxu0 0.0
  %1966 = vmatpush.msra.mxu0 0.0
  %1967 = vmatpush.msra.mxu0 0.0
  %1968 = vmatpush.msra.mxu0 0.0
  %1969 = vmatpush.msra.mxu0 0.0
  %1970 = vmatpush.msra.mxu0 0.0
  %1971 = vmatpush.msra.mxu0 0.0
  %1972 = vmatpush.msra.mxu0 0.0
  %1973 = vmatpush.msra.mxu0 0.0
  %1974 = vmatpush.msra.mxu0 0.0
  %1975 = vmatpush.msra.mxu0 %v25
  %1976 = vmatpush.msra.mxu0 %v24
  %1977 = vmatmul.f32.gmra.mxu0 %v1753
  %v1978 = vpop.f32.mrf.mxu0
  %v1979 = vadd.f32 0.0, %v1978
  %1980 = vdwg.mxu0
  %v1981 = vadd.f32 %v406, %v1979
  %v1982 = vxor.u32 %v1981, 2147483648
  %v1983 = vmul.f32 %v1982, 1.442695
  %v1984 = vpow.pop %v1983
  %v1985 = vadd.f32 %v1984, 1.0
  %v1986 = vrcp.pop %v1985
  %v1987 = vmul.f32 %v1985, %v1986
  %v1988 = vsub.f32 1.0, %v1987
  %v1989 = vmul.f32 %v1986, %v1988
  %v1990 = vadd.f32 %v1986, %v1989
  %vm1991 = vweird.f32 %v1985
  %vm1992 = vweird.f32 %v1986
  %vm1993 = vmor %vm1991, %vm1992
  %v1994 = vsel %vm1993, %v1986, %v1990
  %v1995 = vand.u32 2147483647, %v1985
  %vm1996 = vcmp.eq.f32.partialorder %v1995, 8.507059e+37
  %v1997 = vand.u32 %v1985, 2147483648
  %v1998 = vor.u32 1.1754944e-38, %v1997
  %v1999 = vsel %vm1996, %v1998, %v1994
  %v2000 = vmul.f32 1.0, %v1999
  %v2001 = vtanh.pop %v1981
  %v2003 = vrot.slane %v1737, 4
  %v2005 = vmul.f32 %v2000, %v2003
  %2007 = vrot.lane.b32.xlu0 %v2001, 96
  %v2008 = vpop.permute.xlu0 %2007
  %v2010 = vmul.f32 %v2000, %v2008
  %2012 = vrot.lane.b32.xlu0 %v2010, 16
  %v2013 = vpop.permute.xlu0 %2012
  %v2015 = vadd.f32 %v2005, %v2013
  %v2016 = vtanh.pop %v2015
  %2018 = vrot.lane.b32.xlu0 %v2016, 32
  %v2019 = vpop.permute.xlu0 %2018
  %v2021 = vmul.f32 %v2000, %v2019
  %2023 = vrot.lane.b32.xlu0 %v2021, 80
  %v2024 = vpop.permute.xlu0 %2023
  %v2025 = vsel %vm116, %v2024, 0
  %2027 = vmatpush.msra.mxu0 0.0
  %2028 = vmatpush.msra.mxu0 0.0
  %2029 = vmatpush.msra.mxu0 0.0
  %2030 = vmatpush.msra.mxu0 0.0
  %2031 = vmatpush.msra.mxu0 0.0
  %2032 = vmatpush.msra.mxu0 0.0
  %2033 = vmatpush.msra.mxu0 0.0
  %2034 = vmatpush.msra.mxu0 0.0
  %2035 = vmatpush.msra.mxu0 0.0
  %2036 = vmatpush.msra.mxu0 0.0
  %2037 = vmatpush.msra.mxu0 0.0
  %2038 = vmatpush.msra.mxu0 0.0
  %2039 = vmatpush.msra.mxu0 0.0
  %2040 = vmatpush.msra.mxu0 0.0
  %2041 = vmatpush.msra.mxu0 %v25
  %2042 = vmatpush.msra.mxu0 %v24
  %2043 = vmatmul.f32.gmra.mxu0 %v2025
  %v2044 = vpop.f32.mrf.mxu0
  %v2045 = vadd.f32 0.0, %v2044
  %2046 = vdwg.mxu0
  %v2048 = vrot.slane %v2045, 6
  %v2050 = vadd.f32 %v406, %v2048
  %v2051 = vxor.u32 %v2050, 2147483648
  %v2052 = vmul.f32 %v2051, 1.442695
  %v2053 = vpow.pop %v2052
  %v2054 = vadd.f32 %v2053, 1.0
  %v2055 = vrcp.pop %v2054
  %v2056 = vmul.f32 %v2054, %v2055
  %v2057 = vsub.f32 1.0, %v2056
  %v2058 = vmul.f32 %v2055, %v2057
  %v2059 = vadd.f32 %v2055, %v2058
  %vm2060 = vweird.f32 %v2054
  %vm2061 = vweird.f32 %v2055
  %vm2062 = vmor %vm2060, %vm2061
  %v2063 = vsel %vm2062, %v2055, %v2059
  %v2064 = vand.u32 2147483647, %v2054
  %vm2065 = vcmp.eq.f32.partialorder %v2064, 8.507059e+37
  %v2066 = vand.u32 %v2054, 2147483648
  %v2067 = vor.u32 1.1754944e-38, %v2066
  %v2068 = vsel %vm2065, %v2067, %v2063
  %v2069 = vmul.f32 1.0, %v2068
  %v2070 = vtanh.pop %v2050
  %v2072 = vrot.slane %v2015, 6
  %v2074 = vmul.f32 %v2069, %v2072
  %2076 = vrot.lane.b32.xlu0 %v2070, 96
  %v2077 = vpop.permute.xlu0 %2076
  %v2079 = vmul.f32 %v2069, %v2077
  %2081 = vrot.lane.b32.xlu0 %v2079, 16
  %v2082 = vpop.permute.xlu0 %2081
  %v2084 = vadd.f32 %v2074, %v2082
  %v2085 = vtanh.pop %v2084
  %2087 = vrot.lane.b32.xlu0 %v2085, 32
  %v2088 = vpop.permute.xlu0 %2087
  %v2090 = vmul.f32 %v2069, %v2088
  %v2092 = vrot.slane %v2090, 2
  %2093 = vrot.lane.b32.xlu0 %v2092, 80
  %v2094 = vpop.permute.xlu0 %2093
  %v2095 = vsel %vm116, %v2094, 0
  %2097 = vmatpush.msra.mxu0 0.0
  %2098 = vmatpush.msra.mxu0 0.0
  %2099 = vmatpush.msra.mxu0 0.0
  %2100 = vmatpush.msra.mxu0 0.0
  %2101 = vmatpush.msra.mxu0 0.0
  %2102 = vmatpush.msra.mxu0 0.0
  %2103 = vmatpush.msra.mxu0 0.0
  %2104 = vmatpush.msra.mxu0 0.0
  %2105 = vmatpush.msra.mxu0 0.0
  %2106 = vmatpush.msra.mxu0 0.0
  %2107 = vmatpush.msra.mxu0 0.0
  %2108 = vmatpush.msra.mxu0 0.0
  %2109 = vmatpush.msra.mxu0 0.0
  %2110 = vmatpush.msra.mxu0 0.0
  %2111 = vmatpush.msra.mxu0 %v25
  %2112 = vmatpush.msra.mxu0 %v24
  %2113 = vmatmul.f32.gmra.mxu0 %v2095
  %v2114 = vpop.f32.mrf.mxu0
  %v2115 = vadd.f32 0.0, %v2114
  %2116 = vdwg.mxu0
  %v2118 = vrot.slane %v2115, 4
  %v2120 = vadd.f32 %v406, %v2118
  %v2121 = vxor.u32 %v2120, 2147483648
  %v2122 = vmul.f32 %v2121, 1.442695
  %v2123 = vpow.pop %v2122
  %v2124 = vadd.f32 %v2123, 1.0
  %v2125 = vrcp.pop %v2124
  %v2126 = vmul.f32 %v2124, %v2125
  %v2127 = vsub.f32 1.0, %v2126
  %v2128 = vmul.f32 %v2125, %v2127
  %v2129 = vadd.f32 %v2125, %v2128
  %vm2130 = vweird.f32 %v2124
  %vm2131 = vweird.f32 %v2125
  %vm2132 = vmor %vm2130, %vm2131
  %v2133 = vsel %vm2132, %v2125, %v2129
  %v2134 = vand.u32 2147483647, %v2124
  %vm2135 = vcmp.eq.f32.partialorder %v2134, 8.507059e+37
  %v2136 = vand.u32 %v2124, 2147483648
  %v2137 = vor.u32 1.1754944e-38, %v2136
  %v2138 = vsel %vm2135, %v2137, %v2133
  %v2139 = vmul.f32 1.0, %v2138
  %v2140 = vtanh.pop %v2120
  %v2142 = vrot.slane %v2084, 6
  %v2144 = vmul.f32 %v2139, %v2142
  %2146 = vrot.lane.b32.xlu0 %v2140, 96
  %v2147 = vpop.permute.xlu0 %2146
  %v2149 = vmul.f32 %v2139, %v2147
  %2151 = vrot.lane.b32.xlu0 %v2149, 16
  %v2152 = vpop.permute.xlu0 %2151
  %v2154 = vadd.f32 %v2144, %v2152
  %v2155 = vtanh.pop %v2154
  %2157 = vrot.lane.b32.xlu0 %v2155, 32
  %v2158 = vpop.permute.xlu0 %2157
  %v2160 = vmul.f32 %v2139, %v2158
  %v2162 = vrot.slane %v2160, 4
  %2163 = vrot.lane.b32.xlu0 %v2162, 80
  %v2164 = vpop.permute.xlu0 %2163
  %v2165 = vsel %vm116, %v2164, 0
  %2167 = vmatpush.msra.mxu0 0.0
  %2168 = vmatpush.msra.mxu0 0.0
  %2169 = vmatpush.msra.mxu0 0.0
  %2170 = vmatpush.msra.mxu0 0.0
  %2171 = vmatpush.msra.mxu0 0.0
  %2172 = vmatpush.msra.mxu0 0.0
  %2173 = vmatpush.msra.mxu0 0.0
  %2174 = vmatpush.msra.mxu0 0.0
  %2175 = vmatpush.msra.mxu0 0.0
  %2176 = vmatpush.msra.mxu0 0.0
  %2177 = vmatpush.msra.mxu0 0.0
  %2178 = vmatpush.msra.mxu0 0.0
  %2179 = vmatpush.msra.mxu0 0.0
  %2180 = vmatpush.msra.mxu0 0.0
  %2181 = vmatpush.msra.mxu0 %v25
  %2182 = vmatpush.msra.mxu0 %v24
  %2183 = vmatmul.f32.gmra.mxu0 %v2165
  %v2184 = vpop.f32.mrf.mxu0
  %v2185 = vadd.f32 0.0, %v2184
  %2186 = vdwg.mxu0
  %v2188 = vrot.slane %v2185, 2
  %v2190 = vadd.f32 %v406, %v2188
  %v2191 = vxor.u32 %v2190, 2147483648
  %v2192 = vmul.f32 %v2191, 1.442695
  %v2193 = vpow.pop %v2192
  %v2194 = vadd.f32 %v2193, 1.0
  %v2195 = vrcp.pop %v2194
  %v2196 = vmul.f32 %v2194, %v2195
  %v2197 = vsub.f32 1.0, %v2196
  %v2198 = vmul.f32 %v2195, %v2197
  %v2199 = vadd.f32 %v2195, %v2198
  %vm2200 = vweird.f32 %v2194
  %vm2201 = vweird.f32 %v2195
  %vm2202 = vmor %vm2200, %vm2201
  %v2203 = vsel %vm2202, %v2195, %v2199
  %v2204 = vand.u32 2147483647, %v2194
  %vm2205 = vcmp.eq.f32.partialorder %v2204, 8.507059e+37
  %v2206 = vand.u32 %v2194, 2147483648
  %v2207 = vor.u32 1.1754944e-38, %v2206
  %v2208 = vsel %vm2205, %v2207, %v2203
  %v2209 = vmul.f32 1.0, %v2208
  %v2210 = vtanh.pop %v2190
  %v2212 = vrot.slane %v2154, 6
  %v2214 = vmul.f32 %v2209, %v2212
  %2216 = vrot.lane.b32.xlu0 %v2210, 96
  %v2217 = vpop.permute.xlu0 %2216
  %v2219 = vmul.f32 %v2209, %v2217
  %2221 = vrot.lane.b32.xlu0 %v2219, 16
  %v2222 = vpop.permute.xlu0 %2221
  %v2224 = vadd.f32 %v2214, %v2222
  %v2225 = vtanh.pop %v2224
  %2227 = vrot.lane.b32.xlu0 %v2225, 32
  %v2228 = vpop.permute.xlu0 %2227
  %v2230 = vmul.f32 %v2209, %v2228
  %2232 = vrot.lane.b32.xlu0 %v2230, 80
  %v2233 = vpop.permute.xlu0 %2232
  %vm2235 = vcmask 130054
  %2236 = vst.msk [vmem:[#allocation3 + $0x2] sm:$0xc0] %vm2235, %v2233
  %v2237 = vrot.slane %v2230, 6
  %2238 = vrot.lane.b32.xlu0 %v2237, 80
  %v2239 = vpop.permute.xlu0 %2238
  %v2240 = vsel %vm116, %v2239, 0
  %2242 = vmatpush.msra.mxu0 0.0
  %2243 = vmatpush.msra.mxu0 0.0
  %2244 = vmatpush.msra.mxu0 0.0
  %2245 = vmatpush.msra.mxu0 0.0
  %2246 = vmatpush.msra.mxu0 0.0
  %2247 = vmatpush.msra.mxu0 0.0
  %2248 = vmatpush.msra.mxu0 0.0
  %2249 = vmatpush.msra.mxu0 0.0
  %2250 = vmatpush.msra.mxu0 0.0
  %2251 = vmatpush.msra.mxu0 0.0
  %2252 = vmatpush.msra.mxu0 0.0
  %2253 = vmatpush.msra.mxu0 0.0
  %2254 = vmatpush.msra.mxu0 0.0
  %2255 = vmatpush.msra.mxu0 0.0
  %2256 = vmatpush.msra.mxu0 %v15
  %2257 = vmatpush.msra.mxu0 %v14
  %2258 = vmatmul.f32.gmra.mxu0 %v2240
  %v2259 = vpop.f32.mrf.mxu0
  %v2260 = vadd.f32 %v411, %v2259
  %2261 = vdwg.mxu0
  %v2263 = vsel %vm448, %v2260, 0
  %2265 = vmatpush.msra.mxu0 0.0
  %2266 = vmatpush.msra.mxu0 0.0
  %2267 = vmatpush.msra.mxu0 0.0
  %2268 = vmatpush.msra.mxu0 0.0
  %2269 = vmatpush.msra.mxu0 0.0
  %2270 = vmatpush.msra.mxu0 0.0
  %2271 = vmatpush.msra.mxu0 0.0
  %2272 = vmatpush.msra.mxu0 0.0
  %2273 = vmatpush.msra.mxu0 0.0
  %2274 = vmatpush.msra.mxu0 0.0
  %2275 = vmatpush.msra.mxu0 0.0
  %2276 = vmatpush.msra.mxu0 0.0
  %2277 = vmatpush.msra.mxu0 0.0
  %2278 = vmatpush.msra.mxu0 0.0
  %2279 = vmatpush.msra.mxu0 0.0
  %2280 = vmatpush.msra.mxu0 %v2263
  %2281 = vmatmul.f32.gmra.mxu0 %v437
  %v2282 = vpop.f32.mrf.mxu0
  %v2283 = vadd.f32 0.0, %v2282
  %2284 = vmatmul.f32.gmra.mxu0 %v440
  %v2285 = vpop.f32.mrf.mxu0
  %v2286 = vadd.f32 0.0, %v2285
  %2287 = vmatmul.f32.gmra.mxu0 %v443
  %v2288 = vpop.f32.mrf.mxu0
  %v2289 = vadd.f32 0.0, %v2288
  %2290 = vmatmul.f32.gmra.mxu0 %v446
  %v2291 = vpop.f32.mrf.mxu0
  %v2292 = vadd.f32 0.0, %v2291
  %2293 = vdwg.mxu0
  %v2294 = vadd.f32 %v369, %v2283
  %v2295 = vadd.f32 %v372, %v2286
  %v2296 = vadd.f32 %v375, %v2289
  %v2297 = vadd.f32 %v378, %v2292
  %v2298 = vtanh.pop %v2294
  %v2299 = vtanh.pop %v2295
  %v2300 = vtanh.pop %v2296
  %v2301 = vtanh.pop %v2297
  %v2302 = vmul.f32 %v2298, %v489
  %v2303 = vmul.f32 %v2299, %v489
  %v2304 = vmul.f32 %v2300, %v489
  %v2305 = vmul.f32 %v2301, %v489
  %v2306 = vsel %vm218, %v2302, 0.0
  %2307 = vadd.xlane.f32.xlu0 %v2306
  %v2308 = vpop.xlane.xlu0 %2307
  %v2309 = vsel %vm218, %v2303, 0.0
  %2310 = vadd.xlane.f32.xlu0 %v2309
  %v2311 = vpop.xlane.xlu0 %2310
  %v2312 = vsel %vm218, %v2304, 0.0
  %2313 = vadd.xlane.f32.xlu0 %v2312
  %v2314 = vpop.xlane.xlu0 %2313
  %v2315 = vsel %vm218, %v2305, 0.0
  %2316 = vadd.xlane.f32.xlu0 %v2315
  %v2317 = vpop.xlane.xlu0 %2316
  %2318 = vmatpush.msra.mxu0 0.0
  %2319 = vmatpush.msra.mxu0 0.0
  %2320 = vmatpush.msra.mxu0 0.0
  %2321 = vmatpush.msra.mxu0 0.0
  %2322 = vmatpush.msra.mxu0 0.0
  %2323 = vmatpush.msra.mxu0 0.0
  %2324 = vmatpush.msra.mxu0 0.0
  %2325 = vmatpush.msra.mxu0 0.0
  %2326 = vmatpush.msra.mxu0 0.0
  %2327 = vmatpush.msra.mxu0 0.0
  %2328 = vmatpush.msra.mxu0 0.0
  %2329 = vmatpush.msra.mxu0 0.0
  %2330 = vmatpush.msra.mxu0 %v2317
  %2331 = vmatpush.msra.mxu0 %v2314
  %2332 = vmatpush.msra.mxu0 %v2311
  %2333 = vmatpush.msra.mxu0 %v2308
  %2334 = vmatmul.f32.gmra.mxu0 %v507
  %v2335 = vpop.f32.mrf.mxu0
  %v2336 = vadd.f32 0.0, %v2335
  %2337 = vmatmul.f32.gmra.mxu0 %v510
  %v2338 = vpop.f32.mrf.mxu0
  %v2339 = vadd.f32 0.0, %v2338
  %2340 = vmatmul.f32.gmra.mxu0 %v513
  %v2341 = vpop.f32.mrf.mxu0
  %v2342 = vadd.f32 0.0, %v2341
  %2343 = vmatmul.f32.gmra.mxu0 %v516
  %v2344 = vpop.f32.mrf.mxu0
  %v2345 = vadd.f32 0.0, %v2344
  %2346 = vdwg.mxu0
  %v2347 = vsel %vm547, %v2336, -inf
  %v2348 = vsel %vm547, %v2339, -inf
  %v2349 = vsel %vm547, %v2342, -inf
  %v2350 = vsel %vm547, %v2345, -inf
  %v2351 = vmax.f32 %v2347, %v2348
  %v2352 = vmax.f32 %v2349, %v2350
  %v2353 = vmax.f32 %v2351, %v2352
  %v2354 = vrot.slane %v2353, 4
  %v2355 = vmax.f32 %v2353, %v2354
  %v2356 = vrot.slane %v2355, 2
  %v2357 = vmax.f32 %v2355, %v2356
  %v2358 = vrot.slane %v2357, 1
  %v2359 = vmax.f32 %v2357, %v2358
  %v2360 = vsub.f32 %v2336, %v2359
  %v2361 = vsub.f32 %v2339, %v2359
  %v2362 = vsub.f32 %v2342, %v2359
  %v2363 = vsub.f32 %v2345, %v2359
  %v2364 = vmul.f32 %v2360, 1.442695
  %v2365 = vpow.pop %v2364
  %v2366 = vmul.f32 %v2361, 1.442695
  %v2367 = vpow.pop %v2366
  %v2368 = vmul.f32 %v2362, 1.442695
  %v2369 = vpow.pop %v2368
  %v2370 = vmul.f32 %v2363, 1.442695
  %v2371 = vpow.pop %v2370
  %2372 = vmatpush.msra.mxu0 0.0
  %2373 = vmatpush.msra.mxu0 0.0
  %2374 = vmatpush.msra.mxu0 0.0
  %2375 = vmatpush.msra.mxu0 0.0
  %2376 = vmatpush.msra.mxu0 0.0
  %2377 = vmatpush.msra.mxu0 0.0
  %2378 = vmatpush.msra.mxu0 0.0
  %2379 = vmatpush.msra.mxu0 0.0
  %2380 = vmatpush.msra.mxu0 0.0
  %2381 = vmatpush.msra.mxu0 0.0
  %2382 = vmatpush.msra.mxu0 0.0
  %2383 = vmatpush.msra.mxu0 0.0
  %2384 = vmatpush.msra.mxu0 %v2371
  %2385 = vmatpush.msra.mxu0 %v2369
  %2386 = vmatpush.msra.mxu0 %v2367
  %2387 = vmatpush.msra.mxu0 %v2365
  %2388 = vmatmul.f32.gmra.mxu0 %v574
  %v2389 = vpop.f32.mrf.mxu0
  %v2390 = vadd.f32 0.0, %v2389
  %2391 = vdwg.mxu0
  %v2392 = vld [vmem:[%s0 + $0xa0] sm:$0xff]
  %v2393 = vld [vmem:[%s0 + $0xa8] sm:$0xff]
  %v2394 = vld [vmem:[%s0 + $0xb0] sm:$0xff]
  %v2395 = vld [vmem:[%s0 + $0xb8] sm:$0xff]
  %2397 = vset.pattern.permute.xlu0 0
  %2398 = vperm.xlu0 %2397, %v2365
  %v2399 = vpop.permute.xlu0 %2398
  %2402 = vset.pattern.permute.xlu0 0
  %2403 = vperm.xlu0 %2402, %v2367
  %v2404 = vpop.permute.xlu0 %2403
  %2407 = vset.pattern.permute.xlu0 0
  %2408 = vperm.xlu0 %2407, %v2369
  %v2409 = vpop.permute.xlu0 %2408
  %2412 = vset.pattern.permute.xlu0 0
  %2413 = vperm.xlu0 %2412, %v2371
  %v2414 = vpop.permute.xlu0 %2413
  %v2416 = vmul.f32 %v2399, %v2392
  %v2417 = vmul.f32 %v2404, %v2393
  %v2418 = vmul.f32 %v2409, %v2394
  %v2419 = vmul.f32 %v2414, %v2395
  %2420 = vmatpush.msra.mxu0 0.0
  %2421 = vmatpush.msra.mxu0 0.0
  %2422 = vmatpush.msra.mxu0 0.0
  %2423 = vmatpush.msra.mxu0 0.0
  %2424 = vmatpush.msra.mxu0 0.0
  %2425 = vmatpush.msra.mxu0 0.0
  %2426 = vmatpush.msra.mxu0 0.0
  %2427 = vmatpush.msra.mxu0 0.0
  %2428 = vmatpush.msra.mxu0 0.0
  %2429 = vmatpush.msra.mxu0 0.0
  %2430 = vmatpush.msra.mxu0 0.0
  %2431 = vmatpush.msra.mxu0 0.0
  %2432 = vmatpush.msra.mxu0 %v2419
  %2433 = vmatpush.msra.mxu0 %v2418
  %2434 = vmatpush.msra.mxu0 %v2417
  %2435 = vmatpush.msra.mxu0 %v2416
  %2436 = vmatmul.f32.gmra.mxu0 %v574
  %v2437 = vpop.f32.mrf.mxu0
  %v2438 = vadd.f32 0.0, %v2437
  %2439 = vdwg.mxu0
  %v2440 = vrcp.pop %v2390
  %2442 = vset.pattern.permute.xlu0 0
  %2443 = vperm.xlu0 %2442, %v2440
  %v2444 = vpop.permute.xlu0 %2443
  %v2446 = vmul.f32 %v2438, %v2444
  %2447 = vst.msk [vmem:[#allocation2 + $0xa] sm:$0x3] %vm651, %v2446
  %2448 = vmatpush.msra.mxu0 0.0
  %2449 = vmatpush.msra.mxu0 0.0
  %2450 = vmatpush.msra.mxu0 0.0
  %2451 = vmatpush.msra.mxu0 0.0
  %2452 = vmatpush.msra.mxu0 0.0
  %2453 = vmatpush.msra.mxu0 0.0
  %2454 = vmatpush.msra.mxu0 0.0
  %2455 = vmatpush.msra.mxu0 0.0
  %2456 = vmatpush.msra.mxu0 0.0
  %2457 = vmatpush.msra.mxu0 0.0
  %2458 = vmatpush.msra.mxu0 0.0
  %2459 = vmatpush.msra.mxu0 0.0
  %2460 = vmatpush.msra.mxu0 0.0
  %2461 = vmatpush.msra.mxu0 0.0
  %2462 = vmatpush.msra.mxu0 %v25
  %2463 = vmatpush.msra.mxu0 %v24
  %2464 = vmatmul.f32.gmra.mxu0 %v2240
  %v2465 = vpop.f32.mrf.mxu0
  %v2466 = vadd.f32 0.0, %v2465
  %2467 = vdwg.mxu0
  %v2468 = vadd.f32 %v406, %v2466
  %v2469 = vxor.u32 %v2468, 2147483648
  %v2470 = vmul.f32 %v2469, 1.442695
  %v2471 = vpow.pop %v2470
  %v2472 = vadd.f32 %v2471, 1.0
  %v2473 = vrcp.pop %v2472
  %v2474 = vmul.f32 %v2472, %v2473
  %v2475 = vsub.f32 1.0, %v2474
  %v2476 = vmul.f32 %v2473, %v2475
  %v2477 = vadd.f32 %v2473, %v2476
  %vm2478 = vweird.f32 %v2472
  %vm2479 = vweird.f32 %v2473
  %vm2480 = vmor %vm2478, %vm2479
  %v2481 = vsel %vm2480, %v2473, %v2477
  %v2482 = vand.u32 2147483647, %v2472
  %vm2483 = vcmp.eq.f32.partialorder %v2482, 8.507059e+37
  %v2484 = vand.u32 %v2472, 2147483648
  %v2485 = vor.u32 1.1754944e-38, %v2484
  %v2486 = vsel %vm2483, %v2485, %v2481
  %v2487 = vmul.f32 1.0, %v2486
  %v2488 = vtanh.pop %v2468
  %v2490 = vrot.slane %v2224, 6
  %v2492 = vmul.f32 %v2487, %v2490
  %2494 = vrot.lane.b32.xlu0 %v2488, 96
  %v2495 = vpop.permute.xlu0 %2494
  %v2497 = vmul.f32 %v2487, %v2495
  %2499 = vrot.lane.b32.xlu0 %v2497, 16
  %v2500 = vpop.permute.xlu0 %2499
  %v2502 = vadd.f32 %v2492, %v2500
  %v2503 = vtanh.pop %v2502
  %2505 = vrot.lane.b32.xlu0 %v2503, 32
  %v2506 = vpop.permute.xlu0 %2505
  %v2508 = vmul.f32 %v2487, %v2506
  %2510 = vrot.lane.b32.xlu0 %v2508, 80
  %v2511 = vpop.permute.xlu0 %2510
  %v2512 = vsel %vm116, %v2511, 0
  %2514 = vmatpush.msra.mxu0 0.0
  %2515 = vmatpush.msra.mxu0 0.0
  %2516 = vmatpush.msra.mxu0 0.0
  %2517 = vmatpush.msra.mxu0 0.0
  %2518 = vmatpush.msra.mxu0 0.0
  %2519 = vmatpush.msra.mxu0 0.0
  %2520 = vmatpush.msra.mxu0 0.0
  %2521 = vmatpush.msra.mxu0 0.0
  %2522 = vmatpush.msra.mxu0 0.0
  %2523 = vmatpush.msra.mxu0 0.0
  %2524 = vmatpush.msra.mxu0 0.0
  %2525 = vmatpush.msra.mxu0 0.0
  %2526 = vmatpush.msra.mxu0 0.0
  %2527 = vmatpush.msra.mxu0 0.0
  %2528 = vmatpush.msra.mxu0 %v25
  %2529 = vmatpush.msra.mxu0 %v24
  %2530 = vmatmul.f32.gmra.mxu0 %v2512
  %v2531 = vpop.f32.mrf.mxu0
  %v2532 = vadd.f32 0.0, %v2531
  %2533 = vdwg.mxu0
  %v2535 = vrot.slane %v2532, 6
  %v2537 = vadd.f32 %v406, %v2535
  %v2538 = vxor.u32 %v2537, 2147483648
  %v2539 = vmul.f32 %v2538, 1.442695
  %v2540 = vpow.pop %v2539
  %v2541 = vadd.f32 %v2540, 1.0
  %v2542 = vrcp.pop %v2541
  %v2543 = vmul.f32 %v2541, %v2542
  %v2544 = vsub.f32 1.0, %v2543
  %v2545 = vmul.f32 %v2542, %v2544
  %v2546 = vadd.f32 %v2542, %v2545
  %vm2547 = vweird.f32 %v2541
  %vm2548 = vweird.f32 %v2542
  %vm2549 = vmor %vm2547, %vm2548
  %v2550 = vsel %vm2549, %v2542, %v2546
  %v2551 = vand.u32 2147483647, %v2541
  %vm2552 = vcmp.eq.f32.partialorder %v2551, 8.507059e+37
  %v2553 = vand.u32 %v2541, 2147483648
  %v2554 = vor.u32 1.1754944e-38, %v2553
  %v2555 = vsel %vm2552, %v2554, %v2550
  %v2556 = vmul.f32 1.0, %v2555
  %v2557 = vtanh.pop %v2537
  %v2559 = vrot.slane %v2502, 6
  %v2561 = vmul.f32 %v2556, %v2559
  %2563 = vrot.lane.b32.xlu0 %v2557, 96
  %v2564 = vpop.permute.xlu0 %2563
  %v2566 = vmul.f32 %v2556, %v2564
  %2568 = vrot.lane.b32.xlu0 %v2566, 16
  %v2569 = vpop.permute.xlu0 %2568
  %v2571 = vadd.f32 %v2561, %v2569
  %v2572 = vtanh.pop %v2571
  %2574 = vrot.lane.b32.xlu0 %v2572, 32
  %v2575 = vpop.permute.xlu0 %2574
  %v2577 = vmul.f32 %v2556, %v2575
  %v2579 = vrot.slane %v2577, 2
  %2580 = vrot.lane.b32.xlu0 %v2579, 80
  %v2581 = vpop.permute.xlu0 %2580
  %v2582 = vsel %vm116, %v2581, 0
  %2584 = vmatpush.msra.mxu0 0.0
  %2585 = vmatpush.msra.mxu0 0.0
  %2586 = vmatpush.msra.mxu0 0.0
  %2587 = vmatpush.msra.mxu0 0.0
  %2588 = vmatpush.msra.mxu0 0.0
  %2589 = vmatpush.msra.mxu0 0.0
  %2590 = vmatpush.msra.mxu0 0.0
  %2591 = vmatpush.msra.mxu0 0.0
  %2592 = vmatpush.msra.mxu0 0.0
  %2593 = vmatpush.msra.mxu0 0.0
  %2594 = vmatpush.msra.mxu0 0.0
  %2595 = vmatpush.msra.mxu0 0.0
  %2596 = vmatpush.msra.mxu0 0.0
  %2597 = vmatpush.msra.mxu0 0.0
  %2598 = vmatpush.msra.mxu0 %v25
  %2599 = vmatpush.msra.mxu0 %v24
  %2600 = vmatmul.f32.gmra.mxu0 %v2582
  %v2601 = vpop.f32.mrf.mxu0
  %v2602 = vadd.f32 0.0, %v2601
  %2603 = vdwg.mxu0
  %v2605 = vrot.slane %v2602, 4
  %v2607 = vadd.f32 %v406, %v2605
  %v2608 = vxor.u32 %v2607, 2147483648
  %v2609 = vmul.f32 %v2608, 1.442695
  %v2610 = vpow.pop %v2609
  %v2611 = vadd.f32 %v2610, 1.0
  %v2612 = vrcp.pop %v2611
  %v2613 = vmul.f32 %v2611, %v2612
  %v2614 = vsub.f32 1.0, %v2613
  %v2615 = vmul.f32 %v2612, %v2614
  %v2616 = vadd.f32 %v2612, %v2615
  %vm2617 = vweird.f32 %v2611
  %vm2618 = vweird.f32 %v2612
  %vm2619 = vmor %vm2617, %vm2618
  %v2620 = vsel %vm2619, %v2612, %v2616
  %v2621 = vand.u32 2147483647, %v2611
  %vm2622 = vcmp.eq.f32.partialorder %v2621, 8.507059e+37
  %v2623 = vand.u32 %v2611, 2147483648
  %v2624 = vor.u32 1.1754944e-38, %v2623
  %v2625 = vsel %vm2622, %v2624, %v2620
  %v2626 = vmul.f32 1.0, %v2625
  %v2627 = vtanh.pop %v2607
  %v2629 = vrot.slane %v2571, 6
  %v2631 = vmul.f32 %v2626, %v2629
  %2633 = vrot.lane.b32.xlu0 %v2627, 96
  %v2634 = vpop.permute.xlu0 %2633
  %v2636 = vmul.f32 %v2626, %v2634
  %2638 = vrot.lane.b32.xlu0 %v2636, 16
  %v2639 = vpop.permute.xlu0 %2638
  %v2641 = vadd.f32 %v2631, %v2639
  %v2642 = vtanh.pop %v2641
  %2644 = vrot.lane.b32.xlu0 %v2642, 32
  %v2645 = vpop.permute.xlu0 %2644
  %v2647 = vmul.f32 %v2626, %v2645
  %v2649 = vrot.slane %v2647, 4
  %2650 = vrot.lane.b32.xlu0 %v2649, 80
  %v2651 = vpop.permute.xlu0 %2650
  %v2652 = vsel %vm116, %v2651, 0
  %2654 = vmatpush.msra.mxu0 0.0
  %2655 = vmatpush.msra.mxu0 0.0
  %2656 = vmatpush.msra.mxu0 0.0
  %2657 = vmatpush.msra.mxu0 0.0
  %2658 = vmatpush.msra.mxu0 0.0
  %2659 = vmatpush.msra.mxu0 0.0
  %2660 = vmatpush.msra.mxu0 0.0
  %2661 = vmatpush.msra.mxu0 0.0
  %2662 = vmatpush.msra.mxu0 0.0
  %2663 = vmatpush.msra.mxu0 0.0
  %2664 = vmatpush.msra.mxu0 0.0
  %2665 = vmatpush.msra.mxu0 0.0
  %2666 = vmatpush.msra.mxu0 0.0
  %2667 = vmatpush.msra.mxu0 0.0
  %2668 = vmatpush.msra.mxu0 %v25
  %2669 = vmatpush.msra.mxu0 %v24
  %2670 = vmatmul.f32.gmra.mxu0 %v2652
  %v2671 = vpop.f32.mrf.mxu0
  %v2672 = vadd.f32 0.0, %v2671
  %2673 = vdwg.mxu0
  %v2675 = vrot.slane %v2672, 2
  %v2677 = vadd.f32 %v406, %v2675
  %v2678 = vxor.u32 %v2677, 2147483648
  %v2679 = vmul.f32 %v2678, 1.442695
  %v2680 = vpow.pop %v2679
  %v2681 = vadd.f32 %v2680, 1.0
  %v2682 = vrcp.pop %v2681
  %v2683 = vmul.f32 %v2681, %v2682
  %v2684 = vsub.f32 1.0, %v2683
  %v2685 = vmul.f32 %v2682, %v2684
  %v2686 = vadd.f32 %v2682, %v2685
  %vm2687 = vweird.f32 %v2681
  %vm2688 = vweird.f32 %v2682
  %vm2689 = vmor %vm2687, %vm2688
  %v2690 = vsel %vm2689, %v2682, %v2686
  %v2691 = vand.u32 2147483647, %v2681
  %vm2692 = vcmp.eq.f32.partialorder %v2691, 8.507059e+37
  %v2693 = vand.u32 %v2681, 2147483648
  %v2694 = vor.u32 1.1754944e-38, %v2693
  %v2695 = vsel %vm2692, %v2694, %v2690
  %v2696 = vmul.f32 1.0, %v2695
  %v2697 = vtanh.pop %v2677
  %v2699 = vrot.slane %v2641, 6
  %v2701 = vmul.f32 %v2696, %v2699
  %2703 = vrot.lane.b32.xlu0 %v2697, 96
  %v2704 = vpop.permute.xlu0 %2703
  %v2706 = vmul.f32 %v2696, %v2704
  %2708 = vrot.lane.b32.xlu0 %v2706, 16
  %v2709 = vpop.permute.xlu0 %2708
  %v2711 = vadd.f32 %v2701, %v2709
  %v2712 = vtanh.pop %v2711
  %2714 = vrot.lane.b32.xlu0 %v2712, 32
  %v2715 = vpop.permute.xlu0 %2714
  %v2717 = vmul.f32 %v2696, %v2715
  %v2719 = vrot.slane %v2717, 6
  %2720 = vrot.lane.b32.xlu0 %v2719, 80
  %v2721 = vpop.permute.xlu0 %2720
  %v2722 = vsel %vm116, %v2721, 0
  %2724 = vmatpush.msra.mxu0 0.0
  %2725 = vmatpush.msra.mxu0 0.0
  %2726 = vmatpush.msra.mxu0 0.0
  %2727 = vmatpush.msra.mxu0 0.0
  %2728 = vmatpush.msra.mxu0 0.0
  %2729 = vmatpush.msra.mxu0 0.0
  %2730 = vmatpush.msra.mxu0 0.0
  %2731 = vmatpush.msra.mxu0 0.0
  %2732 = vmatpush.msra.mxu0 0.0
  %2733 = vmatpush.msra.mxu0 0.0
  %2734 = vmatpush.msra.mxu0 0.0
  %2735 = vmatpush.msra.mxu0 0.0
  %2736 = vmatpush.msra.mxu0 0.0
  %2737 = vmatpush.msra.mxu0 0.0
  %2738 = vmatpush.msra.mxu0 %v25
  %2739 = vmatpush.msra.mxu0 %v24
  %2740 = vmatmul.f32.gmra.mxu0 %v2722
  %v2741 = vpop.f32.mrf.mxu0
  %v2742 = vadd.f32 0.0, %v2741
  %2743 = vdwg.mxu0
  %v2744 = vadd.f32 %v409, %v2742
  %v2745 = vxor.u32 %v2744, 2147483648
  %v2746 = vmul.f32 %v2745, 1.442695
  %v2747 = vpow.pop %v2746
  %v2748 = vadd.f32 %v2747, 1.0
  %v2749 = vrcp.pop %v2748
  %v2750 = vmul.f32 %v2748, %v2749
  %v2751 = vsub.f32 1.0, %v2750
  %v2752 = vmul.f32 %v2749, %v2751
  %v2753 = vadd.f32 %v2749, %v2752
  %vm2754 = vweird.f32 %v2748
  %vm2755 = vweird.f32 %v2749
  %vm2756 = vmor %vm2754, %vm2755
  %v2757 = vsel %vm2756, %v2749, %v2753
  %v2758 = vand.u32 2147483647, %v2748
  %vm2759 = vcmp.eq.f32.partialorder %v2758, 8.507059e+37
  %v2760 = vand.u32 %v2748, 2147483648
  %v2761 = vor.u32 1.1754944e-38, %v2760
  %v2762 = vsel %vm2759, %v2761, %v2757
  %v2763 = vmul.f32 1.0, %v2762
  %v2764 = vtanh.pop %v2744
  %v2766 = vrot.slane %v2711, 6
  %v2768 = vmul.f32 %v2763, %v2766
  %2770 = vrot.lane.b32.xlu0 %v2764, 96
  %v2771 = vpop.permute.xlu0 %2770
  %v2773 = vmul.f32 %v2763, %v2771
  %2775 = vrot.lane.b32.xlu0 %v2773, 16
  %v2776 = vpop.permute.xlu0 %2775
  %v2778 = vadd.f32 %v2768, %v2776
  %v2779 = vtanh.pop %v2778
  %2781 = vrot.lane.b32.xlu0 %v2779, 32
  %v2782 = vpop.permute.xlu0 %2781
  %v2784 = vmul.f32 %v2763, %v2782
  %2786 = vrot.lane.b32.xlu0 %v2784, 80
  %v2787 = vpop.permute.xlu0 %2786
  %2789 = vst.msk [vmem:[#allocation3 + $0xa] sm:$0x3] %vm719, %v2787
  %v2790 = vld [vmem:[#allocation2] sm:$0xff]
  %v2791 = vld [vmem:[#allocation2 + $0x8] sm:$0xf]
  %v2792 = vld [vmem:[#allocation3] sm:$0xff]
  %v2793 = vld [vmem:[#allocation3 + $0x8] sm:$0xf]
  %v2795 = vsel %vm116, %v2792, 0
  %v2798 = vsel %vm116, %v2793, 0
  %2800 = vmatpush.msra.mxu0 0.0
  %2801 = vmatpush.msra.mxu0 0.0
  %2802 = vmatpush.msra.mxu0 0.0
  %2803 = vmatpush.msra.mxu0 0.0
  %2804 = vmatpush.msra.mxu0 0.0
  %2805 = vmatpush.msra.mxu0 0.0
  %2806 = vmatpush.msra.mxu0 0.0
  %2807 = vmatpush.msra.mxu0 0.0
  %2808 = vmatpush.msra.mxu0 0.0
  %2809 = vmatpush.msra.mxu0 0.0
  %2810 = vmatpush.msra.mxu0 0.0
  %2811 = vmatpush.msra.mxu0 0.0
  %2812 = vmatpush.msra.mxu0 0.0
  %2813 = vmatpush.msra.mxu0 0.0
  %2814 = vmatpush.msra.mxu0 %v32
  %2815 = vmatpush.msra.mxu0 %v31
  %2816 = vmatmul.f32.gmra.mxu0 %v2795
  %v2817 = vpop.f32.mrf.mxu0
  %v2818 = vadd.f32 0.0, %v2817
  %2819 = vmatmul.f32.gmra.mxu0 %v2798
  %v2820 = vpop.f32.mrf.mxu0
  %v2821 = vadd.f32 0.0, %v2820
  %2822 = vdwg.mxu0
  %v2824 = vsel %vm218, %v2790, 0
  %v2827 = vsel %vm218, %v2791, 0
  %2829 = vmatpush.msra.mxu0 0.0
  %2830 = vmatpush.msra.mxu0 0.0
  %2831 = vmatpush.msra.mxu0 0.0
  %2832 = vmatpush.msra.mxu0 0.0
  %2833 = vmatpush.msra.mxu0 0.0
  %2834 = vmatpush.msra.mxu0 0.0
  %2835 = vmatpush.msra.mxu0 0.0
  %2836 = vmatpush.msra.mxu0 0.0
  %2837 = vmatpush.msra.mxu0 0.0
  %2838 = vmatpush.msra.mxu0 0.0
  %2839 = vmatpush.msra.mxu0 0.0
  %2840 = vmatpush.msra.mxu0 0.0
  %2841 = vmatpush.msra.mxu0 %v30
  %2842 = vmatpush.msra.mxu0 %v29
  %2843 = vmatpush.msra.mxu0 %v28
  %2844 = vmatpush.msra.mxu0 %v27
  %2845 = vmatmul.f32.gmra.mxu0 %v2824
  %v2846 = vpop.f32.mrf.mxu0
  %v2847 = vadd.f32 %v2818, %v2846
  %2848 = vmatmul.f32.gmra.mxu0 %v2827
  %v2849 = vpop.f32.mrf.mxu0
  %v2850 = vadd.f32 %v2821, %v2849
  %2851 = vdwg.mxu0
  %v2852 = vperm.slane %v33, 0
  %v2853 = vadd.f32 %v2847, %v2852
  %v2854 = vadd.f32 %v2850, %v2852
  %v2855 = vperm.slane %v40, 0
  %vm2856 = vcmask 392192
  %v2858 = vsel %vm2856, %v2853, 0
  %v2861 = vsel %vm2856, %v2854, 0
  %2863 = vmatpush.msra.mxu0 0.0
  %2864 = vmatpush.msra.mxu0 0.0
  %2865 = vmatpush.msra.mxu0 0.0
  %2866 = vmatpush.msra.mxu0 0.0
  %2867 = vmatpush.msra.mxu0 0.0
  %2868 = vmatpush.msra.mxu0 0.0
  %2869 = vmatpush.msra.mxu0 0.0
  %2870 = vmatpush.msra.mxu0 0.0
  %2871 = vmatpush.msra.mxu0 0.0
  %2872 = vmatpush.msra.mxu0 0.0
  %2873 = vmatpush.msra.mxu0 %v39
  %2874 = vmatpush.msra.mxu0 %v38
  %2875 = vmatpush.msra.mxu0 %v37
  %2876 = vmatpush.msra.mxu0 %v36
  %2877 = vmatpush.msra.mxu0 %v35
  %2878 = vmatpush.msra.mxu0 %v34
  %2879 = vmatmul.f32.gmra.mxu0 %v2858
  %v2880 = vpop.f32.mrf.mxu0
  %v2881 = vadd.f32 %v2855, %v2880
  %2882 = vmatmul.f32.gmra.mxu0 %v2861
  %v2883 = vpop.f32.mrf.mxu0
  %v2884 = vadd.f32 %v2855, %v2883
  %2885 = vdwg.mxu0
  %v2886 = vperm.slane %v47, 0
  %v2888 = vsel %vm2856, %v2881, 0
  %v2891 = vsel %vm2856, %v2884, 0
  %2893 = vmatpush.msra.mxu0 0.0
  %2894 = vmatpush.msra.mxu0 0.0
  %2895 = vmatpush.msra.mxu0 0.0
  %2896 = vmatpush.msra.mxu0 0.0
  %2897 = vmatpush.msra.mxu0 0.0
  %2898 = vmatpush.msra.mxu0 0.0
  %2899 = vmatpush.msra.mxu0 0.0
  %2900 = vmatpush.msra.mxu0 0.0
  %2901 = vmatpush.msra.mxu0 0.0
  %2902 = vmatpush.msra.mxu0 0.0
  %2903 = vmatpush.msra.mxu0 %v46
  %2904 = vmatpush.msra.mxu0 %v45
  %2905 = vmatpush.msra.mxu0 %v44
  %2906 = vmatpush.msra.mxu0 %v43
  %2907 = vmatpush.msra.mxu0 %v42
  %2908 = vmatpush.msra.mxu0 %v41
  %2909 = vmatmul.f32.gmra.mxu0 %v2888
  %v2910 = vpop.f32.mrf.mxu0
  %v2911 = vadd.f32 %v2886, %v2910
  %2912 = vmatmul.f32.gmra.mxu0 %v2891
  %v2913 = vpop.f32.mrf.mxu0
  %v2914 = vadd.f32 %v2886, %v2913
  %2915 = vdwg.mxu0
  %vm2916 = vcmask 39936
  %2917 = vst.msk [vmem:[%s3] sm:$0xff] %vm2916, %v2911
  %vm2918 = vcmask 35840
  %2919 = vst.msk [vmem:[%s3 + $0x8] sm:$0xf] %vm2918, %v2914
  // Predicated region
  $region14: #{_forward_impl.1} parent=0 // pred_check
    _
  $region15: #{_forward_impl.1} parent=0 // pred_check_branch
    %2921 = sbr.rel (0) target = $region17
  $region16: #{_forward_impl.1} parent=0 // pred_region
    _
  $region17: #{_forward_impl.1} parent=0 // pred_fallthru
    _
  // Predicated region
  $region18: #{_forward_impl.1} parent=0 // pred_check
    _
  $region19: #{_forward_impl.1} parent=0 // pred_check_branch
    %2923 = sbr.rel (0) target = $region21
  $region20: #{_forward_impl.1} parent=0 // pred_region
    _
  $region21: #{_forward_impl.1} parent=0 // pred_fallthru
    _

</llo_original>
